<compile_context>
chip_gen: v5e
topology: v5e:2x2
jax: 0.10.0
libtpu: 0.0.40
codegen_flags: <defaults>
</compile_context>

<pallas_src>
import jax
import jax.numpy as jnp
from jax import lax
from jax.experimental import pallas as pl
from jax.experimental.pallas import tpu as pltpu

BN_EPS = 1e-5

# ---------------------------------------------------------------------------
# Packed f32 parameter slab layout, shape (8, 1024):
#   row 0 : s1  (1024)                dequant scale, layer 1
#   row 1 : b1  (1024)                bias, layer 1
#   row 2 : gamma1 (1024)
#   row 3 : beta1  (1024)
#   row 4 : [0:512] s2      [512:1024] b2
#   row 5 : [0:512] gamma2  [512:1024] beta2
#   row 6 : [0:128] s3  [128:256] b3  [256:384] gamma3  [384:512] beta3
#           [512:544] b4  [640:642] b5
#   row 7 : [0:32] w5[:,0]  [128:160] w5[:,1]
# All slice starts are 128-lane aligned.
# ---------------------------------------------------------------------------


def _bn_train(h, gamma, beta):
    """BatchNorm1d, training mode (biased batch variance), folded form."""
    mean = jnp.mean(h, axis=0, keepdims=True)
    mean_sq = jnp.mean(h * h, axis=0, keepdims=True)
    var = jnp.maximum(mean_sq - mean * mean, 0.0)     # clamp: one-pass cancellation
    scale = gamma * lax.rsqrt(var + BN_EPS)           # rsqrt -> EUP (free slot)
    return h * scale + (beta - mean * scale)          # one FMA pass over h


def projection_kernel(x_ref, w1_ref, w2_ref, w3_ref, w4_ref, p_ref, o_ref):
    """Fused MLP forward.  w1..w3 int8 (per-out-channel scale in the slab),
    w4 bf16, w5/biases/BN params in the f32 slab `p_ref` (see layout above)."""
    x = x_ref[...]

    def mm(h, w_ref):
        # int8/bf16 weight -> bf16, bf16 x bf16 -> f32 accumulate on the MXU.
        w = w_ref[...].astype(jnp.float32).astype(jnp.bfloat16)
        return jnp.dot(h.astype(jnp.bfloat16), w,
                       preferred_element_type=jnp.float32)

    # Layer 1: int8 Linear(in, 1024) -> dequant FMA -> ReLU -> BN
    h = mm(x, w1_ref) * p_ref[0:1, :] + p_ref[1:2, :]
    h = jnp.maximum(h, 0.0)
    h = _bn_train(h, p_ref[2:3, :], p_ref[3:4, :])

    # Layer 2: int8 Linear(1024, 512) -> dequant FMA -> ReLU -> BN
    h = mm(h, w2_ref) * p_ref[4:5, 0:512] + p_ref[4:5, 512:1024]
    h = jnp.maximum(h, 0.0)
    h = _bn_train(h, p_ref[5:6, 0:512], p_ref[5:6, 512:1024])

    # Layer 3: int8 Linear(512, 128) -> dequant FMA -> ReLU -> BN
    h = mm(h, w3_ref) * p_ref[6:7, 0:128] + p_ref[6:7, 128:256]
    h = jnp.maximum(h, 0.0)
    h = _bn_train(h, p_ref[6:7, 256:384], p_ref[6:7, 384:512])

    # Layer 4: bf16 Linear(128, 32) -> ReLU
    h = mm(h, w4_ref) + p_ref[6:7, 512:544]
    h = jnp.maximum(h, 0.0)

    # Layer 5: Linear(32, 2) on the VPU: broadcast-multiply + lane reduce.
    w5c0 = p_ref[7:8, 0:32]        # (1, 32) = w5[:, 0]
    w5c1 = p_ref[7:8, 128:160]     # (1, 32) = w5[:, 1]
    b5 = p_ref[6:7, 640:642]       # (1, 2)
    out0 = jnp.sum(h * w5c0, axis=1, keepdims=True)   # (B, 1)
    out1 = jnp.sum(h * w5c1, axis=1, keepdims=True)   # (B, 1)
    col = lax.broadcasted_iota(jnp.int32, (h.shape[0], 2), 1)
    o_ref[...] = jnp.where(col == 0, out0, out1) + b5
    # Final `outputs.view(-1, outputs.size(-1))` is a no-op for 2-D output.


def projection_forward(x, weights, slab):
    batch = x.shape[0]
    in_len = x.shape[1]
    args = (x,) + tuple(weights) + (slab,)

    flops = 2 * batch * (in_len * 1024 + 1024 * 512 + 512 * 128 + 128 * 32 + 32 * 2)
    bytes_accessed = (in_len * 1024 + 1024 * 512 + 512 * 128        # int8 weights
                      + 128 * 32 * 2                                 # bf16 w4
                      + 8 * 1024 * 4                                 # f32 slab
                      + batch * in_len * 4 + batch * 2 * 4)          # act in/out
    cost = pl.CostEstimate(flops=flops,
                           transcendentals=1024 + 512 + 128,         # rsqrt / BN
                           bytes_accessed=bytes_accessed)

    vmem = lambda: pl.BlockSpec(memory_space=pltpu.MemorySpace.VMEM)
    return pl.pallas_call(
        projection_kernel,
        out_shape=jax.ShapeDtypeStruct((batch, 2), jnp.float32),
        in_specs=[vmem() for _ in args],
        out_specs=vmem(),
        cost_estimate=cost,
    )(*args)


def init_params(key, in_len):
    """Deterministic init matching the module's shapes.

    Linear weights/biases: PyTorch default U(-1/sqrt(fan_in), +1/sqrt(fan_in)),
    stored transposed as (in, out).  w1..w3 are int8-quantized per output
    channel (scale in the slab); w4 is bf16; w5 rides inside the f32 slab.
    BN gamma=1, beta=0 (fresh module).
    """
    dims = [in_len, 1024, 512, 128, 32, 2]
    keys = jax.random.split(key, 2 * (len(dims) - 1))
    ws, bs = [], []
    for i in range(len(dims) - 1):
        fan_in, fan_out = dims[i], dims[i + 1]
        bound = 1.0 / (fan_in ** 0.5)
        w = jax.random.uniform(keys[2 * i], (fan_in, fan_out),
                               minval=-bound, maxval=bound, dtype=jnp.float32)
        b = jax.random.uniform(keys[2 * i + 1], (fan_out,),
                               minval=-bound, maxval=bound, dtype=jnp.float32)
        ws.append(w)
        bs.append(b)

    def quant(w):
        s = jnp.maximum(jnp.max(jnp.abs(w), axis=0) / 127.0, 1e-12)   # (out,)
        wq = jnp.clip(jnp.round(w / s), -127.0, 127.0).astype(jnp.int8)
        return wq, s

    w1q, s1 = quant(ws[0])
    w2q, s2 = quant(ws[1])
    w3q, s3 = quant(ws[2])
    w4 = ws[3].astype(jnp.bfloat16)
    w5 = ws[4]                                   # (32, 2) f32, packed in slab

    slab = jnp.zeros((8, 1024), jnp.float32)
    slab = slab.at[0, :].set(s1)
    slab = slab.at[1, :].set(bs[0])
    slab = slab.at[2, :].set(jnp.ones(1024, jnp.float32))
    slab = slab.at[3, :].set(jnp.zeros(1024, jnp.float32))
    slab = slab.at[4, 0:512].set(s2)
    slab = slab.at[4, 512:1024].set(bs[1])
    slab = slab.at[5, 0:512].set(jnp.ones(512, jnp.float32))
    slab = slab.at[5, 512:1024].set(jnp.zeros(512, jnp.float32))
    slab = slab.at[6, 0:128].set(s3)
    slab = slab.at[6, 128:256].set(bs[2])
    slab = slab.at[6, 256:384].set(jnp.ones(128, jnp.float32))
    slab = slab.at[6, 384:512].set(jnp.zeros(128, jnp.float32))
    slab = slab.at[6, 512:544].set(bs[3])
    slab = slab.at[6, 640:642].set(bs[4])
    slab = slab.at[7, 0:32].set(w5[:, 0])
    slab = slab.at[7, 128:160].set(w5[:, 1])

    return (w1q, w2q, w3q, w4), slab


def projection_reference(x, weights, slab):
    """Pure-JAX reference using the exact same quantized / bf16 parameters."""
    w1q, w2q, w3q, w4 = weights

    def mm(h, w):
        return jnp.dot(h.astype(jnp.bfloat16),
                       w.astype(jnp.float32).astype(jnp.bfloat16),
                       preferred_element_type=jnp.float32)

    h = jnp.maximum(mm(x, w1q) * slab[0:1, :] + slab[1:2, :], 0.0)
    h = _bn_train(h, slab[2:3, :], slab[3:4, :])
    h = jnp.maximum(mm(h, w2q) * slab[4:5, 0:512] + slab[4:5, 512:1024], 0.0)
    h = _bn_train(h, slab[5:6, 0:512], slab[5:6, 512:1024])
    h = jnp.maximum(mm(h, w3q) * slab[6:7, 0:128] + slab[6:7, 128:256], 0.0)
    h = _bn_train(h, slab[6:7, 256:384], slab[6:7, 384:512])
    h = jnp.maximum(mm(h, w4) + slab[6:7, 512:544], 0.0)
    out0 = jnp.sum(h * slab[7:8, 0:32], axis=1, keepdims=True)
    out1 = jnp.sum(h * slab[7:8, 128:160], axis=1, keepdims=True)
    return jnp.concatenate([out0, out1], axis=1) + slab[6:7, 640:642]


if __name__ == "__main__":
    key = jax.random.PRNGKey(0)
    k_x, k_p = jax.random.split(key)

    batch, in_len = 8, 64   # in_len = "output_len of pretrained model * 2"
    x = jax.random.normal(k_x, (batch, in_len), dtype=jnp.float32)
    weights, slab = init_params(k_p, in_len)

    out = projection_forward(x, weights, slab)
    out = jax.block_until_ready(out)

    ref = projection_reference(x, weights, slab)
    assert out.shape == (batch, 2), out.shape
    assert jnp.allclose(out, ref, rtol=1e-2, atol=1e-2), \
        float(jnp.max(jnp.abs(out - ref)))

    print("KERNEL_OK")
</pallas_src>

<mosaic_0001>
module attributes {stable_mosaic.version = 11 : i64} {
  func.func @projection_kernel(%arg0: memref<8x64xf32, #tpu.memory_space<vmem>>, %arg1: memref<64x1024xi8, #tpu.memory_space<vmem>>, %arg2: memref<1024x512xi8, #tpu.memory_space<vmem>>, %arg3: memref<512x128xi8, #tpu.memory_space<vmem>>, %arg4: memref<128x32xbf16, #tpu.memory_space<vmem>>, %arg5: memref<8x1024xf32, #tpu.memory_space<vmem>>, %arg6: memref<8x2xf32, #tpu.memory_space<vmem>>) attributes {dimension_semantics = [], scalar_prefetch = 0 : i64, scratch_operands = 0 : i64, tpu.core_type = #tpu.core_type<tc>} {
    %c0 = arith.constant 0 : index
    %c0_0 = arith.constant 0 : index
    %0 = vector.load %arg0[%c0, %c0_0] : memref<8x64xf32, #tpu.memory_space<vmem>>, vector<8x64xf32>
    %c0_1 = arith.constant 0 : index
    %c0_2 = arith.constant 0 : index
    %1 = vector.load %arg1[%c0_1, %c0_2] : memref<64x1024xi8, #tpu.memory_space<vmem>>, vector<64x1024xi8>
    %2 = arith.sitofp %1 : vector<64x1024xi8> to vector<64x1024xf32>
    %3 = arith.truncf %2 : vector<64x1024xf32> to vector<64x1024xbf16>
    %4 = arith.truncf %0 : vector<8x64xf32> to vector<8x64xbf16>
    %cst = arith.constant dense<0.000000e+00> : vector<8x1024xf32>
    %5 = tpu.matmul %4, %3, %cst {dimension_numbers = #tpu.dot_dimension_numbers<[1], [0], [0], [1], [0, 0, 1, 1], [], []>} : vector<8x64xbf16>, vector<64x1024xbf16>, vector<8x1024xf32> -> vector<8x1024xf32>
    %c0_3 = arith.constant 0 : index
    %c0_4 = arith.constant 0 : index
    %6 = vector.load %arg5[%c0_3, %c0_4] : memref<8x1024xf32, #tpu.memory_space<vmem>>, vector<1x1024xf32>
    %7 = vector.broadcast %6 : vector<1x1024xf32> to vector<8x1024xf32>
    %8 = arith.mulf %5, %7 : vector<8x1024xf32>
    %c1 = arith.constant 1 : index
    %c0_5 = arith.constant 0 : index
    %9 = vector.load %arg5[%c1, %c0_5] : memref<8x1024xf32, #tpu.memory_space<vmem>>, vector<1x1024xf32>
    %10 = vector.broadcast %9 : vector<1x1024xf32> to vector<8x1024xf32>
    %11 = arith.addf %8, %10 : vector<8x1024xf32>
    %cst_6 = arith.constant 0.000000e+00 : f32
    %12 = vector.broadcast %cst_6 : f32 to vector<8x1024xf32>
    %13 = arith.maximumf %11, %12 : vector<8x1024xf32>
    %c2 = arith.constant 2 : index
    %c0_7 = arith.constant 0 : index
    %14 = vector.load %arg5[%c2, %c0_7] : memref<8x1024xf32, #tpu.memory_space<vmem>>, vector<1x1024xf32>
    %c3 = arith.constant 3 : index
    %c0_8 = arith.constant 0 : index
    %15 = vector.load %arg5[%c3, %c0_8] : memref<8x1024xf32, #tpu.memory_space<vmem>>, vector<1x1024xf32>
    %cst_9 = arith.constant dense<0.000000e+00> : vector<1024xf32>
    %16 = vector.multi_reduction <add>, %13, %cst_9 [0] : vector<8x1024xf32> to vector<1024xf32>
    %17 = vector.shape_cast %16 : vector<1024xf32> to vector<1x1024xf32>
    %cst_10 = arith.constant 8.000000e+00 : f32
    %18 = vector.broadcast %cst_10 : f32 to vector<1x1024xf32>
    %19 = arith.divf %17, %18 : vector<1x1024xf32>
    %20 = arith.mulf %13, %13 : vector<8x1024xf32>
    %cst_11 = arith.constant dense<0.000000e+00> : vector<1024xf32>
    %21 = vector.multi_reduction <add>, %20, %cst_11 [0] : vector<8x1024xf32> to vector<1024xf32>
    %22 = vector.shape_cast %21 : vector<1024xf32> to vector<1x1024xf32>
    %cst_12 = arith.constant 8.000000e+00 : f32
    %23 = vector.broadcast %cst_12 : f32 to vector<1x1024xf32>
    %24 = arith.divf %22, %23 : vector<1x1024xf32>
    %25 = arith.mulf %19, %19 : vector<1x1024xf32>
    %26 = arith.subf %24, %25 : vector<1x1024xf32>
    %cst_13 = arith.constant 0.000000e+00 : f32
    %27 = vector.broadcast %cst_13 : f32 to vector<1x1024xf32>
    %28 = arith.maximumf %26, %27 : vector<1x1024xf32>
    %cst_14 = arith.constant 9.99999974E-6 : f32
    %29 = vector.broadcast %cst_14 : f32 to vector<1x1024xf32>
    %30 = arith.addf %28, %29 : vector<1x1024xf32>
    %31 = math.rsqrt %30 : vector<1x1024xf32>
    %32 = arith.mulf %14, %31 : vector<1x1024xf32>
    %33 = vector.broadcast %32 : vector<1x1024xf32> to vector<8x1024xf32>
    %34 = arith.mulf %13, %33 : vector<8x1024xf32>
    %35 = arith.mulf %19, %32 : vector<1x1024xf32>
    %36 = arith.subf %15, %35 : vector<1x1024xf32>
    %37 = vector.broadcast %36 : vector<1x1024xf32> to vector<8x1024xf32>
    %38 = arith.addf %34, %37 : vector<8x1024xf32>
    %c0_15 = arith.constant 0 : index
    %c0_16 = arith.constant 0 : index
    %39 = vector.load %arg2[%c0_15, %c0_16] : memref<1024x512xi8, #tpu.memory_space<vmem>>, vector<1024x512xi8>
    %40 = arith.sitofp %39 : vector<1024x512xi8> to vector<1024x512xf32>
    %41 = arith.truncf %40 : vector<1024x512xf32> to vector<1024x512xbf16>
    %42 = arith.truncf %38 : vector<8x1024xf32> to vector<8x1024xbf16>
    %cst_17 = arith.constant dense<0.000000e+00> : vector<8x512xf32>
    %43 = tpu.matmul %42, %41, %cst_17 {dimension_numbers = #tpu.dot_dimension_numbers<[1], [0], [0], [1], [0, 0, 1, 1], [], []>} : vector<8x1024xbf16>, vector<1024x512xbf16>, vector<8x512xf32> -> vector<8x512xf32>
    %c4 = arith.constant 4 : index
    %c0_18 = arith.constant 0 : index
    %44 = vector.load %arg5[%c4, %c0_18] : memref<8x1024xf32, #tpu.memory_space<vmem>>, vector<1x512xf32>
    %45 = vector.broadcast %44 : vector<1x512xf32> to vector<8x512xf32>
    %46 = arith.mulf %43, %45 : vector<8x512xf32>
    %c4_19 = arith.constant 4 : index
    %c512 = arith.constant 512 : index
    %47 = vector.load %arg5[%c4_19, %c512] : memref<8x1024xf32, #tpu.memory_space<vmem>>, vector<1x512xf32>
    %48 = vector.broadcast %47 : vector<1x512xf32> to vector<8x512xf32>
    %49 = arith.addf %46, %48 : vector<8x512xf32>
    %cst_20 = arith.constant 0.000000e+00 : f32
    %50 = vector.broadcast %cst_20 : f32 to vector<8x512xf32>
    %51 = arith.maximumf %49, %50 : vector<8x512xf32>
    %c5 = arith.constant 5 : index
    %c0_21 = arith.constant 0 : index
    %52 = vector.load %arg5[%c5, %c0_21] : memref<8x1024xf32, #tpu.memory_space<vmem>>, vector<1x512xf32>
    %c5_22 = arith.constant 5 : index
    %c512_23 = arith.constant 512 : index
    %53 = vector.load %arg5[%c5_22, %c512_23] : memref<8x1024xf32, #tpu.memory_space<vmem>>, vector<1x512xf32>
    %cst_24 = arith.constant dense<0.000000e+00> : vector<512xf32>
    %54 = vector.multi_reduction <add>, %51, %cst_24 [0] : vector<8x512xf32> to vector<512xf32>
    %55 = vector.shape_cast %54 : vector<512xf32> to vector<1x512xf32>
    %cst_25 = arith.constant 8.000000e+00 : f32
    %56 = vector.broadcast %cst_25 : f32 to vector<1x512xf32>
    %57 = arith.divf %55, %56 : vector<1x512xf32>
    %58 = arith.mulf %51, %51 : vector<8x512xf32>
    %cst_26 = arith.constant dense<0.000000e+00> : vector<512xf32>
    %59 = vector.multi_reduction <add>, %58, %cst_26 [0] : vector<8x512xf32> to vector<512xf32>
    %60 = vector.shape_cast %59 : vector<512xf32> to vector<1x512xf32>
    %cst_27 = arith.constant 8.000000e+00 : f32
    %61 = vector.broadcast %cst_27 : f32 to vector<1x512xf32>
    %62 = arith.divf %60, %61 : vector<1x512xf32>
    %63 = arith.mulf %57, %57 : vector<1x512xf32>
    %64 = arith.subf %62, %63 : vector<1x512xf32>
    %cst_28 = arith.constant 0.000000e+00 : f32
    %65 = vector.broadcast %cst_28 : f32 to vector<1x512xf32>
    %66 = arith.maximumf %64, %65 : vector<1x512xf32>
    %cst_29 = arith.constant 9.99999974E-6 : f32
    %67 = vector.broadcast %cst_29 : f32 to vector<1x512xf32>
    %68 = arith.addf %66, %67 : vector<1x512xf32>
    %69 = math.rsqrt %68 : vector<1x512xf32>
    %70 = arith.mulf %52, %69 : vector<1x512xf32>
    %71 = vector.broadcast %70 : vector<1x512xf32> to vector<8x512xf32>
    %72 = arith.mulf %51, %71 : vector<8x512xf32>
    %73 = arith.mulf %57, %70 : vector<1x512xf32>
    %74 = arith.subf %53, %73 : vector<1x512xf32>
    %75 = vector.broadcast %74 : vector<1x512xf32> to vector<8x512xf32>
    %76 = arith.addf %72, %75 : vector<8x512xf32>
    %c0_30 = arith.constant 0 : index
    %c0_31 = arith.constant 0 : index
    %77 = vector.load %arg3[%c0_30, %c0_31] : memref<512x128xi8, #tpu.memory_space<vmem>>, vector<512x128xi8>
    %78 = arith.sitofp %77 : vector<512x128xi8> to vector<512x128xf32>
    %79 = arith.truncf %78 : vector<512x128xf32> to vector<512x128xbf16>
    %80 = arith.truncf %76 : vector<8x512xf32> to vector<8x512xbf16>
    %cst_32 = arith.constant dense<0.000000e+00> : vector<8x128xf32>
    %81 = tpu.matmul %80, %79, %cst_32 {dimension_numbers = #tpu.dot_dimension_numbers<[1], [0], [0], [1], [0, 0, 1, 1], [], []>} : vector<8x512xbf16>, vector<512x128xbf16>, vector<8x128xf32> -> vector<8x128xf32>
    %c6 = arith.constant 6 : index
    %c0_33 = arith.constant 0 : index
    %82 = vector.load %arg5[%c6, %c0_33] : memref<8x1024xf32, #tpu.memory_space<vmem>>, vector<1x128xf32>
    %83 = vector.broadcast %82 : vector<1x128xf32> to vector<8x128xf32>
    %84 = arith.mulf %81, %83 : vector<8x128xf32>
    %c6_34 = arith.constant 6 : index
    %c128 = arith.constant 128 : index
    %85 = vector.load %arg5[%c6_34, %c128] : memref<8x1024xf32, #tpu.memory_space<vmem>>, vector<1x128xf32>
    %86 = vector.broadcast %85 : vector<1x128xf32> to vector<8x128xf32>
    %87 = arith.addf %84, %86 : vector<8x128xf32>
    %cst_35 = arith.constant 0.000000e+00 : f32
    %88 = vector.broadcast %cst_35 : f32 to vector<8x128xf32>
    %89 = arith.maximumf %87, %88 : vector<8x128xf32>
    %c6_36 = arith.constant 6 : index
    %c256 = arith.constant 256 : index
    %90 = vector.load %arg5[%c6_36, %c256] : memref<8x1024xf32, #tpu.memory_space<vmem>>, vector<1x128xf32>
    %c6_37 = arith.constant 6 : index
    %c384 = arith.constant 384 : index
    %91 = vector.load %arg5[%c6_37, %c384] : memref<8x1024xf32, #tpu.memory_space<vmem>>, vector<1x128xf32>
    %cst_38 = arith.constant dense<0.000000e+00> : vector<128xf32>
    %92 = vector.multi_reduction <add>, %89, %cst_38 [0] : vector<8x128xf32> to vector<128xf32>
    %93 = vector.shape_cast %92 : vector<128xf32> to vector<1x128xf32>
    %cst_39 = arith.constant 8.000000e+00 : f32
    %94 = vector.broadcast %cst_39 : f32 to vector<1x128xf32>
    %95 = arith.divf %93, %94 : vector<1x128xf32>
    %96 = arith.mulf %89, %89 : vector<8x128xf32>
    %cst_40 = arith.constant dense<0.000000e+00> : vector<128xf32>
    %97 = vector.multi_reduction <add>, %96, %cst_40 [0] : vector<8x128xf32> to vector<128xf32>
    %98 = vector.shape_cast %97 : vector<128xf32> to vector<1x128xf32>
    %cst_41 = arith.constant 8.000000e+00 : f32
    %99 = vector.broadcast %cst_41 : f32 to vector<1x128xf32>
    %100 = arith.divf %98, %99 : vector<1x128xf32>
    %101 = arith.mulf %95, %95 : vector<1x128xf32>
    %102 = arith.subf %100, %101 : vector<1x128xf32>
    %cst_42 = arith.constant 0.000000e+00 : f32
    %103 = vector.broadcast %cst_42 : f32 to vector<1x128xf32>
    %104 = arith.maximumf %102, %103 : vector<1x128xf32>
    %cst_43 = arith.constant 9.99999974E-6 : f32
    %105 = vector.broadcast %cst_43 : f32 to vector<1x128xf32>
    %106 = arith.addf %104, %105 : vector<1x128xf32>
    %107 = math.rsqrt %106 : vector<1x128xf32>
    %108 = arith.mulf %90, %107 : vector<1x128xf32>
    %109 = vector.broadcast %108 : vector<1x128xf32> to vector<8x128xf32>
    %110 = arith.mulf %89, %109 : vector<8x128xf32>
    %111 = arith.mulf %95, %108 : vector<1x128xf32>
    %112 = arith.subf %91, %111 : vector<1x128xf32>
    %113 = vector.broadcast %112 : vector<1x128xf32> to vector<8x128xf32>
    %114 = arith.addf %110, %113 : vector<8x128xf32>
    %c0_44 = arith.constant 0 : index
    %c0_45 = arith.constant 0 : index
    %115 = vector.load %arg4[%c0_44, %c0_45] : memref<128x32xbf16, #tpu.memory_space<vmem>>, vector<128x32xbf16>
    %116 = arith.extf %115 : vector<128x32xbf16> to vector<128x32xf32>
    %117 = arith.truncf %116 : vector<128x32xf32> to vector<128x32xbf16>
    %118 = arith.truncf %114 : vector<8x128xf32> to vector<8x128xbf16>
    %cst_46 = arith.constant dense<0.000000e+00> : vector<8x32xf32>
    %119 = tpu.matmul %118, %117, %cst_46 {dimension_numbers = #tpu.dot_dimension_numbers<[1], [0], [0], [1], [0, 0, 1, 1], [], []>} : vector<8x128xbf16>, vector<128x32xbf16>, vector<8x32xf32> -> vector<8x32xf32>
    %c6_47 = arith.constant 6 : index
    %c512_48 = arith.constant 512 : index
    %120 = vector.load %arg5[%c6_47, %c512_48] : memref<8x1024xf32, #tpu.memory_space<vmem>>, vector<1x32xf32>
    %121 = vector.broadcast %120 : vector<1x32xf32> to vector<8x32xf32>
    %122 = arith.addf %119, %121 : vector<8x32xf32>
    %cst_49 = arith.constant 0.000000e+00 : f32
    %123 = vector.broadcast %cst_49 : f32 to vector<8x32xf32>
    %124 = arith.maximumf %122, %123 : vector<8x32xf32>
    %c7 = arith.constant 7 : index
    %c0_50 = arith.constant 0 : index
    %125 = vector.load %arg5[%c7, %c0_50] : memref<8x1024xf32, #tpu.memory_space<vmem>>, vector<1x32xf32>
    %c7_51 = arith.constant 7 : index
    %c128_52 = arith.constant 128 : index
    %126 = vector.load %arg5[%c7_51, %c128_52] : memref<8x1024xf32, #tpu.memory_space<vmem>>, vector<1x32xf32>
    %c6_53 = arith.constant 6 : index
    %c640 = arith.constant 640 : index
    %127 = vector.load %arg5[%c6_53, %c640] : memref<8x1024xf32, #tpu.memory_space<vmem>>, vector<1x2xf32>
    %128 = vector.broadcast %125 : vector<1x32xf32> to vector<8x32xf32>
    %129 = arith.mulf %124, %128 : vector<8x32xf32>
    %cst_54 = arith.constant dense<0.000000e+00> : vector<8xf32>
    %130 = vector.multi_reduction <add>, %129, %cst_54 [1] : vector<8x32xf32> to vector<8xf32>
    %131 = vector.shape_cast %130 : vector<8xf32> to vector<8x1xf32>
    %132 = vector.broadcast %126 : vector<1x32xf32> to vector<8x32xf32>
    %133 = arith.mulf %124, %132 : vector<8x32xf32>
    %cst_55 = arith.constant dense<0.000000e+00> : vector<8xf32>
    %134 = vector.multi_reduction <add>, %133, %cst_55 [1] : vector<8x32xf32> to vector<8xf32>
    %135 = vector.shape_cast %134 : vector<8xf32> to vector<8x1xf32>
    %136 = tpu.iota {dimensions = array<i32: 1>} : vector<8x2xi32>
    %c0_i32 = arith.constant 0 : i32
    %137 = vector.broadcast %c0_i32 : i32 to vector<8x2xi32>
    %138 = arith.cmpi eq, %136, %137 : vector<8x2xi32>
    %139 = vector.shape_cast %131 : vector<8x1xf32> to vector<8x1xf32>
    %140 = vector.broadcast %139 : vector<8x1xf32> to vector<8x2xf32>
    %141 = vector.shape_cast %135 : vector<8x1xf32> to vector<8x1xf32>
    %142 = vector.broadcast %141 : vector<8x1xf32> to vector<8x2xf32>
    %143 = arith.select %138, %140, %142 : vector<8x2xi1>, vector<8x2xf32>
    %144 = vector.broadcast %127 : vector<1x2xf32> to vector<8x2xf32>
    %145 = arith.addf %143, %144 : vector<8x2xf32>
    %c0_56 = arith.constant 0 : index
    %c0_57 = arith.constant 0 : index
    %146 = vector.load %arg6[%c0_56, %c0_57] : memref<8x2xf32, #tpu.memory_space<vmem>>, vector<8x2xf32>
    tpu.vector_store %arg6[%c0_56, %c0_57], %145 {strides = array<i32>} : memref<8x2xf32, #tpu.memory_space<vmem>>, vector<8x2xf32>,
    return
  }
}

</mosaic_0001>

<llo_original>
// kernel: tpu_custom_call.1
$region0: #{tpu_custom_call.1}
  #allocation0 [shape = 'u32[]', space=smem, size = 0x4, offset = 0x4, fixed_abs, tag = 'smem constant byte address 0x4 - core index']
  #allocation1 [shape = 'u32[72,128]{1,0:T(1,128)}', space=vmem, size = 0x9000, scoped, tag = 'internal scratch']
  %s0 = inlined_call_operand.vmem [shape: f32[8,64], index: 0, kind: input, shape index: {}]
  %s1 = inlined_call_operand.hbm [shape: s8[64,1024], index: 1, kind: input, shape index: {}]
  %s2 = inlined_call_operand.hbm [shape: s8[1024,512], index: 2, kind: input, shape index: {}]
  %s3 = inlined_call_operand.hbm [shape: s8[512,128], index: 3, kind: input, shape index: {}]
  %s4 = inlined_call_operand.vmem [shape: bf16[128,32], index: 4, kind: input, shape index: {}]
  %s5 = inlined_call_operand.vmem [shape: f32[8,1024], index: 5, kind: input, shape index: {}]
  %s6 = inlined_call_operand.vmem [shape: f32[8,2], index: 6, kind: output, shape index: {}]
  %s7 = sld [smem:[#allocation0]]
  $region46: #{tpu_custom_call.1} parent=0
    _
  %s9 = ssub.s32 1, %s7
  %s10 = scalar_select 0, %s9, %s7
  $region1: #{tpu_custom_call.1} parent=0
    #allocation2 [shape = 'u8[65536]{0}', space=vmem, size = 0x10000, scoped, tag = 'input window, operand 1, single buffered']
    #allocation3 [shape = 's32[1]{0}', space=sflag, size = 0x4, scoped, tag = 'scoped memory for tpu_custom_call.1']
    #allocation4 [shape = 'u8[524288]{0}', space=vmem, size = 0x80000, scoped, tag = 'input window, operand 2, single buffered']
    #allocation5 [shape = 's32[1]{0}', space=sflag, size = 0x4, scoped, tag = 'scoped memory for tpu_custom_call.1']
    #allocation6 [shape = 'u8[65536]{0}', space=vmem, size = 0x10000, scoped, tag = 'input window, operand 3, single buffered']
    %11 = vsyncpa [#allocation3], 0
    %12 = vsyncpa [#allocation5], 0
    // Predicated region
    $region2: #{tpu_custom_call.1} parent=1 // pred_check
      _
    $region3: #{tpu_custom_call.1} parent=1 // pred_check_branch
      %14 = sbr.rel (0) target = $region5
    $region4: #{tpu_custom_call.1} parent=1 // pred_region
      _
    $region5: #{tpu_custom_call.1} parent=1 // pred_fallthru
      _
    // Predicated region
    $region6: #{tpu_custom_call.1} parent=1 // pred_check
      _
    $region7: #{tpu_custom_call.1} parent=1 // pred_check_branch
      %16 = sbr.rel (0) target = $region9
    $region8: #{tpu_custom_call.1} parent=1 // pred_region
      %18 = vsyncadd [#allocation3], 0
      %s19 = sshll.u32 %s1, 4
      %s20 = int_to_ptr.hbm [resolvable:$true] %s19
      %s21 = sshll.u32 [#allocation2], 4
      %s22 = int_to_ptr.vmem [resolvable:$true] %s21
      %27 = dma.hbm_to_vmem [thread:$0]  %s20, 2048, %s22, [#allocation3], 1024, 1024, 64
    $region9: #{tpu_custom_call.1} parent=1 // pred_fallthru
      _
    // Predicated region
    $region10: #{tpu_custom_call.1} parent=1 // pred_check
      _
    $region11: #{tpu_custom_call.1} parent=1 // pred_check_branch
      %29 = sbr.rel (0) target = $region13
    $region12: #{tpu_custom_call.1} parent=1 // pred_region
      %31 = vsyncadd [#allocation5], 0
      %s32 = sshll.u32 %s2, 4
      %s33 = int_to_ptr.hbm [resolvable:$true] %s32
      %s34 = sshll.u32 [#allocation4], 4
      %s35 = int_to_ptr.vmem [resolvable:$true] %s34
      %40 = dma.hbm_to_vmem [thread:$0]  %s33, 16384, %s35, [#allocation5], 512, 512, 32
    $region13: #{tpu_custom_call.1} parent=1 // pred_fallthru
      _
    // Predicated region
    $region14: #{tpu_custom_call.1} parent=1 // pred_check
      _
    $region15: #{tpu_custom_call.1} parent=1 // pred_check_branch
      %42 = sbr.rel (0) target = $region17
    $region16: #{tpu_custom_call.1} parent=1 // pred_region
      %44 = vsyncadd [#allocation5], 0
      %s45 = sshll.u32 %s3, 4
      %s46 = int_to_ptr.hbm [resolvable:$true] %s45
      %s47 = sshll.u32 [#allocation6], 4
      %s48 = int_to_ptr.vmem [resolvable:$true] %s47
      %53 = dma.hbm_to_vmem [thread:$0]  %s46, 2048, %s48, [#allocation5], 128, 128, 8
    $region17: #{tpu_custom_call.1} parent=1 // pred_fallthru
      _
    // Predicated region
    $region18: #{tpu_custom_call.1} parent=1 // pred_check
      _
    $region19: #{tpu_custom_call.1} parent=1 // pred_check_branch
      %55 = sbr.rel (0) target = $region21
    $region20: #{tpu_custom_call.1} parent=1 // pred_region
      _
    $region21: #{tpu_custom_call.1} parent=1 // pred_fallthru
      _
    // Predicated region
    $region22: #{tpu_custom_call.1} parent=1 // pred_check
      _
    $region23: #{tpu_custom_call.1} parent=1 // pred_check_branch
      %57 = sbr.rel (0) target = $region25
    $region24: #{tpu_custom_call.1} parent=1 // pred_region
      _
    $region25: #{tpu_custom_call.1} parent=1 // pred_fallthru
      _
    // Predicated region
    $region26: #{tpu_custom_call.1} parent=1 // pred_check
      _
    $region27: #{tpu_custom_call.1} parent=1 // pred_check_branch
      %59 = sbr.rel (0) target = $region29
    $region28: #{tpu_custom_call.1} parent=1 // pred_region
      %61 = dma.done [#allocation3], 2048
    $region29: #{tpu_custom_call.1} parent=1 // pred_fallthru
      _
    // Predicated region
    $region30: #{tpu_custom_call.1} parent=1 // pred_check
      _
    $region31: #{tpu_custom_call.1} parent=1 // pred_check_branch
      %63 = sbr.rel (0) target = $region33
    $region32: #{tpu_custom_call.1} parent=1 // pred_region
      %65 = dma.done [#allocation5], 16384
    $region33: #{tpu_custom_call.1} parent=1 // pred_fallthru
      _
    // Predicated region
    $region34: #{tpu_custom_call.1} parent=1 // pred_check
      _
    $region35: #{tpu_custom_call.1} parent=1 // pred_check_branch
      %67 = sbr.rel (0) target = $region37
    $region36: #{tpu_custom_call.1} parent=1 // pred_region
      %69 = dma.done [#allocation5], 2048
    $region37: #{tpu_custom_call.1} parent=1 // pred_fallthru
      _
    %v71 = vld [vmem:[%s0] sm:$0xff]
    %v72 = vld [vmem:[#allocation2] sm:$0xff]
    %v73 = vld [vmem:[#allocation2 + $0x8] sm:$0xff]
    %v74 = vld [vmem:[#allocation2 + $0x10] sm:$0xff]
    %v75 = vld [vmem:[#allocation2 + $0x18] sm:$0xff]
    %v76 = vld [vmem:[#allocation2 + $0x20] sm:$0xff]
    %v77 = vld [vmem:[#allocation2 + $0x28] sm:$0xff]
    %v78 = vld [vmem:[#allocation2 + $0x30] sm:$0xff]
    %v79 = vld [vmem:[#allocation2 + $0x38] sm:$0xff]
    %v80 = vld [vmem:[#allocation2 + $0x40] sm:$0xff]
    %v81 = vld [vmem:[#allocation2 + $0x48] sm:$0xff]
    %v82 = vld [vmem:[#allocation2 + $0x50] sm:$0xff]
    %v83 = vld [vmem:[#allocation2 + $0x58] sm:$0xff]
    %v84 = vld [vmem:[#allocation2 + $0x60] sm:$0xff]
    %v85 = vld [vmem:[#allocation2 + $0x68] sm:$0xff]
    %v86 = vld [vmem:[#allocation2 + $0x70] sm:$0xff]
    %v87 = vld [vmem:[#allocation2 + $0x78] sm:$0xff]
    %v88 = vunpack.c.0.s8 %v72
    %v89 = vunpack.c.0.s8 %v73
    %v90 = vunpack.c.0.s8 %v74
    %v91 = vunpack.c.0.s8 %v75
    %v92 = vunpack.c.0.s8 %v76
    %v93 = vunpack.c.0.s8 %v77
    %v94 = vunpack.c.0.s8 %v78
    %v95 = vunpack.c.0.s8 %v79
    %v96 = vunpack.c.1.s8 %v72
    %v97 = vunpack.c.1.s8 %v73
    %v98 = vunpack.c.1.s8 %v74
    %v99 = vunpack.c.1.s8 %v75
    %v100 = vunpack.c.1.s8 %v76
    %v101 = vunpack.c.1.s8 %v77
    %v102 = vunpack.c.1.s8 %v78
    %v103 = vunpack.c.1.s8 %v79
    %v104 = vunpack.c.2.s8 %v72
    %v105 = vunpack.c.2.s8 %v73
    %v106 = vunpack.c.2.s8 %v74
    %v107 = vunpack.c.2.s8 %v75
    %v108 = vunpack.c.2.s8 %v76
    %v109 = vunpack.c.2.s8 %v77
    %v110 = vunpack.c.2.s8 %v78
    %v111 = vunpack.c.2.s8 %v79
    %v112 = vunpack.c.3.s8 %v72
    %v113 = vunpack.c.3.s8 %v73
    %v114 = vunpack.c.3.s8 %v74
    %v115 = vunpack.c.3.s8 %v75
    %v116 = vunpack.c.3.s8 %v76
    %v117 = vunpack.c.3.s8 %v77
    %v118 = vunpack.c.3.s8 %v78
    %v119 = vunpack.c.3.s8 %v79
    %v120 = vunpack.c.0.s8 %v80
    %v121 = vunpack.c.0.s8 %v81
    %v122 = vunpack.c.0.s8 %v82
    %v123 = vunpack.c.0.s8 %v83
    %v124 = vunpack.c.0.s8 %v84
    %v125 = vunpack.c.0.s8 %v85
    %v126 = vunpack.c.0.s8 %v86
    %v127 = vunpack.c.0.s8 %v87
    %v128 = vunpack.c.1.s8 %v80
    %v129 = vunpack.c.1.s8 %v81
    %v130 = vunpack.c.1.s8 %v82
    %v131 = vunpack.c.1.s8 %v83
    %v132 = vunpack.c.1.s8 %v84
    %v133 = vunpack.c.1.s8 %v85
    %v134 = vunpack.c.1.s8 %v86
    %v135 = vunpack.c.1.s8 %v87
    %v136 = vunpack.c.2.s8 %v80
    %v137 = vunpack.c.2.s8 %v81
    %v138 = vunpack.c.2.s8 %v82
    %v139 = vunpack.c.2.s8 %v83
    %v140 = vunpack.c.2.s8 %v84
    %v141 = vunpack.c.2.s8 %v85
    %v142 = vunpack.c.2.s8 %v86
    %v143 = vunpack.c.2.s8 %v87
    %v144 = vunpack.c.3.s8 %v80
    %v145 = vunpack.c.3.s8 %v81
    %v146 = vunpack.c.3.s8 %v82
    %v147 = vunpack.c.3.s8 %v83
    %v148 = vunpack.c.3.s8 %v84
    %v149 = vunpack.c.3.s8 %v85
    %v150 = vunpack.c.3.s8 %v86
    %v151 = vunpack.c.3.s8 %v87
    %v152 = vcvt.s32.f32 %v88
    %v153 = vcvt.s32.f32 %v89
    %v154 = vcvt.s32.f32 %v90
    %v155 = vcvt.s32.f32 %v91
    %v156 = vcvt.s32.f32 %v92
    %v157 = vcvt.s32.f32 %v93
    %v158 = vcvt.s32.f32 %v94
    %v159 = vcvt.s32.f32 %v95
    %v160 = vcvt.s32.f32 %v96
    %v161 = vcvt.s32.f32 %v97
    %v162 = vcvt.s32.f32 %v98
    %v163 = vcvt.s32.f32 %v99
    %v164 = vcvt.s32.f32 %v100
    %v165 = vcvt.s32.f32 %v101
    %v166 = vcvt.s32.f32 %v102
    %v167 = vcvt.s32.f32 %v103
    %v168 = vcvt.s32.f32 %v104
    %v169 = vcvt.s32.f32 %v105
    %v170 = vcvt.s32.f32 %v106
    %v171 = vcvt.s32.f32 %v107
    %v172 = vcvt.s32.f32 %v108
    %v173 = vcvt.s32.f32 %v109
    %v174 = vcvt.s32.f32 %v110
    %v175 = vcvt.s32.f32 %v111
    %v176 = vcvt.s32.f32 %v112
    %v177 = vcvt.s32.f32 %v113
    %v178 = vcvt.s32.f32 %v114
    %v179 = vcvt.s32.f32 %v115
    %v180 = vcvt.s32.f32 %v116
    %v181 = vcvt.s32.f32 %v117
    %v182 = vcvt.s32.f32 %v118
    %v183 = vcvt.s32.f32 %v119
    %v184 = vcvt.s32.f32 %v120
    %v185 = vcvt.s32.f32 %v121
    %v186 = vcvt.s32.f32 %v122
    %v187 = vcvt.s32.f32 %v123
    %v188 = vcvt.s32.f32 %v124
    %v189 = vcvt.s32.f32 %v125
    %v190 = vcvt.s32.f32 %v126
    %v191 = vcvt.s32.f32 %v127
    %v192 = vcvt.s32.f32 %v128
    %v193 = vcvt.s32.f32 %v129
    %v194 = vcvt.s32.f32 %v130
    %v195 = vcvt.s32.f32 %v131
    %v196 = vcvt.s32.f32 %v132
    %v197 = vcvt.s32.f32 %v133
    %v198 = vcvt.s32.f32 %v134
    %v199 = vcvt.s32.f32 %v135
    %v200 = vcvt.s32.f32 %v136
    %v201 = vcvt.s32.f32 %v137
    %v202 = vcvt.s32.f32 %v138
    %v203 = vcvt.s32.f32 %v139
    %v204 = vcvt.s32.f32 %v140
    %v205 = vcvt.s32.f32 %v141
    %v206 = vcvt.s32.f32 %v142
    %v207 = vcvt.s32.f32 %v143
    %v208 = vcvt.s32.f32 %v144
    %v209 = vcvt.s32.f32 %v145
    %v210 = vcvt.s32.f32 %v146
    %v211 = vcvt.s32.f32 %v147
    %v212 = vcvt.s32.f32 %v148
    %v213 = vcvt.s32.f32 %v149
    %v214 = vcvt.s32.f32 %v150
    %v215 = vcvt.s32.f32 %v151
    %v216 = vpack.c.bf16 %v160, %v152
    %v217 = vpack.c.bf16 %v161, %v153
    %v218 = vpack.c.bf16 %v162, %v154
    %v219 = vpack.c.bf16 %v163, %v155
    %v220 = vpack.c.bf16 %v164, %v156
    %v221 = vpack.c.bf16 %v165, %v157
    %v222 = vpack.c.bf16 %v166, %v158
    %v223 = vpack.c.bf16 %v167, %v159
    %v224 = vpack.c.bf16 %v176, %v168
    %v225 = vpack.c.bf16 %v177, %v169
    %v226 = vpack.c.bf16 %v178, %v170
    %v227 = vpack.c.bf16 %v179, %v171
    %v228 = vpack.c.bf16 %v180, %v172
    %v229 = vpack.c.bf16 %v181, %v173
    %v230 = vpack.c.bf16 %v182, %v174
    %v231 = vpack.c.bf16 %v183, %v175
    %v232 = vpack.c.bf16 %v192, %v184
    %v233 = vpack.c.bf16 %v193, %v185
    %v234 = vpack.c.bf16 %v194, %v186
    %v235 = vpack.c.bf16 %v195, %v187
    %v236 = vpack.c.bf16 %v196, %v188
    %v237 = vpack.c.bf16 %v197, %v189
    %v238 = vpack.c.bf16 %v198, %v190
    %v239 = vpack.c.bf16 %v199, %v191
    %v240 = vpack.c.bf16 %v208, %v200
    %v241 = vpack.c.bf16 %v209, %v201
    %v242 = vpack.c.bf16 %v210, %v202
    %v243 = vpack.c.bf16 %v211, %v203
    %v244 = vpack.c.bf16 %v212, %v204
    %v245 = vpack.c.bf16 %v213, %v205
    %v246 = vpack.c.bf16 %v214, %v206
    %v247 = vpack.c.bf16 %v215, %v207
    %v248 = vpack.c.bf16 %v71, %v71
    %vm249 = vcmask 523264
    %v251 = vsel %vm249, %v248, 0
    %253 = vmatpush.bf16.msra.mxu0 0
    %254 = vmatpush.bf16.msra.mxu0 0
    %255 = vmatpush.bf16.msra.mxu0 0
    %256 = vmatpush.bf16.msra.mxu0 0
    %257 = vmatpush.bf16.msra.mxu0 %v240
    %258 = vmatpush.bf16.msra.mxu0 %v232
    %259 = vmatpush.bf16.msra.mxu0 %v224
    %260 = vmatpush.bf16.msra.mxu0 %v216
    %261 = vmatmul.bf16.gmra.mxu0 %v251
    %v262 = vpop.f32.mrf.mxu0
    %v263 = vadd.f32 0.0, %v262
    %v264 = vpop.f32.mrf.mxu0
    %265 = vdwg.mxu0
    %266 = vmatpush.bf16.msra.mxu0 0
    %267 = vmatpush.bf16.msra.mxu0 0
    %268 = vmatpush.bf16.msra.mxu0 0
    %269 = vmatpush.bf16.msra.mxu0 0
    %270 = vmatpush.bf16.msra.mxu0 %v241
    %271 = vmatpush.bf16.msra.mxu0 %v233
    %272 = vmatpush.bf16.msra.mxu0 %v225
    %273 = vmatpush.bf16.msra.mxu0 %v217
    %274 = vmatmul.bf16.gmra.mxu0 %v251
    %v275 = vpop.f32.mrf.mxu0
    %v276 = vadd.f32 0.0, %v275
    %v277 = vpop.f32.mrf.mxu0
    %278 = vdwg.mxu0
    %279 = vmatpush.bf16.msra.mxu0 0
    %280 = vmatpush.bf16.msra.mxu0 0
    %281 = vmatpush.bf16.msra.mxu0 0
    %282 = vmatpush.bf16.msra.mxu0 0
    %283 = vmatpush.bf16.msra.mxu0 %v242
    %284 = vmatpush.bf16.msra.mxu0 %v234
    %285 = vmatpush.bf16.msra.mxu0 %v226
    %286 = vmatpush.bf16.msra.mxu0 %v218
    %287 = vmatmul.bf16.gmra.mxu0 %v251
    %v288 = vpop.f32.mrf.mxu0
    %v289 = vadd.f32 0.0, %v288
    %v290 = vpop.f32.mrf.mxu0
    %291 = vdwg.mxu0
    %292 = vmatpush.bf16.msra.mxu0 0
    %293 = vmatpush.bf16.msra.mxu0 0
    %294 = vmatpush.bf16.msra.mxu0 0
    %295 = vmatpush.bf16.msra.mxu0 0
    %296 = vmatpush.bf16.msra.mxu0 %v243
    %297 = vmatpush.bf16.msra.mxu0 %v235
    %298 = vmatpush.bf16.msra.mxu0 %v227
    %299 = vmatpush.bf16.msra.mxu0 %v219
    %300 = vmatmul.bf16.gmra.mxu0 %v251
    %v301 = vpop.f32.mrf.mxu0
    %v302 = vadd.f32 0.0, %v301
    %v303 = vpop.f32.mrf.mxu0
    %304 = vdwg.mxu0
    %305 = vmatpush.bf16.msra.mxu0 0
    %306 = vmatpush.bf16.msra.mxu0 0
    %307 = vmatpush.bf16.msra.mxu0 0
    %308 = vmatpush.bf16.msra.mxu0 0
    %309 = vmatpush.bf16.msra.mxu0 %v244
    %310 = vmatpush.bf16.msra.mxu0 %v236
    %311 = vmatpush.bf16.msra.mxu0 %v228
    %312 = vmatpush.bf16.msra.mxu0 %v220
    %313 = vmatmul.bf16.gmra.mxu0 %v251
    %v314 = vpop.f32.mrf.mxu0
    %v315 = vadd.f32 0.0, %v314
    %v316 = vpop.f32.mrf.mxu0
    %317 = vdwg.mxu0
    %318 = vmatpush.bf16.msra.mxu0 0
    %319 = vmatpush.bf16.msra.mxu0 0
    %320 = vmatpush.bf16.msra.mxu0 0
    %321 = vmatpush.bf16.msra.mxu0 0
    %322 = vmatpush.bf16.msra.mxu0 %v245
    %323 = vmatpush.bf16.msra.mxu0 %v237
    %324 = vmatpush.bf16.msra.mxu0 %v229
    %325 = vmatpush.bf16.msra.mxu0 %v221
    %326 = vmatmul.bf16.gmra.mxu0 %v251
    %v327 = vpop.f32.mrf.mxu0
    %v328 = vadd.f32 0.0, %v327
    %v329 = vpop.f32.mrf.mxu0
    %330 = vdwg.mxu0
    %331 = vmatpush.bf16.msra.mxu0 0
    %332 = vmatpush.bf16.msra.mxu0 0
    %333 = vmatpush.bf16.msra.mxu0 0
    %334 = vmatpush.bf16.msra.mxu0 0
    %335 = vmatpush.bf16.msra.mxu0 %v246
    %336 = vmatpush.bf16.msra.mxu0 %v238
    %337 = vmatpush.bf16.msra.mxu0 %v230
    %338 = vmatpush.bf16.msra.mxu0 %v222
    %339 = vmatmul.bf16.gmra.mxu0 %v251
    %v340 = vpop.f32.mrf.mxu0
    %v341 = vadd.f32 0.0, %v340
    %v342 = vpop.f32.mrf.mxu0
    %343 = vdwg.mxu0
    %344 = vmatpush.bf16.msra.mxu0 0
    %345 = vmatpush.bf16.msra.mxu0 0
    %346 = vmatpush.bf16.msra.mxu0 0
    %347 = vmatpush.bf16.msra.mxu0 0
    %348 = vmatpush.bf16.msra.mxu0 %v247
    %349 = vmatpush.bf16.msra.mxu0 %v239
    %350 = vmatpush.bf16.msra.mxu0 %v231
    %351 = vmatpush.bf16.msra.mxu0 %v223
    %352 = vmatmul.bf16.gmra.mxu0 %v251
    %v353 = vpop.f32.mrf.mxu0
    %v354 = vadd.f32 0.0, %v353
    %v355 = vpop.f32.mrf.mxu0
    %356 = vdwg.mxu0
    %v357 = vld [vmem:[%s5] ss:$8 sm:$0xf]
    %v358 = vld [vmem:[%s5] ss:$8 sm:$0xf0]
    %v359 = vor.u32 %v357, %v358
    %v361 = vperm.slane %v359, 0
    %v362 = vperm.slane %v359, 1
    %v363 = vperm.slane %v359, 2
    %v364 = vperm.slane %v359, 3
    %v365 = vperm.slane %v359, 4
    %v366 = vperm.slane %v359, 5
    %v367 = vperm.slane %v359, 6
    %v368 = vperm.slane %v359, 7
    %v377 = vmul.f32 %v263, %v361
    %v378 = vmul.f32 %v276, %v362
    %v379 = vmul.f32 %v289, %v363
    %v380 = vmul.f32 %v302, %v364
    %v381 = vmul.f32 %v315, %v365
    %v382 = vmul.f32 %v328, %v366
    %v383 = vmul.f32 %v341, %v367
    %v384 = vmul.f32 %v354, %v368
    %s385 = scalar_lea.vmem %s5, 1
    %v386 = vld [vmem:[%s385] ss:$8 sm:$0xf]
    %v387 = vld [vmem:[%s385] ss:$8 sm:$0xf0]
    %v388 = vor.u32 %v386, %v387
    %v390 = vperm.slane %v388, 0
    %v391 = vperm.slane %v388, 1
    %v392 = vperm.slane %v388, 2
    %v393 = vperm.slane %v388, 3
    %v394 = vperm.slane %v388, 4
    %v395 = vperm.slane %v388, 5
    %v396 = vperm.slane %v388, 6
    %v397 = vperm.slane %v388, 7
    %v406 = vadd.f32 %v377, %v390
    %v407 = vadd.f32 %v378, %v391
    %v408 = vadd.f32 %v379, %v392
    %v409 = vadd.f32 %v380, %v393
    %v410 = vadd.f32 %v381, %v394
    %v411 = vadd.f32 %v382, %v395
    %v412 = vadd.f32 %v383, %v396
    %v413 = vadd.f32 %v384, %v397
    %v414 = vmax.f32 %v406, 0.0
    %v415 = vmax.f32 %v407, 0.0
    %v416 = vmax.f32 %v408, 0.0
    %v417 = vmax.f32 %v409, 0.0
    %v418 = vmax.f32 %v410, 0.0
    %v419 = vmax.f32 %v411, 0.0
    %v420 = vmax.f32 %v412, 0.0
    %v421 = vmax.f32 %v413, 0.0
    %s422 = scalar_lea.vmem %s5, 2
    %v423 = vld [vmem:[%s422] ss:$8 sm:$0xf]
    %v424 = vld [vmem:[%s422] ss:$8 sm:$0xf0]
    %v425 = vor.u32 %v423, %v424
    %s426 = scalar_lea.vmem %s5, 3
    %v427 = vld [vmem:[%s426] ss:$8 sm:$0xf]
    %v428 = vld [vmem:[%s426] ss:$8 sm:$0xf0]
    %v429 = vor.u32 %v427, %v428
    %v430 = vrot.slane %v414, 4
    %v431 = vadd.f32 %v414, %v430
    %v432 = vrot.slane %v431, 2
    %v433 = vadd.f32 %v431, %v432
    %v434 = vrot.slane %v433, 1
    %v435 = vadd.f32 %v433, %v434
    %v436 = vrot.slane %v415, 4
    %v437 = vadd.f32 %v415, %v436
    %v438 = vrot.slane %v437, 2
    %v439 = vadd.f32 %v437, %v438
    %v440 = vrot.slane %v439, 1
    %v441 = vadd.f32 %v439, %v440
    %v442 = vrot.slane %v416, 4
    %v443 = vadd.f32 %v416, %v442
    %v444 = vrot.slane %v443, 2
    %v445 = vadd.f32 %v443, %v444
    %v446 = vrot.slane %v445, 1
    %v447 = vadd.f32 %v445, %v446
    %v448 = vrot.slane %v417, 4
    %v449 = vadd.f32 %v417, %v448
    %v450 = vrot.slane %v449, 2
    %v451 = vadd.f32 %v449, %v450
    %v452 = vrot.slane %v451, 1
    %v453 = vadd.f32 %v451, %v452
    %v454 = vrot.slane %v418, 4
    %v455 = vadd.f32 %v418, %v454
    %v456 = vrot.slane %v455, 2
    %v457 = vadd.f32 %v455, %v456
    %v458 = vrot.slane %v457, 1
    %v459 = vadd.f32 %v457, %v458
    %v460 = vrot.slane %v419, 4
    %v461 = vadd.f32 %v419, %v460
    %v462 = vrot.slane %v461, 2
    %v463 = vadd.f32 %v461, %v462
    %v464 = vrot.slane %v463, 1
    %v465 = vadd.f32 %v463, %v464
    %v466 = vrot.slane %v420, 4
    %v467 = vadd.f32 %v420, %v466
    %v468 = vrot.slane %v467, 2
    %v469 = vadd.f32 %v467, %v468
    %v470 = vrot.slane %v469, 1
    %v471 = vadd.f32 %v469, %v470
    %v472 = vrot.slane %v421, 4
    %v473 = vadd.f32 %v421, %v472
    %v474 = vrot.slane %v473, 2
    %v475 = vadd.f32 %v473, %v474
    %v476 = vrot.slane %v475, 1
    %v477 = vadd.f32 %v475, %v476
    %v478 = vrcp.pop 8.0
    %v479 = vmul.f32 8.0, %v478
    %v480 = vsub.f32 1.0, %v479
    %v481 = vmul.f32 %v478, %v480
    %v482 = vadd.f32 %v478, %v481
    %vm483 = vweird.f32 %v478
    %v484 = vsel %vm483, %v478, %v482
    %v485 = vmul.f32 %v435, %v484
    %v486 = vmul.f32 %v441, %v484
    %v487 = vmul.f32 %v447, %v484
    %v488 = vmul.f32 %v453, %v484
    %v489 = vmul.f32 %v459, %v484
    %v490 = vmul.f32 %v465, %v484
    %v491 = vmul.f32 %v471, %v484
    %v492 = vmul.f32 %v477, %v484
    %v493 = vmul.f32 %v414, %v414
    %v494 = vmul.f32 %v415, %v415
    %v495 = vmul.f32 %v416, %v416
    %v496 = vmul.f32 %v417, %v417
    %v497 = vmul.f32 %v418, %v418
    %v498 = vmul.f32 %v419, %v419
    %v499 = vmul.f32 %v420, %v420
    %v500 = vmul.f32 %v421, %v421
    %v501 = vrot.slane %v493, 4
    %v502 = vadd.f32 %v493, %v501
    %v503 = vrot.slane %v502, 2
    %v504 = vadd.f32 %v502, %v503
    %v505 = vrot.slane %v504, 1
    %v506 = vadd.f32 %v504, %v505
    %v507 = vrot.slane %v494, 4
    %v508 = vadd.f32 %v494, %v507
    %v509 = vrot.slane %v508, 2
    %v510 = vadd.f32 %v508, %v509
    %v511 = vrot.slane %v510, 1
    %v512 = vadd.f32 %v510, %v511
    %v513 = vrot.slane %v495, 4
    %v514 = vadd.f32 %v495, %v513
    %v515 = vrot.slane %v514, 2
    %v516 = vadd.f32 %v514, %v515
    %v517 = vrot.slane %v516, 1
    %v518 = vadd.f32 %v516, %v517
    %v519 = vrot.slane %v496, 4
    %v520 = vadd.f32 %v496, %v519
    %v521 = vrot.slane %v520, 2
    %v522 = vadd.f32 %v520, %v521
    %v523 = vrot.slane %v522, 1
    %v524 = vadd.f32 %v522, %v523
    %v525 = vrot.slane %v497, 4
    %v526 = vadd.f32 %v497, %v525
    %v527 = vrot.slane %v526, 2
    %v528 = vadd.f32 %v526, %v527
    %v529 = vrot.slane %v528, 1
    %v530 = vadd.f32 %v528, %v529
    %v531 = vrot.slane %v498, 4
    %v532 = vadd.f32 %v498, %v531
    %v533 = vrot.slane %v532, 2
    %v534 = vadd.f32 %v532, %v533
    %v535 = vrot.slane %v534, 1
    %v536 = vadd.f32 %v534, %v535
    %v537 = vrot.slane %v499, 4
    %v538 = vadd.f32 %v499, %v537
    %v539 = vrot.slane %v538, 2
    %v540 = vadd.f32 %v538, %v539
    %v541 = vrot.slane %v540, 1
    %v542 = vadd.f32 %v540, %v541
    %v543 = vrot.slane %v500, 4
    %v544 = vadd.f32 %v500, %v543
    %v545 = vrot.slane %v544, 2
    %v546 = vadd.f32 %v544, %v545
    %v547 = vrot.slane %v546, 1
    %v548 = vadd.f32 %v546, %v547
    %v549 = vmul.f32 %v506, %v484
    %v550 = vmul.f32 %v512, %v484
    %v551 = vmul.f32 %v518, %v484
    %v552 = vmul.f32 %v524, %v484
    %v553 = vmul.f32 %v530, %v484
    %v554 = vmul.f32 %v536, %v484
    %v555 = vmul.f32 %v542, %v484
    %v556 = vmul.f32 %v548, %v484
    %v557 = vmul.f32 %v485, %v485
    %v558 = vmul.f32 %v486, %v486
    %v559 = vmul.f32 %v487, %v487
    %v560 = vmul.f32 %v488, %v488
    %v561 = vmul.f32 %v489, %v489
    %v562 = vmul.f32 %v490, %v490
    %v563 = vmul.f32 %v491, %v491
    %v564 = vmul.f32 %v492, %v492
    %v565 = vsub.f32 %v549, %v557
    %v566 = vsub.f32 %v550, %v558
    %v567 = vsub.f32 %v551, %v559
    %v568 = vsub.f32 %v552, %v560
    %v569 = vsub.f32 %v553, %v561
    %v570 = vsub.f32 %v554, %v562
    %v571 = vsub.f32 %v555, %v563
    %v572 = vsub.f32 %v556, %v564
    %v573 = vmax.f32 %v565, 0.0
    %v574 = vmax.f32 %v566, 0.0
    %v575 = vmax.f32 %v567, 0.0
    %v576 = vmax.f32 %v568, 0.0
    %v577 = vmax.f32 %v569, 0.0
    %v578 = vmax.f32 %v570, 0.0
    %v579 = vmax.f32 %v571, 0.0
    %v580 = vmax.f32 %v572, 0.0
    %v581 = vadd.f32 %v573, 1e-05
    %v582 = vadd.f32 %v574, 1e-05
    %v583 = vadd.f32 %v575, 1e-05
    %v584 = vadd.f32 %v576, 1e-05
    %v585 = vadd.f32 %v577, 1e-05
    %v586 = vadd.f32 %v578, 1e-05
    %v587 = vadd.f32 %v579, 1e-05
    %v588 = vadd.f32 %v580, 1e-05
    %v589 = vrsqrt.pop %v581
    %v590 = vmul.f32 %v589, %v581
    %v591 = vmul.f32 %v590, %v589
    %v592 = vmul.f32 0.5, %v591
    %v593 = vsub.f32 1.5, %v592
    %v594 = vmul.f32 %v589, %v593
    %vm595 = vweird.f32 %v581
    %vm596 = vweird.f32 %v589
    %vm597 = vmor %vm595, %vm596
    %v598 = vsel %vm597, %v589, %v594
    %v599 = vrsqrt.pop %v582
    %v600 = vmul.f32 %v599, %v582
    %v601 = vmul.f32 %v600, %v599
    %v602 = vmul.f32 0.5, %v601
    %v603 = vsub.f32 1.5, %v602
    %v604 = vmul.f32 %v599, %v603
    %vm605 = vweird.f32 %v582
    %vm606 = vweird.f32 %v599
    %vm607 = vmor %vm605, %vm606
    %v608 = vsel %vm607, %v599, %v604
    %v609 = vrsqrt.pop %v583
    %v610 = vmul.f32 %v609, %v583
    %v611 = vmul.f32 %v610, %v609
    %v612 = vmul.f32 0.5, %v611
    %v613 = vsub.f32 1.5, %v612
    %v614 = vmul.f32 %v609, %v613
    %vm615 = vweird.f32 %v583
    %vm616 = vweird.f32 %v609
    %vm617 = vmor %vm615, %vm616
    %v618 = vsel %vm617, %v609, %v614
    %v619 = vrsqrt.pop %v584
    %v620 = vmul.f32 %v619, %v584
    %v621 = vmul.f32 %v620, %v619
    %v622 = vmul.f32 0.5, %v621
    %v623 = vsub.f32 1.5, %v622
    %v624 = vmul.f32 %v619, %v623
    %vm625 = vweird.f32 %v584
    %vm626 = vweird.f32 %v619
    %vm627 = vmor %vm625, %vm626
    %v628 = vsel %vm627, %v619, %v624
    %v629 = vrsqrt.pop %v585
    %v630 = vmul.f32 %v629, %v585
    %v631 = vmul.f32 %v630, %v629
    %v632 = vmul.f32 0.5, %v631
    %v633 = vsub.f32 1.5, %v632
    %v634 = vmul.f32 %v629, %v633
    %vm635 = vweird.f32 %v585
    %vm636 = vweird.f32 %v629
    %vm637 = vmor %vm635, %vm636
    %v638 = vsel %vm637, %v629, %v634
    %v639 = vrsqrt.pop %v586
    %v640 = vmul.f32 %v639, %v586
    %v641 = vmul.f32 %v640, %v639
    %v642 = vmul.f32 0.5, %v641
    %v643 = vsub.f32 1.5, %v642
    %v644 = vmul.f32 %v639, %v643
    %vm645 = vweird.f32 %v586
    %vm646 = vweird.f32 %v639
    %vm647 = vmor %vm645, %vm646
    %v648 = vsel %vm647, %v639, %v644
    %v649 = vrsqrt.pop %v587
    %v650 = vmul.f32 %v649, %v587
    %v651 = vmul.f32 %v650, %v649
    %v652 = vmul.f32 0.5, %v651
    %v653 = vsub.f32 1.5, %v652
    %v654 = vmul.f32 %v649, %v653
    %vm655 = vweird.f32 %v587
    %vm656 = vweird.f32 %v649
    %vm657 = vmor %vm655, %vm656
    %v658 = vsel %vm657, %v649, %v654
    %v659 = vrsqrt.pop %v588
    %v660 = vmul.f32 %v659, %v588
    %v661 = vmul.f32 %v660, %v659
    %v662 = vmul.f32 0.5, %v661
    %v663 = vsub.f32 1.5, %v662
    %v664 = vmul.f32 %v659, %v663
    %vm665 = vweird.f32 %v588
    %vm666 = vweird.f32 %v659
    %vm667 = vmor %vm665, %vm666
    %v668 = vsel %vm667, %v659, %v664
    %v677 = vrot.slane %v608, 7
    %v678 = vrot.slane %v618, 6
    %v679 = vrot.slane %v628, 5
    %v680 = vrot.slane %v638, 4
    %v681 = vrot.slane %v648, 3
    %v682 = vrot.slane %v658, 2
    %v683 = vrot.slane %v668, 1
    %vm684 = vcmask 1040384
    %v685 = vsel %vm684, %v598, %v677
    %vm686 = vcmask 1042434
    %v687 = vsel %vm686, %v678, %v679
    %vm688 = vcmask 1041408
    %v689 = vsel %vm688, %v685, %v687
    %vm690 = vcmask 1044484
    %v691 = vsel %vm690, %v680, %v681
    %vm692 = vcmask 1046534
    %v693 = vsel %vm692, %v682, %v683
    %vm694 = vcmask 1045508
    %v695 = vsel %vm694, %v691, %v693
    %vm696 = vcmask 1043456
    %v697 = vsel %vm696, %v689, %v695
    %v699 = vmul.f32 %v425, %v697
    %v701 = vperm.slane %v699, 0
    %v702 = vperm.slane %v699, 1
    %v703 = vperm.slane %v699, 2
    %v704 = vperm.slane %v699, 3
    %v705 = vperm.slane %v699, 4
    %v706 = vperm.slane %v699, 5
    %v707 = vperm.slane %v699, 6
    %v708 = vperm.slane %v699, 7
    %v717 = vmul.f32 %v414, %v701
    %v718 = vmul.f32 %v415, %v702
    %v719 = vmul.f32 %v416, %v703
    %v720 = vmul.f32 %v417, %v704
    %v721 = vmul.f32 %v418, %v705
    %v722 = vmul.f32 %v419, %v706
    %v723 = vmul.f32 %v420, %v707
    %v724 = vmul.f32 %v421, %v708
    %v725 = vmul.f32 %v485, %v701
    %v726 = vmul.f32 %v486, %v702
    %v727 = vmul.f32 %v487, %v703
    %v728 = vmul.f32 %v488, %v704
    %v729 = vmul.f32 %v489, %v705
    %v730 = vmul.f32 %v490, %v706
    %v731 = vmul.f32 %v491, %v707
    %v732 = vmul.f32 %v492, %v708
    %v741 = vrot.slane %v726, 7
    %v742 = vrot.slane %v727, 6
    %v743 = vrot.slane %v728, 5
    %v744 = vrot.slane %v729, 4
    %v745 = vrot.slane %v730, 3
    %v746 = vrot.slane %v731, 2
    %v747 = vrot.slane %v732, 1
    %v748 = vsel %vm684, %v725, %v741
    %v749 = vsel %vm686, %v742, %v743
    %v750 = vsel %vm688, %v748, %v749
    %v751 = vsel %vm690, %v744, %v745
    %v752 = vsel %vm692, %v746, %v747
    %v753 = vsel %vm694, %v751, %v752
    %v754 = vsel %vm696, %v750, %v753
    %v756 = vsub.f32 %v429, %v754
    %v758 = vperm.slane %v756, 0
    %v759 = vperm.slane %v756, 1
    %v760 = vperm.slane %v756, 2
    %v761 = vperm.slane %v756, 3
    %v762 = vperm.slane %v756, 4
    %v763 = vperm.slane %v756, 5
    %v764 = vperm.slane %v756, 6
    %v765 = vperm.slane %v756, 7
    %v774 = vadd.f32 %v717, %v758
    %v775 = vadd.f32 %v718, %v759
    %v776 = vadd.f32 %v719, %v760
    %v777 = vadd.f32 %v720, %v761
    %v778 = vadd.f32 %v721, %v762
    %v779 = vadd.f32 %v722, %v763
    %v780 = vadd.f32 %v723, %v764
    %v781 = vadd.f32 %v724, %v765
    %v782 = vld [vmem:[#allocation4] sm:$0xff]
    %v783 = vld [vmem:[#allocation4 + $0x8] sm:$0xff]
    %v784 = vld [vmem:[#allocation4 + $0x10] sm:$0xff]
    %v785 = vld [vmem:[#allocation4 + $0x18] sm:$0xff]
    %v786 = vld [vmem:[#allocation4 + $0x20] sm:$0xff]
    %v787 = vld [vmem:[#allocation4 + $0x28] sm:$0xff]
    %v788 = vld [vmem:[#allocation4 + $0x30] sm:$0xff]
    %v789 = vld [vmem:[#allocation4 + $0x38] sm:$0xff]
    %v790 = vld [vmem:[#allocation4 + $0x40] sm:$0xff]
    %v791 = vld [vmem:[#allocation4 + $0x48] sm:$0xff]
    %v792 = vld [vmem:[#allocation4 + $0x50] sm:$0xff]
    %v793 = vld [vmem:[#allocation4 + $0x58] sm:$0xff]
    %v794 = vld [vmem:[#allocation4 + $0x60] sm:$0xff]
    %v795 = vld [vmem:[#allocation4 + $0x68] sm:$0xff]
    %v796 = vld [vmem:[#allocation4 + $0x70] sm:$0xff]
    %v797 = vld [vmem:[#allocation4 + $0x78] sm:$0xff]
    %v798 = vld [vmem:[#allocation4 + $0x80] sm:$0xff]
    %v799 = vld [vmem:[#allocation4 + $0x88] sm:$0xff]
    %v800 = vld [vmem:[#allocation4 + $0x90] sm:$0xff]
    %v801 = vld [vmem:[#allocation4 + $0x98] sm:$0xff]
    %v802 = vld [vmem:[#allocation4 + $0xa0] sm:$0xff]
    %v803 = vld [vmem:[#allocation4 + $0xa8] sm:$0xff]
    %v804 = vld [vmem:[#allocation4 + $0xb0] sm:$0xff]
    %v805 = vld [vmem:[#allocation4 + $0xb8] sm:$0xff]
    %v806 = vld [vmem:[#allocation4 + $0xc0] sm:$0xff]
    %v807 = vld [vmem:[#allocation4 + $0xc8] sm:$0xff]
    %v808 = vld [vmem:[#allocation4 + $0xd0] sm:$0xff]
    %v809 = vld [vmem:[#allocation4 + $0xd8] sm:$0xff]
    %v810 = vld [vmem:[#allocation4 + $0xe0] sm:$0xff]
    %v811 = vld [vmem:[#allocation4 + $0xe8] sm:$0xff]
    %v812 = vld [vmem:[#allocation4 + $0xf0] sm:$0xff]
    %v813 = vld [vmem:[#allocation4 + $0xf8] sm:$0xff]
    %v814 = vld [vmem:[#allocation4 + $0x100] sm:$0xff]
    %v815 = vld [vmem:[#allocation4 + $0x108] sm:$0xff]
    %v816 = vld [vmem:[#allocation4 + $0x110] sm:$0xff]
    %v817 = vld [vmem:[#allocation4 + $0x118] sm:$0xff]
    %v818 = vld [vmem:[#allocation4 + $0x120] sm:$0xff]
    %v819 = vld [vmem:[#allocation4 + $0x128] sm:$0xff]
    %v820 = vld [vmem:[#allocation4 + $0x130] sm:$0xff]
    %v821 = vld [vmem:[#allocation4 + $0x138] sm:$0xff]
    %v822 = vld [vmem:[#allocation4 + $0x140] sm:$0xff]
    %v823 = vld [vmem:[#allocation4 + $0x148] sm:$0xff]
    %v824 = vld [vmem:[#allocation4 + $0x150] sm:$0xff]
    %v825 = vld [vmem:[#allocation4 + $0x158] sm:$0xff]
    %v826 = vld [vmem:[#allocation4 + $0x160] sm:$0xff]
    %v827 = vld [vmem:[#allocation4 + $0x168] sm:$0xff]
    %v828 = vld [vmem:[#allocation4 + $0x170] sm:$0xff]
    %v829 = vld [vmem:[#allocation4 + $0x178] sm:$0xff]
    %v830 = vld [vmem:[#allocation4 + $0x180] sm:$0xff]
    %v831 = vld [vmem:[#allocation4 + $0x188] sm:$0xff]
    %v832 = vld [vmem:[#allocation4 + $0x190] sm:$0xff]
    %v833 = vld [vmem:[#allocation4 + $0x198] sm:$0xff]
    %v834 = vld [vmem:[#allocation4 + $0x1a0] sm:$0xff]
    %v835 = vld [vmem:[#allocation4 + $0x1a8] sm:$0xff]
    %v836 = vld [vmem:[#allocation4 + $0x1b0] sm:$0xff]
    %v837 = vld [vmem:[#allocation4 + $0x1b8] sm:$0xff]
    %v838 = vld [vmem:[#allocation4 + $0x1c0] sm:$0xff]
    %v839 = vld [vmem:[#allocation4 + $0x1c8] sm:$0xff]
    %v840 = vld [vmem:[#allocation4 + $0x1d0] sm:$0xff]
    %v841 = vld [vmem:[#allocation4 + $0x1d8] sm:$0xff]
    %v842 = vld [vmem:[#allocation4 + $0x1e0] sm:$0xff]
    %v843 = vld [vmem:[#allocation4 + $0x1e8] sm:$0xff]
    %v844 = vld [vmem:[#allocation4 + $0x1f0] sm:$0xff]
    %v845 = vld [vmem:[#allocation4 + $0x1f8] sm:$0xff]
    %v846 = vld [vmem:[#allocation4 + $0x200] sm:$0xff]
    %v847 = vld [vmem:[#allocation4 + $0x208] sm:$0xff]
    %v848 = vld [vmem:[#allocation4 + $0x210] sm:$0xff]
    %v849 = vld [vmem:[#allocation4 + $0x218] sm:$0xff]
    %v850 = vld [vmem:[#allocation4 + $0x220] sm:$0xff]
    %v851 = vld [vmem:[#allocation4 + $0x228] sm:$0xff]
    %v852 = vld [vmem:[#allocation4 + $0x230] sm:$0xff]
    %v853 = vld [vmem:[#allocation4 + $0x238] sm:$0xff]
    %v854 = vld [vmem:[#allocation4 + $0x240] sm:$0xff]
    %v855 = vld [vmem:[#allocation4 + $0x248] sm:$0xff]
    %v856 = vld [vmem:[#allocation4 + $0x250] sm:$0xff]
    %v857 = vld [vmem:[#allocation4 + $0x258] sm:$0xff]
    %v858 = vld [vmem:[#allocation4 + $0x260] sm:$0xff]
    %v859 = vld [vmem:[#allocation4 + $0x268] sm:$0xff]
    %v860 = vld [vmem:[#allocation4 + $0x270] sm:$0xff]
    %v861 = vld [vmem:[#allocation4 + $0x278] sm:$0xff]
    %v862 = vld [vmem:[#allocation4 + $0x280] sm:$0xff]
    %v863 = vld [vmem:[#allocation4 + $0x288] sm:$0xff]
    %v864 = vld [vmem:[#allocation4 + $0x290] sm:$0xff]
    %v865 = vld [vmem:[#allocation4 + $0x298] sm:$0xff]
    %v866 = vld [vmem:[#allocation4 + $0x2a0] sm:$0xff]
    %v867 = vld [vmem:[#allocation4 + $0x2a8] sm:$0xff]
    %v868 = vld [vmem:[#allocation4 + $0x2b0] sm:$0xff]
    %v869 = vld [vmem:[#allocation4 + $0x2b8] sm:$0xff]
    %v870 = vld [vmem:[#allocation4 + $0x2c0] sm:$0xff]
    %v871 = vld [vmem:[#allocation4 + $0x2c8] sm:$0xff]
    %v872 = vld [vmem:[#allocation4 + $0x2d0] sm:$0xff]
    %v873 = vld [vmem:[#allocation4 + $0x2d8] sm:$0xff]
    %v874 = vld [vmem:[#allocation4 + $0x2e0] sm:$0xff]
    %v875 = vld [vmem:[#allocation4 + $0x2e8] sm:$0xff]
    %v876 = vld [vmem:[#allocation4 + $0x2f0] sm:$0xff]
    %v877 = vld [vmem:[#allocation4 + $0x2f8] sm:$0xff]
    %v878 = vld [vmem:[#allocation4 + $0x300] sm:$0xff]
    %v879 = vld [vmem:[#allocation4 + $0x308] sm:$0xff]
    %v880 = vld [vmem:[#allocation4 + $0x310] sm:$0xff]
    %v881 = vld [vmem:[#allocation4 + $0x318] sm:$0xff]
    %v882 = vld [vmem:[#allocation4 + $0x320] sm:$0xff]
    %v883 = vld [vmem:[#allocation4 + $0x328] sm:$0xff]
    %v884 = vld [vmem:[#allocation4 + $0x330] sm:$0xff]
    %v885 = vld [vmem:[#allocation4 + $0x338] sm:$0xff]
    %v886 = vld [vmem:[#allocation4 + $0x340] sm:$0xff]
    %v887 = vld [vmem:[#allocation4 + $0x348] sm:$0xff]
    %v888 = vld [vmem:[#allocation4 + $0x350] sm:$0xff]
    %v889 = vld [vmem:[#allocation4 + $0x358] sm:$0xff]
    %v890 = vld [vmem:[#allocation4 + $0x360] sm:$0xff]
    %v891 = vld [vmem:[#allocation4 + $0x368] sm:$0xff]
    %v892 = vld [vmem:[#allocation4 + $0x370] sm:$0xff]
    %v893 = vld [vmem:[#allocation4 + $0x378] sm:$0xff]
    %v894 = vld [vmem:[#allocation4 + $0x380] sm:$0xff]
    %v895 = vld [vmem:[#allocation4 + $0x388] sm:$0xff]
    %v896 = vld [vmem:[#allocation4 + $0x390] sm:$0xff]
    %v897 = vld [vmem:[#allocation4 + $0x398] sm:$0xff]
    %v898 = vld [vmem:[#allocation4 + $0x3a0] sm:$0xff]
    %v899 = vld [vmem:[#allocation4 + $0x3a8] sm:$0xff]
    %v900 = vld [vmem:[#allocation4 + $0x3b0] sm:$0xff]
    %v901 = vld [vmem:[#allocation4 + $0x3b8] sm:$0xff]
    %v902 = vld [vmem:[#allocation4 + $0x3c0] sm:$0xff]
    %v903 = vld [vmem:[#allocation4 + $0x3c8] sm:$0xff]
    %v904 = vld [vmem:[#allocation4 + $0x3d0] sm:$0xff]
    %v905 = vld [vmem:[#allocation4 + $0x3d8] sm:$0xff]
    %v906 = vld [vmem:[#allocation4 + $0x3e0] sm:$0xff]
    %v907 = vld [vmem:[#allocation4 + $0x3e8] sm:$0xff]
    %v908 = vld [vmem:[#allocation4 + $0x3f0] sm:$0xff]
    %v909 = vld [vmem:[#allocation4 + $0x3f8] sm:$0xff]
    %v910 = vunpack.c.0.s8 %v782
    %v911 = vunpack.c.0.s8 %v783
    %v912 = vunpack.c.0.s8 %v784
    %v913 = vunpack.c.0.s8 %v785
    %v914 = vunpack.c.1.s8 %v782
    %v915 = vunpack.c.1.s8 %v783
    %v916 = vunpack.c.1.s8 %v784
    %v917 = vunpack.c.1.s8 %v785
    %v918 = vunpack.c.2.s8 %v782
    %v919 = vunpack.c.2.s8 %v783
    %v920 = vunpack.c.2.s8 %v784
    %v921 = vunpack.c.2.s8 %v785
    %v922 = vunpack.c.3.s8 %v782
    %v923 = vunpack.c.3.s8 %v783
    %v924 = vunpack.c.3.s8 %v784
    %v925 = vunpack.c.3.s8 %v785
    %v926 = vunpack.c.0.s8 %v786
    %v927 = vunpack.c.0.s8 %v787
    %v928 = vunpack.c.0.s8 %v788
    %v929 = vunpack.c.0.s8 %v789
    %v930 = vunpack.c.1.s8 %v786
    %v931 = vunpack.c.1.s8 %v787
    %v932 = vunpack.c.1.s8 %v788
    %v933 = vunpack.c.1.s8 %v789
    %v934 = vunpack.c.2.s8 %v786
    %v935 = vunpack.c.2.s8 %v787
    %v936 = vunpack.c.2.s8 %v788
    %v937 = vunpack.c.2.s8 %v789
    %v938 = vunpack.c.3.s8 %v786
    %v939 = vunpack.c.3.s8 %v787
    %v940 = vunpack.c.3.s8 %v788
    %v941 = vunpack.c.3.s8 %v789
    %v942 = vunpack.c.0.s8 %v790
    %v943 = vunpack.c.0.s8 %v791
    %v944 = vunpack.c.0.s8 %v792
    %v945 = vunpack.c.0.s8 %v793
    %v946 = vunpack.c.1.s8 %v790
    %v947 = vunpack.c.1.s8 %v791
    %v948 = vunpack.c.1.s8 %v792
    %v949 = vunpack.c.1.s8 %v793
    %v950 = vunpack.c.2.s8 %v790
    %v951 = vunpack.c.2.s8 %v791
    %v952 = vunpack.c.2.s8 %v792
    %v953 = vunpack.c.2.s8 %v793
    %v954 = vunpack.c.3.s8 %v790
    %v955 = vunpack.c.3.s8 %v791
    %v956 = vunpack.c.3.s8 %v792
    %v957 = vunpack.c.3.s8 %v793
    %v958 = vunpack.c.0.s8 %v794
    %v959 = vunpack.c.0.s8 %v795
    %v960 = vunpack.c.0.s8 %v796
    %v961 = vunpack.c.0.s8 %v797
    %v962 = vunpack.c.1.s8 %v794
    %v963 = vunpack.c.1.s8 %v795
    %v964 = vunpack.c.1.s8 %v796
    %v965 = vunpack.c.1.s8 %v797
    %v966 = vunpack.c.2.s8 %v794
    %v967 = vunpack.c.2.s8 %v795
    %v968 = vunpack.c.2.s8 %v796
    %v969 = vunpack.c.2.s8 %v797
    %v970 = vunpack.c.3.s8 %v794
    %v971 = vunpack.c.3.s8 %v795
    %v972 = vunpack.c.3.s8 %v796
    %v973 = vunpack.c.3.s8 %v797
    %v974 = vunpack.c.0.s8 %v798
    %v975 = vunpack.c.0.s8 %v799
    %v976 = vunpack.c.0.s8 %v800
    %v977 = vunpack.c.0.s8 %v801
    %v978 = vunpack.c.1.s8 %v798
    %v979 = vunpack.c.1.s8 %v799
    %v980 = vunpack.c.1.s8 %v800
    %v981 = vunpack.c.1.s8 %v801
    %v982 = vunpack.c.2.s8 %v798
    %v983 = vunpack.c.2.s8 %v799
    %v984 = vunpack.c.2.s8 %v800
    %v985 = vunpack.c.2.s8 %v801
    %v986 = vunpack.c.3.s8 %v798
    %v987 = vunpack.c.3.s8 %v799
    %v988 = vunpack.c.3.s8 %v800
    %v989 = vunpack.c.3.s8 %v801
    %v990 = vunpack.c.0.s8 %v802
    %v991 = vunpack.c.0.s8 %v803
    %v992 = vunpack.c.0.s8 %v804
    %v993 = vunpack.c.0.s8 %v805
    %v994 = vunpack.c.1.s8 %v802
    %v995 = vunpack.c.1.s8 %v803
    %v996 = vunpack.c.1.s8 %v804
    %v997 = vunpack.c.1.s8 %v805
    %v998 = vunpack.c.2.s8 %v802
    %v999 = vunpack.c.2.s8 %v803
    %v1000 = vunpack.c.2.s8 %v804
    %v1001 = vunpack.c.2.s8 %v805
    %v1002 = vunpack.c.3.s8 %v802
    %v1003 = vunpack.c.3.s8 %v803
    %v1004 = vunpack.c.3.s8 %v804
    %v1005 = vunpack.c.3.s8 %v805
    %v1006 = vunpack.c.0.s8 %v806
    %v1007 = vunpack.c.0.s8 %v807
    %v1008 = vunpack.c.0.s8 %v808
    %v1009 = vunpack.c.0.s8 %v809
    %v1010 = vunpack.c.1.s8 %v806
    %v1011 = vunpack.c.1.s8 %v807
    %v1012 = vunpack.c.1.s8 %v808
    %v1013 = vunpack.c.1.s8 %v809
    %v1014 = vunpack.c.2.s8 %v806
    %v1015 = vunpack.c.2.s8 %v807
    %v1016 = vunpack.c.2.s8 %v808
    %v1017 = vunpack.c.2.s8 %v809
    %v1018 = vunpack.c.3.s8 %v806
    %v1019 = vunpack.c.3.s8 %v807
    %v1020 = vunpack.c.3.s8 %v808
    %v1021 = vunpack.c.3.s8 %v809
    %v1022 = vunpack.c.0.s8 %v810
    %v1023 = vunpack.c.0.s8 %v811
    %v1024 = vunpack.c.0.s8 %v812
    %v1025 = vunpack.c.0.s8 %v813
    %v1026 = vunpack.c.1.s8 %v810
    %v1027 = vunpack.c.1.s8 %v811
    %v1028 = vunpack.c.1.s8 %v812
    %v1029 = vunpack.c.1.s8 %v813
    %v1030 = vunpack.c.2.s8 %v810
    %v1031 = vunpack.c.2.s8 %v811
    %v1032 = vunpack.c.2.s8 %v812
    %v1033 = vunpack.c.2.s8 %v813
    %v1034 = vunpack.c.3.s8 %v810
    %v1035 = vunpack.c.3.s8 %v811
    %v1036 = vunpack.c.3.s8 %v812
    %v1037 = vunpack.c.3.s8 %v813
    %v1038 = vunpack.c.0.s8 %v814
    %v1039 = vunpack.c.0.s8 %v815
    %v1040 = vunpack.c.0.s8 %v816
    %v1041 = vunpack.c.0.s8 %v817
    %v1042 = vunpack.c.1.s8 %v814
    %v1043 = vunpack.c.1.s8 %v815
    %v1044 = vunpack.c.1.s8 %v816
    %v1045 = vunpack.c.1.s8 %v817
    %v1046 = vunpack.c.2.s8 %v814
    %v1047 = vunpack.c.2.s8 %v815
    %v1048 = vunpack.c.2.s8 %v816
    %v1049 = vunpack.c.2.s8 %v817
    %v1050 = vunpack.c.3.s8 %v814
    %v1051 = vunpack.c.3.s8 %v815
    %v1052 = vunpack.c.3.s8 %v816
    %v1053 = vunpack.c.3.s8 %v817
    %v1054 = vunpack.c.0.s8 %v818
    %v1055 = vunpack.c.0.s8 %v819
    %v1056 = vunpack.c.0.s8 %v820
    %v1057 = vunpack.c.0.s8 %v821
    %v1058 = vunpack.c.1.s8 %v818
    %v1059 = vunpack.c.1.s8 %v819
    %v1060 = vunpack.c.1.s8 %v820
    %v1061 = vunpack.c.1.s8 %v821
    %v1062 = vunpack.c.2.s8 %v818
    %v1063 = vunpack.c.2.s8 %v819
    %v1064 = vunpack.c.2.s8 %v820
    %v1065 = vunpack.c.2.s8 %v821
    %v1066 = vunpack.c.3.s8 %v818
    %v1067 = vunpack.c.3.s8 %v819
    %v1068 = vunpack.c.3.s8 %v820
    %v1069 = vunpack.c.3.s8 %v821
    %v1070 = vunpack.c.0.s8 %v822
    %v1071 = vunpack.c.0.s8 %v823
    %v1072 = vunpack.c.0.s8 %v824
    %v1073 = vunpack.c.0.s8 %v825
    %v1074 = vunpack.c.1.s8 %v822
    %v1075 = vunpack.c.1.s8 %v823
    %v1076 = vunpack.c.1.s8 %v824
    %v1077 = vunpack.c.1.s8 %v825
    %v1078 = vunpack.c.2.s8 %v822
    %v1079 = vunpack.c.2.s8 %v823
    %v1080 = vunpack.c.2.s8 %v824
    %v1081 = vunpack.c.2.s8 %v825
    %v1082 = vunpack.c.3.s8 %v822
    %v1083 = vunpack.c.3.s8 %v823
    %v1084 = vunpack.c.3.s8 %v824
    %v1085 = vunpack.c.3.s8 %v825
    %v1086 = vunpack.c.0.s8 %v826
    %v1087 = vunpack.c.0.s8 %v827
    %v1088 = vunpack.c.0.s8 %v828
    %v1089 = vunpack.c.0.s8 %v829
    %v1090 = vunpack.c.1.s8 %v826
    %v1091 = vunpack.c.1.s8 %v827
    %v1092 = vunpack.c.1.s8 %v828
    %v1093 = vunpack.c.1.s8 %v829
    %v1094 = vunpack.c.2.s8 %v826
    %v1095 = vunpack.c.2.s8 %v827
    %v1096 = vunpack.c.2.s8 %v828
    %v1097 = vunpack.c.2.s8 %v829
    %v1098 = vunpack.c.3.s8 %v826
    %v1099 = vunpack.c.3.s8 %v827
    %v1100 = vunpack.c.3.s8 %v828
    %v1101 = vunpack.c.3.s8 %v829
    %v1102 = vunpack.c.0.s8 %v830
    %v1103 = vunpack.c.0.s8 %v831
    %v1104 = vunpack.c.0.s8 %v832
    %v1105 = vunpack.c.0.s8 %v833
    %v1106 = vunpack.c.1.s8 %v830
    %v1107 = vunpack.c.1.s8 %v831
    %v1108 = vunpack.c.1.s8 %v832
    %v1109 = vunpack.c.1.s8 %v833
    %v1110 = vunpack.c.2.s8 %v830
    %v1111 = vunpack.c.2.s8 %v831
    %v1112 = vunpack.c.2.s8 %v832
    %v1113 = vunpack.c.2.s8 %v833
    %v1114 = vunpack.c.3.s8 %v830
    %v1115 = vunpack.c.3.s8 %v831
    %v1116 = vunpack.c.3.s8 %v832
    %v1117 = vunpack.c.3.s8 %v833
    %v1118 = vunpack.c.0.s8 %v834
    %v1119 = vunpack.c.0.s8 %v835
    %v1120 = vunpack.c.0.s8 %v836
    %v1121 = vunpack.c.0.s8 %v837
    %v1122 = vunpack.c.1.s8 %v834
    %v1123 = vunpack.c.1.s8 %v835
    %v1124 = vunpack.c.1.s8 %v836
    %v1125 = vunpack.c.1.s8 %v837
    %v1126 = vunpack.c.2.s8 %v834
    %v1127 = vunpack.c.2.s8 %v835
    %v1128 = vunpack.c.2.s8 %v836
    %v1129 = vunpack.c.2.s8 %v837
    %v1130 = vunpack.c.3.s8 %v834
    %v1131 = vunpack.c.3.s8 %v835
    %v1132 = vunpack.c.3.s8 %v836
    %v1133 = vunpack.c.3.s8 %v837
    %v1134 = vunpack.c.0.s8 %v838
    %v1135 = vunpack.c.0.s8 %v839
    %v1136 = vunpack.c.0.s8 %v840
    %v1137 = vunpack.c.0.s8 %v841
    %v1138 = vunpack.c.1.s8 %v838
    %v1139 = vunpack.c.1.s8 %v839
    %v1140 = vunpack.c.1.s8 %v840
    %v1141 = vunpack.c.1.s8 %v841
    %v1142 = vunpack.c.2.s8 %v838
    %v1143 = vunpack.c.2.s8 %v839
    %v1144 = vunpack.c.2.s8 %v840
    %v1145 = vunpack.c.2.s8 %v841
    %v1146 = vunpack.c.3.s8 %v838
    %v1147 = vunpack.c.3.s8 %v839
    %v1148 = vunpack.c.3.s8 %v840
    %v1149 = vunpack.c.3.s8 %v841
    %v1150 = vunpack.c.0.s8 %v842
    %v1151 = vunpack.c.0.s8 %v843
    %v1152 = vunpack.c.0.s8 %v844
    %v1153 = vunpack.c.0.s8 %v845
    %v1154 = vunpack.c.1.s8 %v842
    %v1155 = vunpack.c.1.s8 %v843
    %v1156 = vunpack.c.1.s8 %v844
    %v1157 = vunpack.c.1.s8 %v845
    %v1158 = vunpack.c.2.s8 %v842
    %v1159 = vunpack.c.2.s8 %v843
    %v1160 = vunpack.c.2.s8 %v844
    %v1161 = vunpack.c.2.s8 %v845
    %v1162 = vunpack.c.3.s8 %v842
    %v1163 = vunpack.c.3.s8 %v843
    %v1164 = vunpack.c.3.s8 %v844
    %v1165 = vunpack.c.3.s8 %v845
    %v1166 = vunpack.c.0.s8 %v846
    %v1167 = vunpack.c.0.s8 %v847
    %v1168 = vunpack.c.0.s8 %v848
    %v1169 = vunpack.c.0.s8 %v849
    %v1170 = vunpack.c.1.s8 %v846
    %v1171 = vunpack.c.1.s8 %v847
    %v1172 = vunpack.c.1.s8 %v848
    %v1173 = vunpack.c.1.s8 %v849
    %v1174 = vunpack.c.2.s8 %v846
    %v1175 = vunpack.c.2.s8 %v847
    %v1176 = vunpack.c.2.s8 %v848
    %v1177 = vunpack.c.2.s8 %v849
    %v1178 = vunpack.c.3.s8 %v846
    %v1179 = vunpack.c.3.s8 %v847
    %v1180 = vunpack.c.3.s8 %v848
    %v1181 = vunpack.c.3.s8 %v849
    %v1182 = vunpack.c.0.s8 %v850
    %v1183 = vunpack.c.0.s8 %v851
    %v1184 = vunpack.c.0.s8 %v852
    %v1185 = vunpack.c.0.s8 %v853
    %v1186 = vunpack.c.1.s8 %v850
    %v1187 = vunpack.c.1.s8 %v851
    %v1188 = vunpack.c.1.s8 %v852
    %v1189 = vunpack.c.1.s8 %v853
    %v1190 = vunpack.c.2.s8 %v850
    %v1191 = vunpack.c.2.s8 %v851
    %v1192 = vunpack.c.2.s8 %v852
    %v1193 = vunpack.c.2.s8 %v853
    %v1194 = vunpack.c.3.s8 %v850
    %v1195 = vunpack.c.3.s8 %v851
    %v1196 = vunpack.c.3.s8 %v852
    %v1197 = vunpack.c.3.s8 %v853
    %v1198 = vunpack.c.0.s8 %v854
    %v1199 = vunpack.c.0.s8 %v855
    %v1200 = vunpack.c.0.s8 %v856
    %v1201 = vunpack.c.0.s8 %v857
    %v1202 = vunpack.c.1.s8 %v854
    %v1203 = vunpack.c.1.s8 %v855
    %v1204 = vunpack.c.1.s8 %v856
    %v1205 = vunpack.c.1.s8 %v857
    %v1206 = vunpack.c.2.s8 %v854
    %v1207 = vunpack.c.2.s8 %v855
    %v1208 = vunpack.c.2.s8 %v856
    %v1209 = vunpack.c.2.s8 %v857
    %v1210 = vunpack.c.3.s8 %v854
    %v1211 = vunpack.c.3.s8 %v855
    %v1212 = vunpack.c.3.s8 %v856
    %v1213 = vunpack.c.3.s8 %v857
    %v1214 = vunpack.c.0.s8 %v858
    %v1215 = vunpack.c.0.s8 %v859
    %v1216 = vunpack.c.0.s8 %v860
    %v1217 = vunpack.c.0.s8 %v861
    %v1218 = vunpack.c.1.s8 %v858
    %v1219 = vunpack.c.1.s8 %v859
    %v1220 = vunpack.c.1.s8 %v860
    %v1221 = vunpack.c.1.s8 %v861
    %v1222 = vunpack.c.2.s8 %v858
    %v1223 = vunpack.c.2.s8 %v859
    %v1224 = vunpack.c.2.s8 %v860
    %v1225 = vunpack.c.2.s8 %v861
    %v1226 = vunpack.c.3.s8 %v858
    %v1227 = vunpack.c.3.s8 %v859
    %v1228 = vunpack.c.3.s8 %v860
    %v1229 = vunpack.c.3.s8 %v861
    %v1230 = vunpack.c.0.s8 %v862
    %v1231 = vunpack.c.0.s8 %v863
    %v1232 = vunpack.c.0.s8 %v864
    %v1233 = vunpack.c.0.s8 %v865
    %v1234 = vunpack.c.1.s8 %v862
    %v1235 = vunpack.c.1.s8 %v863
    %v1236 = vunpack.c.1.s8 %v864
    %v1237 = vunpack.c.1.s8 %v865
    %v1238 = vunpack.c.2.s8 %v862
    %v1239 = vunpack.c.2.s8 %v863
    %v1240 = vunpack.c.2.s8 %v864
    %v1241 = vunpack.c.2.s8 %v865
    %v1242 = vunpack.c.3.s8 %v862
    %v1243 = vunpack.c.3.s8 %v863
    %v1244 = vunpack.c.3.s8 %v864
    %v1245 = vunpack.c.3.s8 %v865
    %v1246 = vunpack.c.0.s8 %v866
    %v1247 = vunpack.c.0.s8 %v867
    %v1248 = vunpack.c.0.s8 %v868
    %v1249 = vunpack.c.0.s8 %v869
    %v1250 = vunpack.c.1.s8 %v866
    %v1251 = vunpack.c.1.s8 %v867
    %v1252 = vunpack.c.1.s8 %v868
    %v1253 = vunpack.c.1.s8 %v869
    %v1254 = vunpack.c.2.s8 %v866
    %v1255 = vunpack.c.2.s8 %v867
    %v1256 = vunpack.c.2.s8 %v868
    %v1257 = vunpack.c.2.s8 %v869
    %v1258 = vunpack.c.3.s8 %v866
    %v1259 = vunpack.c.3.s8 %v867
    %v1260 = vunpack.c.3.s8 %v868
    %v1261 = vunpack.c.3.s8 %v869
    %v1262 = vunpack.c.0.s8 %v870
    %v1263 = vunpack.c.0.s8 %v871
    %v1264 = vunpack.c.0.s8 %v872
    %v1265 = vunpack.c.0.s8 %v873
    %v1266 = vunpack.c.1.s8 %v870
    %v1267 = vunpack.c.1.s8 %v871
    %v1268 = vunpack.c.1.s8 %v872
    %v1269 = vunpack.c.1.s8 %v873
    %v1270 = vunpack.c.2.s8 %v870
    %v1271 = vunpack.c.2.s8 %v871
    %v1272 = vunpack.c.2.s8 %v872
    %v1273 = vunpack.c.2.s8 %v873
    %v1274 = vunpack.c.3.s8 %v870
    %v1275 = vunpack.c.3.s8 %v871
    %v1276 = vunpack.c.3.s8 %v872
    %v1277 = vunpack.c.3.s8 %v873
    %v1278 = vunpack.c.0.s8 %v874
    %v1279 = vunpack.c.0.s8 %v875
    %v1280 = vunpack.c.0.s8 %v876
    %v1281 = vunpack.c.0.s8 %v877
    %v1282 = vunpack.c.1.s8 %v874
    %v1283 = vunpack.c.1.s8 %v875
    %v1284 = vunpack.c.1.s8 %v876
    %v1285 = vunpack.c.1.s8 %v877
    %v1286 = vunpack.c.2.s8 %v874
    %v1287 = vunpack.c.2.s8 %v875
    %v1288 = vunpack.c.2.s8 %v876
    %v1289 = vunpack.c.2.s8 %v877
    %v1290 = vunpack.c.3.s8 %v874
    %v1291 = vunpack.c.3.s8 %v875
    %v1292 = vunpack.c.3.s8 %v876
    %v1293 = vunpack.c.3.s8 %v877
    %v1294 = vunpack.c.0.s8 %v878
    %v1295 = vunpack.c.0.s8 %v879
    %v1296 = vunpack.c.0.s8 %v880
    %v1297 = vunpack.c.0.s8 %v881
    %v1298 = vunpack.c.1.s8 %v878
    %v1299 = vunpack.c.1.s8 %v879
    %v1300 = vunpack.c.1.s8 %v880
    %v1301 = vunpack.c.1.s8 %v881
    %v1302 = vunpack.c.2.s8 %v878
    %v1303 = vunpack.c.2.s8 %v879
    %v1304 = vunpack.c.2.s8 %v880
    %v1305 = vunpack.c.2.s8 %v881
    %v1306 = vunpack.c.3.s8 %v878
    %v1307 = vunpack.c.3.s8 %v879
    %v1308 = vunpack.c.3.s8 %v880
    %v1309 = vunpack.c.3.s8 %v881
    %v1310 = vunpack.c.0.s8 %v882
    %v1311 = vunpack.c.0.s8 %v883
    %v1312 = vunpack.c.0.s8 %v884
    %v1313 = vunpack.c.0.s8 %v885
    %v1314 = vunpack.c.1.s8 %v882
    %v1315 = vunpack.c.1.s8 %v883
    %v1316 = vunpack.c.1.s8 %v884
    %v1317 = vunpack.c.1.s8 %v885
    %v1318 = vunpack.c.2.s8 %v882
    %v1319 = vunpack.c.2.s8 %v883
    %v1320 = vunpack.c.2.s8 %v884
    %v1321 = vunpack.c.2.s8 %v885
    %v1322 = vunpack.c.3.s8 %v882
    %v1323 = vunpack.c.3.s8 %v883
    %v1324 = vunpack.c.3.s8 %v884
    %v1325 = vunpack.c.3.s8 %v885
    %v1326 = vunpack.c.0.s8 %v886
    %v1327 = vunpack.c.0.s8 %v887
    %v1328 = vunpack.c.0.s8 %v888
    %v1329 = vunpack.c.0.s8 %v889
    %v1330 = vunpack.c.1.s8 %v886
    %v1331 = vunpack.c.1.s8 %v887
    %v1332 = vunpack.c.1.s8 %v888
    %v1333 = vunpack.c.1.s8 %v889
    %v1334 = vunpack.c.2.s8 %v886
    %v1335 = vunpack.c.2.s8 %v887
    %v1336 = vunpack.c.2.s8 %v888
    %v1337 = vunpack.c.2.s8 %v889
    %v1338 = vunpack.c.3.s8 %v886
    %v1339 = vunpack.c.3.s8 %v887
    %v1340 = vunpack.c.3.s8 %v888
    %v1341 = vunpack.c.3.s8 %v889
    %v1342 = vunpack.c.0.s8 %v890
    %v1343 = vunpack.c.0.s8 %v891
    %v1344 = vunpack.c.0.s8 %v892
    %v1345 = vunpack.c.0.s8 %v893
    %v1346 = vunpack.c.1.s8 %v890
    %v1347 = vunpack.c.1.s8 %v891
    %v1348 = vunpack.c.1.s8 %v892
    %v1349 = vunpack.c.1.s8 %v893
    %v1350 = vunpack.c.2.s8 %v890
    %v1351 = vunpack.c.2.s8 %v891
    %v1352 = vunpack.c.2.s8 %v892
    %v1353 = vunpack.c.2.s8 %v893
    %v1354 = vunpack.c.3.s8 %v890
    %v1355 = vunpack.c.3.s8 %v891
    %v1356 = vunpack.c.3.s8 %v892
    %v1357 = vunpack.c.3.s8 %v893
    %v1358 = vunpack.c.0.s8 %v894
    %v1359 = vunpack.c.0.s8 %v895
    %v1360 = vunpack.c.0.s8 %v896
    %v1361 = vunpack.c.0.s8 %v897
    %v1362 = vunpack.c.1.s8 %v894
    %v1363 = vunpack.c.1.s8 %v895
    %v1364 = vunpack.c.1.s8 %v896
    %v1365 = vunpack.c.1.s8 %v897
    %v1366 = vunpack.c.2.s8 %v894
    %v1367 = vunpack.c.2.s8 %v895
    %v1368 = vunpack.c.2.s8 %v896
    %v1369 = vunpack.c.2.s8 %v897
    %v1370 = vunpack.c.3.s8 %v894
    %v1371 = vunpack.c.3.s8 %v895
    %v1372 = vunpack.c.3.s8 %v896
    %v1373 = vunpack.c.3.s8 %v897
    %v1374 = vunpack.c.0.s8 %v898
    %v1375 = vunpack.c.0.s8 %v899
    %v1376 = vunpack.c.0.s8 %v900
    %v1377 = vunpack.c.0.s8 %v901
    %v1378 = vunpack.c.1.s8 %v898
    %v1379 = vunpack.c.1.s8 %v899
    %v1380 = vunpack.c.1.s8 %v900
    %v1381 = vunpack.c.1.s8 %v901
    %v1382 = vunpack.c.2.s8 %v898
    %v1383 = vunpack.c.2.s8 %v899
    %v1384 = vunpack.c.2.s8 %v900
    %v1385 = vunpack.c.2.s8 %v901
    %v1386 = vunpack.c.3.s8 %v898
    %v1387 = vunpack.c.3.s8 %v899
    %v1388 = vunpack.c.3.s8 %v900
    %v1389 = vunpack.c.3.s8 %v901
    %v1390 = vunpack.c.0.s8 %v902
    %v1391 = vunpack.c.0.s8 %v903
    %v1392 = vunpack.c.0.s8 %v904
    %v1393 = vunpack.c.0.s8 %v905
    %v1394 = vunpack.c.1.s8 %v902
    %v1395 = vunpack.c.1.s8 %v903
    %v1396 = vunpack.c.1.s8 %v904
    %v1397 = vunpack.c.1.s8 %v905
    %v1398 = vunpack.c.2.s8 %v902
    %v1399 = vunpack.c.2.s8 %v903
    %v1400 = vunpack.c.2.s8 %v904
    %v1401 = vunpack.c.2.s8 %v905
    %v1402 = vunpack.c.3.s8 %v902
    %v1403 = vunpack.c.3.s8 %v903
    %v1404 = vunpack.c.3.s8 %v904
    %v1405 = vunpack.c.3.s8 %v905
    %v1406 = vunpack.c.0.s8 %v906
    %v1407 = vunpack.c.0.s8 %v907
    %v1408 = vunpack.c.0.s8 %v908
    %v1409 = vunpack.c.0.s8 %v909
    %v1410 = vunpack.c.1.s8 %v906
    %v1411 = vunpack.c.1.s8 %v907
    %v1412 = vunpack.c.1.s8 %v908
    %v1413 = vunpack.c.1.s8 %v909
    %v1414 = vunpack.c.2.s8 %v906
    %v1415 = vunpack.c.2.s8 %v907
    %v1416 = vunpack.c.2.s8 %v908
    %v1417 = vunpack.c.2.s8 %v909
    %v1418 = vunpack.c.3.s8 %v906
    %v1419 = vunpack.c.3.s8 %v907
    %v1420 = vunpack.c.3.s8 %v908
    %v1421 = vunpack.c.3.s8 %v909
    %v1422 = vcvt.s32.f32 %v910
    %v1423 = vcvt.s32.f32 %v911
    %v1424 = vcvt.s32.f32 %v912
    %v1425 = vcvt.s32.f32 %v913
    %v1426 = vcvt.s32.f32 %v914
    %v1427 = vcvt.s32.f32 %v915
    %v1428 = vcvt.s32.f32 %v916
    %v1429 = vcvt.s32.f32 %v917
    %v1430 = vcvt.s32.f32 %v918
    %v1431 = vcvt.s32.f32 %v919
    %v1432 = vcvt.s32.f32 %v920
    %v1433 = vcvt.s32.f32 %v921
    %v1434 = vcvt.s32.f32 %v922
    %v1435 = vcvt.s32.f32 %v923
    %v1436 = vcvt.s32.f32 %v924
    %v1437 = vcvt.s32.f32 %v925
    %v1438 = vcvt.s32.f32 %v926
    %v1439 = vcvt.s32.f32 %v927
    %v1440 = vcvt.s32.f32 %v928
    %v1441 = vcvt.s32.f32 %v929
    %v1442 = vcvt.s32.f32 %v930
    %v1443 = vcvt.s32.f32 %v931
    %v1444 = vcvt.s32.f32 %v932
    %v1445 = vcvt.s32.f32 %v933
    %v1446 = vcvt.s32.f32 %v934
    %v1447 = vcvt.s32.f32 %v935
    %v1448 = vcvt.s32.f32 %v936
    %v1449 = vcvt.s32.f32 %v937
    %v1450 = vcvt.s32.f32 %v938
    %v1451 = vcvt.s32.f32 %v939
    %v1452 = vcvt.s32.f32 %v940
    %v1453 = vcvt.s32.f32 %v941
    %v1454 = vcvt.s32.f32 %v942
    %v1455 = vcvt.s32.f32 %v943
    %v1456 = vcvt.s32.f32 %v944
    %v1457 = vcvt.s32.f32 %v945
    %v1458 = vcvt.s32.f32 %v946
    %v1459 = vcvt.s32.f32 %v947
    %v1460 = vcvt.s32.f32 %v948
    %v1461 = vcvt.s32.f32 %v949
    %v1462 = vcvt.s32.f32 %v950
    %v1463 = vcvt.s32.f32 %v951
    %v1464 = vcvt.s32.f32 %v952
    %v1465 = vcvt.s32.f32 %v953
    %v1466 = vcvt.s32.f32 %v954
    %v1467 = vcvt.s32.f32 %v955
    %v1468 = vcvt.s32.f32 %v956
    %v1469 = vcvt.s32.f32 %v957
    %v1470 = vcvt.s32.f32 %v958
    %v1471 = vcvt.s32.f32 %v959
    %v1472 = vcvt.s32.f32 %v960
    %v1473 = vcvt.s32.f32 %v961
    %v1474 = vcvt.s32.f32 %v962
    %v1475 = vcvt.s32.f32 %v963
    %v1476 = vcvt.s32.f32 %v964
    %v1477 = vcvt.s32.f32 %v965
    %v1478 = vcvt.s32.f32 %v966
    %v1479 = vcvt.s32.f32 %v967
    %v1480 = vcvt.s32.f32 %v968
    %v1481 = vcvt.s32.f32 %v969
    %v1482 = vcvt.s32.f32 %v970
    %v1483 = vcvt.s32.f32 %v971
    %v1484 = vcvt.s32.f32 %v972
    %v1485 = vcvt.s32.f32 %v973
    %v1486 = vcvt.s32.f32 %v974
    %v1487 = vcvt.s32.f32 %v975
    %v1488 = vcvt.s32.f32 %v976
    %v1489 = vcvt.s32.f32 %v977
    %v1490 = vcvt.s32.f32 %v978
    %v1491 = vcvt.s32.f32 %v979
    %v1492 = vcvt.s32.f32 %v980
    %v1493 = vcvt.s32.f32 %v981
    %v1494 = vcvt.s32.f32 %v982
    %v1495 = vcvt.s32.f32 %v983
    %v1496 = vcvt.s32.f32 %v984
    %v1497 = vcvt.s32.f32 %v985
    %v1498 = vcvt.s32.f32 %v986
    %v1499 = vcvt.s32.f32 %v987
    %v1500 = vcvt.s32.f32 %v988
    %v1501 = vcvt.s32.f32 %v989
    %v1502 = vcvt.s32.f32 %v990
    %v1503 = vcvt.s32.f32 %v991
    %v1504 = vcvt.s32.f32 %v992
    %v1505 = vcvt.s32.f32 %v993
    %v1506 = vcvt.s32.f32 %v994
    %v1507 = vcvt.s32.f32 %v995
    %v1508 = vcvt.s32.f32 %v996
    %v1509 = vcvt.s32.f32 %v997
    %v1510 = vcvt.s32.f32 %v998
    %v1511 = vcvt.s32.f32 %v999
    %v1512 = vcvt.s32.f32 %v1000
    %v1513 = vcvt.s32.f32 %v1001
    %v1514 = vcvt.s32.f32 %v1002
    %v1515 = vcvt.s32.f32 %v1003
    %v1516 = vcvt.s32.f32 %v1004
    %v1517 = vcvt.s32.f32 %v1005
    %v1518 = vcvt.s32.f32 %v1006
    %v1519 = vcvt.s32.f32 %v1007
    %v1520 = vcvt.s32.f32 %v1008
    %v1521 = vcvt.s32.f32 %v1009
    %v1522 = vcvt.s32.f32 %v1010
    %v1523 = vcvt.s32.f32 %v1011
    %v1524 = vcvt.s32.f32 %v1012
    %v1525 = vcvt.s32.f32 %v1013
    %v1526 = vcvt.s32.f32 %v1014
    %v1527 = vcvt.s32.f32 %v1015
    %v1528 = vcvt.s32.f32 %v1016
    %v1529 = vcvt.s32.f32 %v1017
    %v1530 = vcvt.s32.f32 %v1018
    %v1531 = vcvt.s32.f32 %v1019
    %v1532 = vcvt.s32.f32 %v1020
    %v1533 = vcvt.s32.f32 %v1021
    %v1534 = vcvt.s32.f32 %v1022
    %v1535 = vcvt.s32.f32 %v1023
    %v1536 = vcvt.s32.f32 %v1024
    %v1537 = vcvt.s32.f32 %v1025
    %v1538 = vcvt.s32.f32 %v1026
    %v1539 = vcvt.s32.f32 %v1027
    %v1540 = vcvt.s32.f32 %v1028
    %v1541 = vcvt.s32.f32 %v1029
    %v1542 = vcvt.s32.f32 %v1030
    %v1543 = vcvt.s32.f32 %v1031
    %v1544 = vcvt.s32.f32 %v1032
    %v1545 = vcvt.s32.f32 %v1033
    %v1546 = vcvt.s32.f32 %v1034
    %v1547 = vcvt.s32.f32 %v1035
    %v1548 = vcvt.s32.f32 %v1036
    %v1549 = vcvt.s32.f32 %v1037
    %v1550 = vcvt.s32.f32 %v1038
    %v1551 = vcvt.s32.f32 %v1039
    %v1552 = vcvt.s32.f32 %v1040
    %v1553 = vcvt.s32.f32 %v1041
    %v1554 = vcvt.s32.f32 %v1042
    %v1555 = vcvt.s32.f32 %v1043
    %v1556 = vcvt.s32.f32 %v1044
    %v1557 = vcvt.s32.f32 %v1045
    %v1558 = vcvt.s32.f32 %v1046
    %v1559 = vcvt.s32.f32 %v1047
    %v1560 = vcvt.s32.f32 %v1048
    %v1561 = vcvt.s32.f32 %v1049
    %v1562 = vcvt.s32.f32 %v1050
    %v1563 = vcvt.s32.f32 %v1051
    %v1564 = vcvt.s32.f32 %v1052
    %v1565 = vcvt.s32.f32 %v1053
    %v1566 = vcvt.s32.f32 %v1054
    %v1567 = vcvt.s32.f32 %v1055
    %v1568 = vcvt.s32.f32 %v1056
    %v1569 = vcvt.s32.f32 %v1057
    %v1570 = vcvt.s32.f32 %v1058
    %v1571 = vcvt.s32.f32 %v1059
    %v1572 = vcvt.s32.f32 %v1060
    %v1573 = vcvt.s32.f32 %v1061
    %v1574 = vcvt.s32.f32 %v1062
    %v1575 = vcvt.s32.f32 %v1063
    %v1576 = vcvt.s32.f32 %v1064
    %v1577 = vcvt.s32.f32 %v1065
    %v1578 = vcvt.s32.f32 %v1066
    %v1579 = vcvt.s32.f32 %v1067
    %v1580 = vcvt.s32.f32 %v1068
    %v1581 = vcvt.s32.f32 %v1069
    %v1582 = vcvt.s32.f32 %v1070
    %v1583 = vcvt.s32.f32 %v1071
    %v1584 = vcvt.s32.f32 %v1072
    %v1585 = vcvt.s32.f32 %v1073
    %v1586 = vcvt.s32.f32 %v1074
    %v1587 = vcvt.s32.f32 %v1075
    %v1588 = vcvt.s32.f32 %v1076
    %v1589 = vcvt.s32.f32 %v1077
    %v1590 = vcvt.s32.f32 %v1078
    %v1591 = vcvt.s32.f32 %v1079
    %v1592 = vcvt.s32.f32 %v1080
    %v1593 = vcvt.s32.f32 %v1081
    %v1594 = vcvt.s32.f32 %v1082
    %v1595 = vcvt.s32.f32 %v1083
    %v1596 = vcvt.s32.f32 %v1084
    %v1597 = vcvt.s32.f32 %v1085
    %v1598 = vcvt.s32.f32 %v1086
    %v1599 = vcvt.s32.f32 %v1087
    %v1600 = vcvt.s32.f32 %v1088
    %v1601 = vcvt.s32.f32 %v1089
    %v1602 = vcvt.s32.f32 %v1090
    %v1603 = vcvt.s32.f32 %v1091
    %v1604 = vcvt.s32.f32 %v1092
    %v1605 = vcvt.s32.f32 %v1093
    %v1606 = vcvt.s32.f32 %v1094
    %v1607 = vcvt.s32.f32 %v1095
    %v1608 = vcvt.s32.f32 %v1096
    %v1609 = vcvt.s32.f32 %v1097
    %v1610 = vcvt.s32.f32 %v1098
    %v1611 = vcvt.s32.f32 %v1099
    %v1612 = vcvt.s32.f32 %v1100
    %v1613 = vcvt.s32.f32 %v1101
    %v1614 = vcvt.s32.f32 %v1102
    %v1615 = vcvt.s32.f32 %v1103
    %v1616 = vcvt.s32.f32 %v1104
    %v1617 = vcvt.s32.f32 %v1105
    %v1618 = vcvt.s32.f32 %v1106
    %v1619 = vcvt.s32.f32 %v1107
    %v1620 = vcvt.s32.f32 %v1108
    %v1621 = vcvt.s32.f32 %v1109
    %v1622 = vcvt.s32.f32 %v1110
    %v1623 = vcvt.s32.f32 %v1111
    %v1624 = vcvt.s32.f32 %v1112
    %v1625 = vcvt.s32.f32 %v1113
    %v1626 = vcvt.s32.f32 %v1114
    %v1627 = vcvt.s32.f32 %v1115
    %v1628 = vcvt.s32.f32 %v1116
    %v1629 = vcvt.s32.f32 %v1117
    %v1630 = vcvt.s32.f32 %v1118
    %v1631 = vcvt.s32.f32 %v1119
    %v1632 = vcvt.s32.f32 %v1120
    %v1633 = vcvt.s32.f32 %v1121
    %v1634 = vcvt.s32.f32 %v1122
    %v1635 = vcvt.s32.f32 %v1123
    %v1636 = vcvt.s32.f32 %v1124
    %v1637 = vcvt.s32.f32 %v1125
    %v1638 = vcvt.s32.f32 %v1126
    %v1639 = vcvt.s32.f32 %v1127
    %v1640 = vcvt.s32.f32 %v1128
    %v1641 = vcvt.s32.f32 %v1129
    %v1642 = vcvt.s32.f32 %v1130
    %v1643 = vcvt.s32.f32 %v1131
    %v1644 = vcvt.s32.f32 %v1132
    %v1645 = vcvt.s32.f32 %v1133
    %v1646 = vcvt.s32.f32 %v1134
    %v1647 = vcvt.s32.f32 %v1135
    %v1648 = vcvt.s32.f32 %v1136
    %v1649 = vcvt.s32.f32 %v1137
    %v1650 = vcvt.s32.f32 %v1138
    %v1651 = vcvt.s32.f32 %v1139
    %v1652 = vcvt.s32.f32 %v1140
    %v1653 = vcvt.s32.f32 %v1141
    %v1654 = vcvt.s32.f32 %v1142
    %v1655 = vcvt.s32.f32 %v1143
    %v1656 = vcvt.s32.f32 %v1144
    %v1657 = vcvt.s32.f32 %v1145
    %v1658 = vcvt.s32.f32 %v1146
    %v1659 = vcvt.s32.f32 %v1147
    %v1660 = vcvt.s32.f32 %v1148
    %v1661 = vcvt.s32.f32 %v1149
    %v1662 = vcvt.s32.f32 %v1150
    %v1663 = vcvt.s32.f32 %v1151
    %v1664 = vcvt.s32.f32 %v1152
    %v1665 = vcvt.s32.f32 %v1153
    %v1666 = vcvt.s32.f32 %v1154
    %v1667 = vcvt.s32.f32 %v1155
    %v1668 = vcvt.s32.f32 %v1156
    %v1669 = vcvt.s32.f32 %v1157
    %v1670 = vcvt.s32.f32 %v1158
    %v1671 = vcvt.s32.f32 %v1159
    %v1672 = vcvt.s32.f32 %v1160
    %v1673 = vcvt.s32.f32 %v1161
    %v1674 = vcvt.s32.f32 %v1162
    %v1675 = vcvt.s32.f32 %v1163
    %v1676 = vcvt.s32.f32 %v1164
    %v1677 = vcvt.s32.f32 %v1165
    %v1678 = vcvt.s32.f32 %v1166
    %v1679 = vcvt.s32.f32 %v1167
    %v1680 = vcvt.s32.f32 %v1168
    %v1681 = vcvt.s32.f32 %v1169
    %v1682 = vcvt.s32.f32 %v1170
    %v1683 = vcvt.s32.f32 %v1171
    %v1684 = vcvt.s32.f32 %v1172
    %v1685 = vcvt.s32.f32 %v1173
    %v1686 = vcvt.s32.f32 %v1174
    %v1687 = vcvt.s32.f32 %v1175
    %v1688 = vcvt.s32.f32 %v1176
    %v1689 = vcvt.s32.f32 %v1177
    %v1690 = vcvt.s32.f32 %v1178
    %v1691 = vcvt.s32.f32 %v1179
    %v1692 = vcvt.s32.f32 %v1180
    %v1693 = vcvt.s32.f32 %v1181
    %v1694 = vcvt.s32.f32 %v1182
    %v1695 = vcvt.s32.f32 %v1183
    %v1696 = vcvt.s32.f32 %v1184
    %v1697 = vcvt.s32.f32 %v1185
    %v1698 = vcvt.s32.f32 %v1186
    %v1699 = vcvt.s32.f32 %v1187
    %v1700 = vcvt.s32.f32 %v1188
    %v1701 = vcvt.s32.f32 %v1189
    %v1702 = vcvt.s32.f32 %v1190
    %v1703 = vcvt.s32.f32 %v1191
    %v1704 = vcvt.s32.f32 %v1192
    %v1705 = vcvt.s32.f32 %v1193
    %v1706 = vcvt.s32.f32 %v1194
    %v1707 = vcvt.s32.f32 %v1195
    %v1708 = vcvt.s32.f32 %v1196
    %v1709 = vcvt.s32.f32 %v1197
    %v1710 = vcvt.s32.f32 %v1198
    %v1711 = vcvt.s32.f32 %v1199
    %v1712 = vcvt.s32.f32 %v1200
    %v1713 = vcvt.s32.f32 %v1201
    %v1714 = vcvt.s32.f32 %v1202
    %v1715 = vcvt.s32.f32 %v1203
    %v1716 = vcvt.s32.f32 %v1204
    %v1717 = vcvt.s32.f32 %v1205
    %v1718 = vcvt.s32.f32 %v1206
    %v1719 = vcvt.s32.f32 %v1207
    %v1720 = vcvt.s32.f32 %v1208
    %v1721 = vcvt.s32.f32 %v1209
    %v1722 = vcvt.s32.f32 %v1210
    %v1723 = vcvt.s32.f32 %v1211
    %v1724 = vcvt.s32.f32 %v1212
    %v1725 = vcvt.s32.f32 %v1213
    %v1726 = vcvt.s32.f32 %v1214
    %v1727 = vcvt.s32.f32 %v1215
    %v1728 = vcvt.s32.f32 %v1216
    %v1729 = vcvt.s32.f32 %v1217
    %v1730 = vcvt.s32.f32 %v1218
    %v1731 = vcvt.s32.f32 %v1219
    %v1732 = vcvt.s32.f32 %v1220
    %v1733 = vcvt.s32.f32 %v1221
    %v1734 = vcvt.s32.f32 %v1222
    %v1735 = vcvt.s32.f32 %v1223
    %v1736 = vcvt.s32.f32 %v1224
    %v1737 = vcvt.s32.f32 %v1225
    %v1738 = vcvt.s32.f32 %v1226
    %v1739 = vcvt.s32.f32 %v1227
    %v1740 = vcvt.s32.f32 %v1228
    %v1741 = vcvt.s32.f32 %v1229
    %v1742 = vcvt.s32.f32 %v1230
    %v1743 = vcvt.s32.f32 %v1231
    %v1744 = vcvt.s32.f32 %v1232
    %v1745 = vcvt.s32.f32 %v1233
    %v1746 = vcvt.s32.f32 %v1234
    %v1747 = vcvt.s32.f32 %v1235
    %v1748 = vcvt.s32.f32 %v1236
    %v1749 = vcvt.s32.f32 %v1237
    %v1750 = vcvt.s32.f32 %v1238
    %v1751 = vcvt.s32.f32 %v1239
    %v1752 = vcvt.s32.f32 %v1240
    %v1753 = vcvt.s32.f32 %v1241
    %v1754 = vcvt.s32.f32 %v1242
    %v1755 = vcvt.s32.f32 %v1243
    %v1756 = vcvt.s32.f32 %v1244
    %v1757 = vcvt.s32.f32 %v1245
    %v1758 = vcvt.s32.f32 %v1246
    %v1759 = vcvt.s32.f32 %v1247
    %v1760 = vcvt.s32.f32 %v1248
    %v1761 = vcvt.s32.f32 %v1249
    %v1762 = vcvt.s32.f32 %v1250
    %v1763 = vcvt.s32.f32 %v1251
    %v1764 = vcvt.s32.f32 %v1252
    %v1765 = vcvt.s32.f32 %v1253
    %v1766 = vcvt.s32.f32 %v1254
    %v1767 = vcvt.s32.f32 %v1255
    %v1768 = vcvt.s32.f32 %v1256
    %v1769 = vcvt.s32.f32 %v1257
    %v1770 = vcvt.s32.f32 %v1258
    %v1771 = vcvt.s32.f32 %v1259
    %v1772 = vcvt.s32.f32 %v1260
    %v1773 = vcvt.s32.f32 %v1261
    %v1774 = vcvt.s32.f32 %v1262
    %v1775 = vcvt.s32.f32 %v1263
    %v1776 = vcvt.s32.f32 %v1264
    %v1777 = vcvt.s32.f32 %v1265
    %v1778 = vcvt.s32.f32 %v1266
    %v1779 = vcvt.s32.f32 %v1267
    %v1780 = vcvt.s32.f32 %v1268
    %v1781 = vcvt.s32.f32 %v1269
    %v1782 = vcvt.s32.f32 %v1270
    %v1783 = vcvt.s32.f32 %v1271
    %v1784 = vcvt.s32.f32 %v1272
    %v1785 = vcvt.s32.f32 %v1273
    %v1786 = vcvt.s32.f32 %v1274
    %v1787 = vcvt.s32.f32 %v1275
    %v1788 = vcvt.s32.f32 %v1276
    %v1789 = vcvt.s32.f32 %v1277
    %v1790 = vcvt.s32.f32 %v1278
    %v1791 = vcvt.s32.f32 %v1279
    %v1792 = vcvt.s32.f32 %v1280
    %v1793 = vcvt.s32.f32 %v1281
    %v1794 = vcvt.s32.f32 %v1282
    %v1795 = vcvt.s32.f32 %v1283
    %v1796 = vcvt.s32.f32 %v1284
    %v1797 = vcvt.s32.f32 %v1285
    %v1798 = vcvt.s32.f32 %v1286
    %v1799 = vcvt.s32.f32 %v1287
    %v1800 = vcvt.s32.f32 %v1288
    %v1801 = vcvt.s32.f32 %v1289
    %v1802 = vcvt.s32.f32 %v1290
    %v1803 = vcvt.s32.f32 %v1291
    %v1804 = vcvt.s32.f32 %v1292
    %v1805 = vcvt.s32.f32 %v1293
    %v1806 = vcvt.s32.f32 %v1294
    %v1807 = vcvt.s32.f32 %v1295
    %v1808 = vcvt.s32.f32 %v1296
    %v1809 = vcvt.s32.f32 %v1297
    %v1810 = vcvt.s32.f32 %v1298
    %v1811 = vcvt.s32.f32 %v1299
    %v1812 = vcvt.s32.f32 %v1300
    %v1813 = vcvt.s32.f32 %v1301
    %v1814 = vcvt.s32.f32 %v1302
    %v1815 = vcvt.s32.f32 %v1303
    %v1816 = vcvt.s32.f32 %v1304
    %v1817 = vcvt.s32.f32 %v1305
    %v1818 = vcvt.s32.f32 %v1306
    %v1819 = vcvt.s32.f32 %v1307
    %v1820 = vcvt.s32.f32 %v1308
    %v1821 = vcvt.s32.f32 %v1309
    %v1822 = vcvt.s32.f32 %v1310
    %v1823 = vcvt.s32.f32 %v1311
    %v1824 = vcvt.s32.f32 %v1312
    %v1825 = vcvt.s32.f32 %v1313
    %v1826 = vcvt.s32.f32 %v1314
    %v1827 = vcvt.s32.f32 %v1315
    %v1828 = vcvt.s32.f32 %v1316
    %v1829 = vcvt.s32.f32 %v1317
    %v1830 = vcvt.s32.f32 %v1318
    %v1831 = vcvt.s32.f32 %v1319
    %v1832 = vcvt.s32.f32 %v1320
    %v1833 = vcvt.s32.f32 %v1321
    %v1834 = vcvt.s32.f32 %v1322
    %v1835 = vcvt.s32.f32 %v1323
    %v1836 = vcvt.s32.f32 %v1324
    %v1837 = vcvt.s32.f32 %v1325
    %v1838 = vcvt.s32.f32 %v1326
    %v1839 = vcvt.s32.f32 %v1327
    %v1840 = vcvt.s32.f32 %v1328
    %v1841 = vcvt.s32.f32 %v1329
    %v1842 = vcvt.s32.f32 %v1330
    %v1843 = vcvt.s32.f32 %v1331
    %v1844 = vcvt.s32.f32 %v1332
    %v1845 = vcvt.s32.f32 %v1333
    %v1846 = vcvt.s32.f32 %v1334
    %v1847 = vcvt.s32.f32 %v1335
    %v1848 = vcvt.s32.f32 %v1336
    %v1849 = vcvt.s32.f32 %v1337
    %v1850 = vcvt.s32.f32 %v1338
    %v1851 = vcvt.s32.f32 %v1339
    %v1852 = vcvt.s32.f32 %v1340
    %v1853 = vcvt.s32.f32 %v1341
    %v1854 = vcvt.s32.f32 %v1342
    %v1855 = vcvt.s32.f32 %v1343
    %v1856 = vcvt.s32.f32 %v1344
    %v1857 = vcvt.s32.f32 %v1345
    %v1858 = vcvt.s32.f32 %v1346
    %v1859 = vcvt.s32.f32 %v1347
    %v1860 = vcvt.s32.f32 %v1348
    %v1861 = vcvt.s32.f32 %v1349
    %v1862 = vcvt.s32.f32 %v1350
    %v1863 = vcvt.s32.f32 %v1351
    %v1864 = vcvt.s32.f32 %v1352
    %v1865 = vcvt.s32.f32 %v1353
    %v1866 = vcvt.s32.f32 %v1354
    %v1867 = vcvt.s32.f32 %v1355
    %v1868 = vcvt.s32.f32 %v1356
    %v1869 = vcvt.s32.f32 %v1357
    %v1870 = vcvt.s32.f32 %v1358
    %v1871 = vcvt.s32.f32 %v1359
    %v1872 = vcvt.s32.f32 %v1360
    %v1873 = vcvt.s32.f32 %v1361
    %v1874 = vcvt.s32.f32 %v1362
    %v1875 = vcvt.s32.f32 %v1363
    %v1876 = vcvt.s32.f32 %v1364
    %v1877 = vcvt.s32.f32 %v1365
    %v1878 = vcvt.s32.f32 %v1366
    %v1879 = vcvt.s32.f32 %v1367
    %v1880 = vcvt.s32.f32 %v1368
    %v1881 = vcvt.s32.f32 %v1369
    %v1882 = vcvt.s32.f32 %v1370
    %v1883 = vcvt.s32.f32 %v1371
    %v1884 = vcvt.s32.f32 %v1372
    %v1885 = vcvt.s32.f32 %v1373
    %v1886 = vcvt.s32.f32 %v1374
    %v1887 = vcvt.s32.f32 %v1375
    %v1888 = vcvt.s32.f32 %v1376
    %v1889 = vcvt.s32.f32 %v1377
    %v1890 = vcvt.s32.f32 %v1378
    %v1891 = vcvt.s32.f32 %v1379
    %v1892 = vcvt.s32.f32 %v1380
    %v1893 = vcvt.s32.f32 %v1381
    %v1894 = vcvt.s32.f32 %v1382
    %v1895 = vcvt.s32.f32 %v1383
    %v1896 = vcvt.s32.f32 %v1384
    %v1897 = vcvt.s32.f32 %v1385
    %v1898 = vcvt.s32.f32 %v1386
    %v1899 = vcvt.s32.f32 %v1387
    %v1900 = vcvt.s32.f32 %v1388
    %v1901 = vcvt.s32.f32 %v1389
    %v1902 = vcvt.s32.f32 %v1390
    %v1903 = vcvt.s32.f32 %v1391
    %v1904 = vcvt.s32.f32 %v1392
    %v1905 = vcvt.s32.f32 %v1393
    %v1906 = vcvt.s32.f32 %v1394
    %v1907 = vcvt.s32.f32 %v1395
    %v1908 = vcvt.s32.f32 %v1396
    %v1909 = vcvt.s32.f32 %v1397
    %v1910 = vcvt.s32.f32 %v1398
    %v1911 = vcvt.s32.f32 %v1399
    %v1912 = vcvt.s32.f32 %v1400
    %v1913 = vcvt.s32.f32 %v1401
    %v1914 = vcvt.s32.f32 %v1402
    %v1915 = vcvt.s32.f32 %v1403
    %v1916 = vcvt.s32.f32 %v1404
    %v1917 = vcvt.s32.f32 %v1405
    %v1918 = vcvt.s32.f32 %v1406
    %v1919 = vcvt.s32.f32 %v1407
    %v1920 = vcvt.s32.f32 %v1408
    %v1921 = vcvt.s32.f32 %v1409
    %v1922 = vcvt.s32.f32 %v1410
    %v1923 = vcvt.s32.f32 %v1411
    %v1924 = vcvt.s32.f32 %v1412
    %v1925 = vcvt.s32.f32 %v1413
    %v1926 = vcvt.s32.f32 %v1414
    %v1927 = vcvt.s32.f32 %v1415
    %v1928 = vcvt.s32.f32 %v1416
    %v1929 = vcvt.s32.f32 %v1417
    %v1930 = vcvt.s32.f32 %v1418
    %v1931 = vcvt.s32.f32 %v1419
    %v1932 = vcvt.s32.f32 %v1420
    %v1933 = vcvt.s32.f32 %v1421
    %v1934 = vpack.c.bf16 %v1426, %v1422
    %v1935 = vpack.c.bf16 %v1427, %v1423
    %v1936 = vpack.c.bf16 %v1428, %v1424
    %v1937 = vpack.c.bf16 %v1429, %v1425
    %v1938 = vpack.c.bf16 %v1434, %v1430
    %v1939 = vpack.c.bf16 %v1435, %v1431
    %v1940 = vpack.c.bf16 %v1436, %v1432
    %v1941 = vpack.c.bf16 %v1437, %v1433
    %v1942 = vpack.c.bf16 %v1442, %v1438
    %v1943 = vpack.c.bf16 %v1443, %v1439
    %v1944 = vpack.c.bf16 %v1444, %v1440
    %v1945 = vpack.c.bf16 %v1445, %v1441
    %v1946 = vpack.c.bf16 %v1450, %v1446
    %v1947 = vpack.c.bf16 %v1451, %v1447
    %v1948 = vpack.c.bf16 %v1452, %v1448
    %v1949 = vpack.c.bf16 %v1453, %v1449
    %v1950 = vpack.c.bf16 %v1458, %v1454
    %v1951 = vpack.c.bf16 %v1459, %v1455
    %v1952 = vpack.c.bf16 %v1460, %v1456
    %v1953 = vpack.c.bf16 %v1461, %v1457
    %v1954 = vpack.c.bf16 %v1466, %v1462
    %v1955 = vpack.c.bf16 %v1467, %v1463
    %v1956 = vpack.c.bf16 %v1468, %v1464
    %v1957 = vpack.c.bf16 %v1469, %v1465
    %v1958 = vpack.c.bf16 %v1474, %v1470
    %v1959 = vpack.c.bf16 %v1475, %v1471
    %v1960 = vpack.c.bf16 %v1476, %v1472
    %v1961 = vpack.c.bf16 %v1477, %v1473
    %v1962 = vpack.c.bf16 %v1482, %v1478
    %v1963 = vpack.c.bf16 %v1483, %v1479
    %v1964 = vpack.c.bf16 %v1484, %v1480
    %v1965 = vpack.c.bf16 %v1485, %v1481
    %v1966 = vpack.c.bf16 %v1490, %v1486
    %v1967 = vpack.c.bf16 %v1491, %v1487
    %v1968 = vpack.c.bf16 %v1492, %v1488
    %v1969 = vpack.c.bf16 %v1493, %v1489
    %v1970 = vpack.c.bf16 %v1498, %v1494
    %v1971 = vpack.c.bf16 %v1499, %v1495
    %v1972 = vpack.c.bf16 %v1500, %v1496
    %v1973 = vpack.c.bf16 %v1501, %v1497
    %v1974 = vpack.c.bf16 %v1506, %v1502
    %v1975 = vpack.c.bf16 %v1507, %v1503
    %v1976 = vpack.c.bf16 %v1508, %v1504
    %v1977 = vpack.c.bf16 %v1509, %v1505
    %v1978 = vpack.c.bf16 %v1514, %v1510
    %v1979 = vpack.c.bf16 %v1515, %v1511
    %v1980 = vpack.c.bf16 %v1516, %v1512
    %v1981 = vpack.c.bf16 %v1517, %v1513
    %v1982 = vpack.c.bf16 %v1522, %v1518
    %v1983 = vpack.c.bf16 %v1523, %v1519
    %v1984 = vpack.c.bf16 %v1524, %v1520
    %v1985 = vpack.c.bf16 %v1525, %v1521
    %v1986 = vpack.c.bf16 %v1530, %v1526
    %v1987 = vpack.c.bf16 %v1531, %v1527
    %v1988 = vpack.c.bf16 %v1532, %v1528
    %v1989 = vpack.c.bf16 %v1533, %v1529
    %v1990 = vpack.c.bf16 %v1538, %v1534
    %v1991 = vpack.c.bf16 %v1539, %v1535
    %v1992 = vpack.c.bf16 %v1540, %v1536
    %v1993 = vpack.c.bf16 %v1541, %v1537
    %v1994 = vpack.c.bf16 %v1546, %v1542
    %v1995 = vpack.c.bf16 %v1547, %v1543
    %v1996 = vpack.c.bf16 %v1548, %v1544
    %v1997 = vpack.c.bf16 %v1549, %v1545
    %v1998 = vpack.c.bf16 %v1554, %v1550
    %v1999 = vpack.c.bf16 %v1555, %v1551
    %v2000 = vpack.c.bf16 %v1556, %v1552
    %v2001 = vpack.c.bf16 %v1557, %v1553
    %v2002 = vpack.c.bf16 %v1562, %v1558
    %v2003 = vpack.c.bf16 %v1563, %v1559
    %v2004 = vpack.c.bf16 %v1564, %v1560
    %v2005 = vpack.c.bf16 %v1565, %v1561
    %v2006 = vpack.c.bf16 %v1570, %v1566
    %v2007 = vpack.c.bf16 %v1571, %v1567
    %v2008 = vpack.c.bf16 %v1572, %v1568
    %v2009 = vpack.c.bf16 %v1573, %v1569
    %v2010 = vpack.c.bf16 %v1578, %v1574
    %v2011 = vpack.c.bf16 %v1579, %v1575
    %v2012 = vpack.c.bf16 %v1580, %v1576
    %v2013 = vpack.c.bf16 %v1581, %v1577
    %v2014 = vpack.c.bf16 %v1586, %v1582
    %v2015 = vpack.c.bf16 %v1587, %v1583
    %v2016 = vpack.c.bf16 %v1588, %v1584
    %v2017 = vpack.c.bf16 %v1589, %v1585
    %v2018 = vpack.c.bf16 %v1594, %v1590
    %v2019 = vpack.c.bf16 %v1595, %v1591
    %v2020 = vpack.c.bf16 %v1596, %v1592
    %v2021 = vpack.c.bf16 %v1597, %v1593
    %v2022 = vpack.c.bf16 %v1602, %v1598
    %v2023 = vpack.c.bf16 %v1603, %v1599
    %v2024 = vpack.c.bf16 %v1604, %v1600
    %v2025 = vpack.c.bf16 %v1605, %v1601
    %v2026 = vpack.c.bf16 %v1610, %v1606
    %v2027 = vpack.c.bf16 %v1611, %v1607
    %v2028 = vpack.c.bf16 %v1612, %v1608
    %v2029 = vpack.c.bf16 %v1613, %v1609
    %v2030 = vpack.c.bf16 %v1618, %v1614
    %v2031 = vpack.c.bf16 %v1619, %v1615
    %v2032 = vpack.c.bf16 %v1620, %v1616
    %v2033 = vpack.c.bf16 %v1621, %v1617
    %v2034 = vpack.c.bf16 %v1626, %v1622
    %v2035 = vpack.c.bf16 %v1627, %v1623
    %v2036 = vpack.c.bf16 %v1628, %v1624
    %v2037 = vpack.c.bf16 %v1629, %v1625
    %v2038 = vpack.c.bf16 %v1634, %v1630
    %v2039 = vpack.c.bf16 %v1635, %v1631
    %v2040 = vpack.c.bf16 %v1636, %v1632
    %v2041 = vpack.c.bf16 %v1637, %v1633
    %v2042 = vpack.c.bf16 %v1642, %v1638
    %v2043 = vpack.c.bf16 %v1643, %v1639
    %v2044 = vpack.c.bf16 %v1644, %v1640
    %v2045 = vpack.c.bf16 %v1645, %v1641
    %v2046 = vpack.c.bf16 %v1650, %v1646
    %v2047 = vpack.c.bf16 %v1651, %v1647
    %v2048 = vpack.c.bf16 %v1652, %v1648
    %v2049 = vpack.c.bf16 %v1653, %v1649
    %v2050 = vpack.c.bf16 %v1658, %v1654
    %v2051 = vpack.c.bf16 %v1659, %v1655
    %v2052 = vpack.c.bf16 %v1660, %v1656
    %v2053 = vpack.c.bf16 %v1661, %v1657
    %v2054 = vpack.c.bf16 %v1666, %v1662
    %v2055 = vpack.c.bf16 %v1667, %v1663
    %v2056 = vpack.c.bf16 %v1668, %v1664
    %v2057 = vpack.c.bf16 %v1669, %v1665
    %v2058 = vpack.c.bf16 %v1674, %v1670
    %v2059 = vpack.c.bf16 %v1675, %v1671
    %v2060 = vpack.c.bf16 %v1676, %v1672
    %v2061 = vpack.c.bf16 %v1677, %v1673
    %v2062 = vpack.c.bf16 %v1682, %v1678
    %v2063 = vpack.c.bf16 %v1683, %v1679
    %v2064 = vpack.c.bf16 %v1684, %v1680
    %v2065 = vpack.c.bf16 %v1685, %v1681
    %v2066 = vpack.c.bf16 %v1690, %v1686
    %v2067 = vpack.c.bf16 %v1691, %v1687
    %v2068 = vpack.c.bf16 %v1692, %v1688
    %v2069 = vpack.c.bf16 %v1693, %v1689
    %v2070 = vpack.c.bf16 %v1698, %v1694
    %v2071 = vpack.c.bf16 %v1699, %v1695
    %v2072 = vpack.c.bf16 %v1700, %v1696
    %v2073 = vpack.c.bf16 %v1701, %v1697
    %v2074 = vpack.c.bf16 %v1706, %v1702
    %v2075 = vpack.c.bf16 %v1707, %v1703
    %v2076 = vpack.c.bf16 %v1708, %v1704
    %v2077 = vpack.c.bf16 %v1709, %v1705
    %v2078 = vpack.c.bf16 %v1714, %v1710
    %v2079 = vpack.c.bf16 %v1715, %v1711
    %v2080 = vpack.c.bf16 %v1716, %v1712
    %v2081 = vpack.c.bf16 %v1717, %v1713
    %v2082 = vpack.c.bf16 %v1722, %v1718
    %v2083 = vpack.c.bf16 %v1723, %v1719
    %v2084 = vpack.c.bf16 %v1724, %v1720
    %v2085 = vpack.c.bf16 %v1725, %v1721
    %v2086 = vpack.c.bf16 %v1730, %v1726
    %v2087 = vpack.c.bf16 %v1731, %v1727
    %v2088 = vpack.c.bf16 %v1732, %v1728
    %v2089 = vpack.c.bf16 %v1733, %v1729
    %v2090 = vpack.c.bf16 %v1738, %v1734
    %v2091 = vpack.c.bf16 %v1739, %v1735
    %v2092 = vpack.c.bf16 %v1740, %v1736
    %v2093 = vpack.c.bf16 %v1741, %v1737
    %v2094 = vpack.c.bf16 %v1746, %v1742
    %v2095 = vpack.c.bf16 %v1747, %v1743
    %v2096 = vpack.c.bf16 %v1748, %v1744
    %v2097 = vpack.c.bf16 %v1749, %v1745
    %v2098 = vpack.c.bf16 %v1754, %v1750
    %v2099 = vpack.c.bf16 %v1755, %v1751
    %v2100 = vpack.c.bf16 %v1756, %v1752
    %v2101 = vpack.c.bf16 %v1757, %v1753
    %v2102 = vpack.c.bf16 %v1762, %v1758
    %v2103 = vpack.c.bf16 %v1763, %v1759
    %v2104 = vpack.c.bf16 %v1764, %v1760
    %v2105 = vpack.c.bf16 %v1765, %v1761
    %v2106 = vpack.c.bf16 %v1770, %v1766
    %v2107 = vpack.c.bf16 %v1771, %v1767
    %v2108 = vpack.c.bf16 %v1772, %v1768
    %v2109 = vpack.c.bf16 %v1773, %v1769
    %v2110 = vpack.c.bf16 %v1778, %v1774
    %v2111 = vpack.c.bf16 %v1779, %v1775
    %v2112 = vpack.c.bf16 %v1780, %v1776
    %v2113 = vpack.c.bf16 %v1781, %v1777
    %v2114 = vpack.c.bf16 %v1786, %v1782
    %v2115 = vpack.c.bf16 %v1787, %v1783
    %v2116 = vpack.c.bf16 %v1788, %v1784
    %v2117 = vpack.c.bf16 %v1789, %v1785
    %v2118 = vpack.c.bf16 %v1794, %v1790
    %v2119 = vpack.c.bf16 %v1795, %v1791
    %v2120 = vpack.c.bf16 %v1796, %v1792
    %v2121 = vpack.c.bf16 %v1797, %v1793
    %v2122 = vpack.c.bf16 %v1802, %v1798
    %v2123 = vpack.c.bf16 %v1803, %v1799
    %v2124 = vpack.c.bf16 %v1804, %v1800
    %v2125 = vpack.c.bf16 %v1805, %v1801
    %v2126 = vpack.c.bf16 %v1810, %v1806
    %v2127 = vpack.c.bf16 %v1811, %v1807
    %v2128 = vpack.c.bf16 %v1812, %v1808
    %v2129 = vpack.c.bf16 %v1813, %v1809
    %v2130 = vpack.c.bf16 %v1818, %v1814
    %v2131 = vpack.c.bf16 %v1819, %v1815
    %v2132 = vpack.c.bf16 %v1820, %v1816
    %v2133 = vpack.c.bf16 %v1821, %v1817
    %v2134 = vpack.c.bf16 %v1826, %v1822
    %v2135 = vpack.c.bf16 %v1827, %v1823
    %v2136 = vpack.c.bf16 %v1828, %v1824
    %v2137 = vpack.c.bf16 %v1829, %v1825
    %v2138 = vpack.c.bf16 %v1834, %v1830
    %v2139 = vpack.c.bf16 %v1835, %v1831
    %v2140 = vpack.c.bf16 %v1836, %v1832
    %v2141 = vpack.c.bf16 %v1837, %v1833
    %v2142 = vpack.c.bf16 %v1842, %v1838
    %v2143 = vpack.c.bf16 %v1843, %v1839
    %v2144 = vpack.c.bf16 %v1844, %v1840
    %v2145 = vpack.c.bf16 %v1845, %v1841
    %v2146 = vpack.c.bf16 %v1850, %v1846
    %v2147 = vpack.c.bf16 %v1851, %v1847
    %v2148 = vpack.c.bf16 %v1852, %v1848
    %v2149 = vpack.c.bf16 %v1853, %v1849
    %v2150 = vpack.c.bf16 %v1858, %v1854
    %v2151 = vpack.c.bf16 %v1859, %v1855
    %v2152 = vpack.c.bf16 %v1860, %v1856
    %v2153 = vpack.c.bf16 %v1861, %v1857
    %v2154 = vpack.c.bf16 %v1866, %v1862
    %v2155 = vpack.c.bf16 %v1867, %v1863
    %v2156 = vpack.c.bf16 %v1868, %v1864
    %v2157 = vpack.c.bf16 %v1869, %v1865
    %v2158 = vpack.c.bf16 %v1874, %v1870
    %v2159 = vpack.c.bf16 %v1875, %v1871
    %v2160 = vpack.c.bf16 %v1876, %v1872
    %v2161 = vpack.c.bf16 %v1877, %v1873
    %v2162 = vpack.c.bf16 %v1882, %v1878
    %v2163 = vpack.c.bf16 %v1883, %v1879
    %v2164 = vpack.c.bf16 %v1884, %v1880
    %v2165 = vpack.c.bf16 %v1885, %v1881
    %v2166 = vpack.c.bf16 %v1890, %v1886
    %v2167 = vpack.c.bf16 %v1891, %v1887
    %v2168 = vpack.c.bf16 %v1892, %v1888
    %v2169 = vpack.c.bf16 %v1893, %v1889
    %v2170 = vpack.c.bf16 %v1898, %v1894
    %v2171 = vpack.c.bf16 %v1899, %v1895
    %v2172 = vpack.c.bf16 %v1900, %v1896
    %v2173 = vpack.c.bf16 %v1901, %v1897
    %v2174 = vpack.c.bf16 %v1906, %v1902
    %v2175 = vpack.c.bf16 %v1907, %v1903
    %v2176 = vpack.c.bf16 %v1908, %v1904
    %v2177 = vpack.c.bf16 %v1909, %v1905
    %v2178 = vpack.c.bf16 %v1914, %v1910
    %v2179 = vpack.c.bf16 %v1915, %v1911
    %v2180 = vpack.c.bf16 %v1916, %v1912
    %v2181 = vpack.c.bf16 %v1917, %v1913
    %v2182 = vpack.c.bf16 %v1922, %v1918
    %v2183 = vpack.c.bf16 %v1923, %v1919
    %v2184 = vpack.c.bf16 %v1924, %v1920
    %v2185 = vpack.c.bf16 %v1925, %v1921
    %v2186 = vpack.c.bf16 %v1930, %v1926
    %v2187 = vpack.c.bf16 %v1931, %v1927
    %v2188 = vpack.c.bf16 %v1932, %v1928
    %v2189 = vpack.c.bf16 %v1933, %v1929
    %v2190 = vpack.c.bf16 %v774, %v774
    %v2191 = vpack.c.bf16 %v775, %v775
    %v2192 = vpack.c.bf16 %v776, %v776
    %v2193 = vpack.c.bf16 %v777, %v777
    %v2194 = vpack.c.bf16 %v778, %v778
    %v2195 = vpack.c.bf16 %v779, %v779
    %v2196 = vpack.c.bf16 %v780, %v780
    %v2197 = vpack.c.bf16 %v781, %v781
    %2198 = vmatpush.bf16.msra.mxu0 %v1962
    %2199 = vmatpush.bf16.msra.mxu0 %v1958
    %2200 = vmatpush.bf16.msra.mxu0 %v1954
    %2201 = vmatpush.bf16.msra.mxu0 %v1950
    %2202 = vmatpush.bf16.msra.mxu0 %v1946
    %2203 = vmatpush.bf16.msra.mxu0 %v1942
    %2204 = vmatpush.bf16.msra.mxu0 %v1938
    %2205 = vmatpush.bf16.msra.mxu0 %v1934
    %2206 = vmatmul.bf16.gmra.mxu0 %v2190
    %v2207 = vpop.f32.mrf.mxu0
    %v2208 = vadd.f32 0.0, %v2207
    %v2209 = vpop.f32.mrf.mxu0
    %2210 = vdwg.mxu0
    %2211 = vmatpush.bf16.msra.mxu0 %v1994
    %2212 = vmatpush.bf16.msra.mxu0 %v1990
    %2213 = vmatpush.bf16.msra.mxu0 %v1986
    %2214 = vmatpush.bf16.msra.mxu0 %v1982
    %2215 = vmatpush.bf16.msra.mxu0 %v1978
    %2216 = vmatpush.bf16.msra.mxu0 %v1974
    %2217 = vmatpush.bf16.msra.mxu0 %v1970
    %2218 = vmatpush.bf16.msra.mxu0 %v1966
    %2219 = vmatmul.bf16.gmra.mxu0 %v2191
    %v2220 = vpop.f32.mrf.mxu0
    %v2221 = vadd.f32 %v2208, %v2220
    %v2222 = vpop.f32.mrf.mxu0
    %2223 = vdwg.mxu0
    %2224 = vmatpush.bf16.msra.mxu0 %v2026
    %2225 = vmatpush.bf16.msra.mxu0 %v2022
    %2226 = vmatpush.bf16.msra.mxu0 %v2018
    %2227 = vmatpush.bf16.msra.mxu0 %v2014
    %2228 = vmatpush.bf16.msra.mxu0 %v2010
    %2229 = vmatpush.bf16.msra.mxu0 %v2006
    %2230 = vmatpush.bf16.msra.mxu0 %v2002
    %2231 = vmatpush.bf16.msra.mxu0 %v1998
    %2232 = vmatmul.bf16.gmra.mxu0 %v2192
    %v2233 = vpop.f32.mrf.mxu0
    %v2234 = vadd.f32 %v2221, %v2233
    %v2235 = vpop.f32.mrf.mxu0
    %2236 = vdwg.mxu0
    %2237 = vmatpush.bf16.msra.mxu0 %v2058
    %2238 = vmatpush.bf16.msra.mxu0 %v2054
    %2239 = vmatpush.bf16.msra.mxu0 %v2050
    %2240 = vmatpush.bf16.msra.mxu0 %v2046
    %2241 = vmatpush.bf16.msra.mxu0 %v2042
    %2242 = vmatpush.bf16.msra.mxu0 %v2038
    %2243 = vmatpush.bf16.msra.mxu0 %v2034
    %2244 = vmatpush.bf16.msra.mxu0 %v2030
    %2245 = vmatmul.bf16.gmra.mxu0 %v2193
    %v2246 = vpop.f32.mrf.mxu0
    %v2247 = vadd.f32 %v2234, %v2246
    %v2248 = vpop.f32.mrf.mxu0
    %2249 = vdwg.mxu0
    %2250 = vmatpush.bf16.msra.mxu0 %v2090
    %2251 = vmatpush.bf16.msra.mxu0 %v2086
    %2252 = vmatpush.bf16.msra.mxu0 %v2082
    %2253 = vmatpush.bf16.msra.mxu0 %v2078
    %2254 = vmatpush.bf16.msra.mxu0 %v2074
    %2255 = vmatpush.bf16.msra.mxu0 %v2070
    %2256 = vmatpush.bf16.msra.mxu0 %v2066
    %2257 = vmatpush.bf16.msra.mxu0 %v2062
    %2258 = vmatmul.bf16.gmra.mxu0 %v2194
    %v2259 = vpop.f32.mrf.mxu0
    %v2260 = vadd.f32 %v2247, %v2259
    %v2261 = vpop.f32.mrf.mxu0
    %2262 = vdwg.mxu0
    %2263 = vmatpush.bf16.msra.mxu0 %v2122
    %2264 = vmatpush.bf16.msra.mxu0 %v2118
    %2265 = vmatpush.bf16.msra.mxu0 %v2114
    %2266 = vmatpush.bf16.msra.mxu0 %v2110
    %2267 = vmatpush.bf16.msra.mxu0 %v2106
    %2268 = vmatpush.bf16.msra.mxu0 %v2102
    %2269 = vmatpush.bf16.msra.mxu0 %v2098
    %2270 = vmatpush.bf16.msra.mxu0 %v2094
    %2271 = vmatmul.bf16.gmra.mxu0 %v2195
    %v2272 = vpop.f32.mrf.mxu0
    %v2273 = vadd.f32 %v2260, %v2272
    %v2274 = vpop.f32.mrf.mxu0
    %2275 = vdwg.mxu0
    %2276 = vmatpush.bf16.msra.mxu0 %v2154
    %2277 = vmatpush.bf16.msra.mxu0 %v2150
    %2278 = vmatpush.bf16.msra.mxu0 %v2146
    %2279 = vmatpush.bf16.msra.mxu0 %v2142
    %2280 = vmatpush.bf16.msra.mxu0 %v2138
    %2281 = vmatpush.bf16.msra.mxu0 %v2134
    %2282 = vmatpush.bf16.msra.mxu0 %v2130
    %2283 = vmatpush.bf16.msra.mxu0 %v2126
    %2284 = vmatmul.bf16.gmra.mxu0 %v2196
    %v2285 = vpop.f32.mrf.mxu0
    %v2286 = vadd.f32 %v2273, %v2285
    %v2287 = vpop.f32.mrf.mxu0
    %2288 = vdwg.mxu0
    %2289 = vmatpush.bf16.msra.mxu0 %v2186
    %2290 = vmatpush.bf16.msra.mxu0 %v2182
    %2291 = vmatpush.bf16.msra.mxu0 %v2178
    %2292 = vmatpush.bf16.msra.mxu0 %v2174
    %2293 = vmatpush.bf16.msra.mxu0 %v2170
    %2294 = vmatpush.bf16.msra.mxu0 %v2166
    %2295 = vmatpush.bf16.msra.mxu0 %v2162
    %2296 = vmatpush.bf16.msra.mxu0 %v2158
    %2297 = vmatmul.bf16.gmra.mxu0 %v2197
    %v2298 = vpop.f32.mrf.mxu0
    %v2299 = vadd.f32 %v2286, %v2298
    %v2300 = vpop.f32.mrf.mxu0
    %2301 = vdwg.mxu0
    %2302 = vmatpush.bf16.msra.mxu0 %v1963
    %2303 = vmatpush.bf16.msra.mxu0 %v1959
    %2304 = vmatpush.bf16.msra.mxu0 %v1955
    %2305 = vmatpush.bf16.msra.mxu0 %v1951
    %2306 = vmatpush.bf16.msra.mxu0 %v1947
    %2307 = vmatpush.bf16.msra.mxu0 %v1943
    %2308 = vmatpush.bf16.msra.mxu0 %v1939
    %2309 = vmatpush.bf16.msra.mxu0 %v1935
    %2310 = vmatmul.bf16.gmra.mxu0 %v2190
    %v2311 = vpop.f32.mrf.mxu0
    %v2312 = vadd.f32 0.0, %v2311
    %v2313 = vpop.f32.mrf.mxu0
    %2314 = vdwg.mxu0
    %2315 = vmatpush.bf16.msra.mxu0 %v1995
    %2316 = vmatpush.bf16.msra.mxu0 %v1991
    %2317 = vmatpush.bf16.msra.mxu0 %v1987
    %2318 = vmatpush.bf16.msra.mxu0 %v1983
    %2319 = vmatpush.bf16.msra.mxu0 %v1979
    %2320 = vmatpush.bf16.msra.mxu0 %v1975
    %2321 = vmatpush.bf16.msra.mxu0 %v1971
    %2322 = vmatpush.bf16.msra.mxu0 %v1967
    %2323 = vmatmul.bf16.gmra.mxu0 %v2191
    %v2324 = vpop.f32.mrf.mxu0
    %v2325 = vadd.f32 %v2312, %v2324
    %v2326 = vpop.f32.mrf.mxu0
    %2327 = vdwg.mxu0
    %2328 = vmatpush.bf16.msra.mxu0 %v2027
    %2329 = vmatpush.bf16.msra.mxu0 %v2023
    %2330 = vmatpush.bf16.msra.mxu0 %v2019
    %2331 = vmatpush.bf16.msra.mxu0 %v2015
    %2332 = vmatpush.bf16.msra.mxu0 %v2011
    %2333 = vmatpush.bf16.msra.mxu0 %v2007
    %2334 = vmatpush.bf16.msra.mxu0 %v2003
    %2335 = vmatpush.bf16.msra.mxu0 %v1999
    %2336 = vmatmul.bf16.gmra.mxu0 %v2192
    %v2337 = vpop.f32.mrf.mxu0
    %v2338 = vadd.f32 %v2325, %v2337
    %v2339 = vpop.f32.mrf.mxu0
    %2340 = vdwg.mxu0
    %2341 = vmatpush.bf16.msra.mxu0 %v2059
    %2342 = vmatpush.bf16.msra.mxu0 %v2055
    %2343 = vmatpush.bf16.msra.mxu0 %v2051
    %2344 = vmatpush.bf16.msra.mxu0 %v2047
    %2345 = vmatpush.bf16.msra.mxu0 %v2043
    %2346 = vmatpush.bf16.msra.mxu0 %v2039
    %2347 = vmatpush.bf16.msra.mxu0 %v2035
    %2348 = vmatpush.bf16.msra.mxu0 %v2031
    %2349 = vmatmul.bf16.gmra.mxu0 %v2193
    %v2350 = vpop.f32.mrf.mxu0
    %v2351 = vadd.f32 %v2338, %v2350
    %v2352 = vpop.f32.mrf.mxu0
    %2353 = vdwg.mxu0
    %2354 = vmatpush.bf16.msra.mxu0 %v2091
    %2355 = vmatpush.bf16.msra.mxu0 %v2087
    %2356 = vmatpush.bf16.msra.mxu0 %v2083
    %2357 = vmatpush.bf16.msra.mxu0 %v2079
    %2358 = vmatpush.bf16.msra.mxu0 %v2075
    %2359 = vmatpush.bf16.msra.mxu0 %v2071
    %2360 = vmatpush.bf16.msra.mxu0 %v2067
    %2361 = vmatpush.bf16.msra.mxu0 %v2063
    %2362 = vmatmul.bf16.gmra.mxu0 %v2194
    %v2363 = vpop.f32.mrf.mxu0
    %v2364 = vadd.f32 %v2351, %v2363
    %v2365 = vpop.f32.mrf.mxu0
    %2366 = vdwg.mxu0
    %2367 = vmatpush.bf16.msra.mxu0 %v2123
    %2368 = vmatpush.bf16.msra.mxu0 %v2119
    %2369 = vmatpush.bf16.msra.mxu0 %v2115
    %2370 = vmatpush.bf16.msra.mxu0 %v2111
    %2371 = vmatpush.bf16.msra.mxu0 %v2107
    %2372 = vmatpush.bf16.msra.mxu0 %v2103
    %2373 = vmatpush.bf16.msra.mxu0 %v2099
    %2374 = vmatpush.bf16.msra.mxu0 %v2095
    %2375 = vmatmul.bf16.gmra.mxu0 %v2195
    %v2376 = vpop.f32.mrf.mxu0
    %v2377 = vadd.f32 %v2364, %v2376
    %v2378 = vpop.f32.mrf.mxu0
    %2379 = vdwg.mxu0
    %2380 = vmatpush.bf16.msra.mxu0 %v2155
    %2381 = vmatpush.bf16.msra.mxu0 %v2151
    %2382 = vmatpush.bf16.msra.mxu0 %v2147
    %2383 = vmatpush.bf16.msra.mxu0 %v2143
    %2384 = vmatpush.bf16.msra.mxu0 %v2139
    %2385 = vmatpush.bf16.msra.mxu0 %v2135
    %2386 = vmatpush.bf16.msra.mxu0 %v2131
    %2387 = vmatpush.bf16.msra.mxu0 %v2127
    %2388 = vmatmul.bf16.gmra.mxu0 %v2196
    %v2389 = vpop.f32.mrf.mxu0
    %v2390 = vadd.f32 %v2377, %v2389
    %v2391 = vpop.f32.mrf.mxu0
    %2392 = vdwg.mxu0
    %2393 = vmatpush.bf16.msra.mxu0 %v2187
    %2394 = vmatpush.bf16.msra.mxu0 %v2183
    %2395 = vmatpush.bf16.msra.mxu0 %v2179
    %2396 = vmatpush.bf16.msra.mxu0 %v2175
    %2397 = vmatpush.bf16.msra.mxu0 %v2171
    %2398 = vmatpush.bf16.msra.mxu0 %v2167
    %2399 = vmatpush.bf16.msra.mxu0 %v2163
    %2400 = vmatpush.bf16.msra.mxu0 %v2159
    %2401 = vmatmul.bf16.gmra.mxu0 %v2197
    %v2402 = vpop.f32.mrf.mxu0
    %v2403 = vadd.f32 %v2390, %v2402
    %v2404 = vpop.f32.mrf.mxu0
    %2405 = vdwg.mxu0
    %2406 = vmatpush.bf16.msra.mxu0 %v1964
    %2407 = vmatpush.bf16.msra.mxu0 %v1960
    %2408 = vmatpush.bf16.msra.mxu0 %v1956
    %2409 = vmatpush.bf16.msra.mxu0 %v1952
    %2410 = vmatpush.bf16.msra.mxu0 %v1948
    %2411 = vmatpush.bf16.msra.mxu0 %v1944
    %2412 = vmatpush.bf16.msra.mxu0 %v1940
    %2413 = vmatpush.bf16.msra.mxu0 %v1936
    %2414 = vmatmul.bf16.gmra.mxu0 %v2190
    %v2415 = vpop.f32.mrf.mxu0
    %v2416 = vadd.f32 0.0, %v2415
    %v2417 = vpop.f32.mrf.mxu0
    %2418 = vdwg.mxu0
    %2419 = vmatpush.bf16.msra.mxu0 %v1996
    %2420 = vmatpush.bf16.msra.mxu0 %v1992
    %2421 = vmatpush.bf16.msra.mxu0 %v1988
    %2422 = vmatpush.bf16.msra.mxu0 %v1984
    %2423 = vmatpush.bf16.msra.mxu0 %v1980
    %2424 = vmatpush.bf16.msra.mxu0 %v1976
    %2425 = vmatpush.bf16.msra.mxu0 %v1972
    %2426 = vmatpush.bf16.msra.mxu0 %v1968
    %2427 = vmatmul.bf16.gmra.mxu0 %v2191
    %v2428 = vpop.f32.mrf.mxu0
    %v2429 = vadd.f32 %v2416, %v2428
    %v2430 = vpop.f32.mrf.mxu0
    %2431 = vdwg.mxu0
    %2432 = vmatpush.bf16.msra.mxu0 %v2028
    %2433 = vmatpush.bf16.msra.mxu0 %v2024
    %2434 = vmatpush.bf16.msra.mxu0 %v2020
    %2435 = vmatpush.bf16.msra.mxu0 %v2016
    %2436 = vmatpush.bf16.msra.mxu0 %v2012
    %2437 = vmatpush.bf16.msra.mxu0 %v2008
    %2438 = vmatpush.bf16.msra.mxu0 %v2004
    %2439 = vmatpush.bf16.msra.mxu0 %v2000
    %2440 = vmatmul.bf16.gmra.mxu0 %v2192
    %v2441 = vpop.f32.mrf.mxu0
    %v2442 = vadd.f32 %v2429, %v2441
    %v2443 = vpop.f32.mrf.mxu0
    %2444 = vdwg.mxu0
    %2445 = vmatpush.bf16.msra.mxu0 %v2060
    %2446 = vmatpush.bf16.msra.mxu0 %v2056
    %2447 = vmatpush.bf16.msra.mxu0 %v2052
    %2448 = vmatpush.bf16.msra.mxu0 %v2048
    %2449 = vmatpush.bf16.msra.mxu0 %v2044
    %2450 = vmatpush.bf16.msra.mxu0 %v2040
    %2451 = vmatpush.bf16.msra.mxu0 %v2036
    %2452 = vmatpush.bf16.msra.mxu0 %v2032
    %2453 = vmatmul.bf16.gmra.mxu0 %v2193
    %v2454 = vpop.f32.mrf.mxu0
    %v2455 = vadd.f32 %v2442, %v2454
    %v2456 = vpop.f32.mrf.mxu0
    %2457 = vdwg.mxu0
    %2458 = vmatpush.bf16.msra.mxu0 %v2092
    %2459 = vmatpush.bf16.msra.mxu0 %v2088
    %2460 = vmatpush.bf16.msra.mxu0 %v2084
    %2461 = vmatpush.bf16.msra.mxu0 %v2080
    %2462 = vmatpush.bf16.msra.mxu0 %v2076
    %2463 = vmatpush.bf16.msra.mxu0 %v2072
    %2464 = vmatpush.bf16.msra.mxu0 %v2068
    %2465 = vmatpush.bf16.msra.mxu0 %v2064
    %2466 = vmatmul.bf16.gmra.mxu0 %v2194
    %v2467 = vpop.f32.mrf.mxu0
    %v2468 = vadd.f32 %v2455, %v2467
    %v2469 = vpop.f32.mrf.mxu0
    %2470 = vdwg.mxu0
    %2471 = vmatpush.bf16.msra.mxu0 %v2124
    %2472 = vmatpush.bf16.msra.mxu0 %v2120
    %2473 = vmatpush.bf16.msra.mxu0 %v2116
    %2474 = vmatpush.bf16.msra.mxu0 %v2112
    %2475 = vmatpush.bf16.msra.mxu0 %v2108
    %2476 = vmatpush.bf16.msra.mxu0 %v2104
    %2477 = vmatpush.bf16.msra.mxu0 %v2100
    %2478 = vmatpush.bf16.msra.mxu0 %v2096
    %2479 = vmatmul.bf16.gmra.mxu0 %v2195
    %v2480 = vpop.f32.mrf.mxu0
    %v2481 = vadd.f32 %v2468, %v2480
    %v2482 = vpop.f32.mrf.mxu0
    %2483 = vdwg.mxu0
    %2484 = vmatpush.bf16.msra.mxu0 %v2156
    %2485 = vmatpush.bf16.msra.mxu0 %v2152
    %2486 = vmatpush.bf16.msra.mxu0 %v2148
    %2487 = vmatpush.bf16.msra.mxu0 %v2144
    %2488 = vmatpush.bf16.msra.mxu0 %v2140
    %2489 = vmatpush.bf16.msra.mxu0 %v2136
    %2490 = vmatpush.bf16.msra.mxu0 %v2132
    %2491 = vmatpush.bf16.msra.mxu0 %v2128
    %2492 = vmatmul.bf16.gmra.mxu0 %v2196
    %v2493 = vpop.f32.mrf.mxu0
    %v2494 = vadd.f32 %v2481, %v2493
    %v2495 = vpop.f32.mrf.mxu0
    %2496 = vdwg.mxu0
    %2497 = vmatpush.bf16.msra.mxu0 %v2188
    %2498 = vmatpush.bf16.msra.mxu0 %v2184
    %2499 = vmatpush.bf16.msra.mxu0 %v2180
    %2500 = vmatpush.bf16.msra.mxu0 %v2176
    %2501 = vmatpush.bf16.msra.mxu0 %v2172
    %2502 = vmatpush.bf16.msra.mxu0 %v2168
    %2503 = vmatpush.bf16.msra.mxu0 %v2164
    %2504 = vmatpush.bf16.msra.mxu0 %v2160
    %2505 = vmatmul.bf16.gmra.mxu0 %v2197
    %v2506 = vpop.f32.mrf.mxu0
    %v2507 = vadd.f32 %v2494, %v2506
    %v2508 = vpop.f32.mrf.mxu0
    %2509 = vdwg.mxu0
    %2510 = vmatpush.bf16.msra.mxu0 %v1965
    %2511 = vmatpush.bf16.msra.mxu0 %v1961
    %2512 = vmatpush.bf16.msra.mxu0 %v1957
    %2513 = vmatpush.bf16.msra.mxu0 %v1953
    %2514 = vmatpush.bf16.msra.mxu0 %v1949
    %2515 = vmatpush.bf16.msra.mxu0 %v1945
    %2516 = vmatpush.bf16.msra.mxu0 %v1941
    %2517 = vmatpush.bf16.msra.mxu0 %v1937
    %2518 = vmatmul.bf16.gmra.mxu0 %v2190
    %v2519 = vpop.f32.mrf.mxu0
    %v2520 = vadd.f32 0.0, %v2519
    %v2521 = vpop.f32.mrf.mxu0
    %2522 = vdwg.mxu0
    %2523 = vmatpush.bf16.msra.mxu0 %v1997
    %2524 = vmatpush.bf16.msra.mxu0 %v1993
    %2525 = vmatpush.bf16.msra.mxu0 %v1989
    %2526 = vmatpush.bf16.msra.mxu0 %v1985
    %2527 = vmatpush.bf16.msra.mxu0 %v1981
    %2528 = vmatpush.bf16.msra.mxu0 %v1977
    %2529 = vmatpush.bf16.msra.mxu0 %v1973
    %2530 = vmatpush.bf16.msra.mxu0 %v1969
    %2531 = vmatmul.bf16.gmra.mxu0 %v2191
    %v2532 = vpop.f32.mrf.mxu0
    %v2533 = vadd.f32 %v2520, %v2532
    %v2534 = vpop.f32.mrf.mxu0
    %2535 = vdwg.mxu0
    %2536 = vmatpush.bf16.msra.mxu0 %v2029
    %2537 = vmatpush.bf16.msra.mxu0 %v2025
    %2538 = vmatpush.bf16.msra.mxu0 %v2021
    %2539 = vmatpush.bf16.msra.mxu0 %v2017
    %2540 = vmatpush.bf16.msra.mxu0 %v2013
    %2541 = vmatpush.bf16.msra.mxu0 %v2009
    %2542 = vmatpush.bf16.msra.mxu0 %v2005
    %2543 = vmatpush.bf16.msra.mxu0 %v2001
    %2544 = vmatmul.bf16.gmra.mxu0 %v2192
    %v2545 = vpop.f32.mrf.mxu0
    %v2546 = vadd.f32 %v2533, %v2545
    %v2547 = vpop.f32.mrf.mxu0
    %2548 = vdwg.mxu0
    %2549 = vmatpush.bf16.msra.mxu0 %v2061
    %2550 = vmatpush.bf16.msra.mxu0 %v2057
    %2551 = vmatpush.bf16.msra.mxu0 %v2053
    %2552 = vmatpush.bf16.msra.mxu0 %v2049
    %2553 = vmatpush.bf16.msra.mxu0 %v2045
    %2554 = vmatpush.bf16.msra.mxu0 %v2041
    %2555 = vmatpush.bf16.msra.mxu0 %v2037
    %2556 = vmatpush.bf16.msra.mxu0 %v2033
    %2557 = vmatmul.bf16.gmra.mxu0 %v2193
    %v2558 = vpop.f32.mrf.mxu0
    %v2559 = vadd.f32 %v2546, %v2558
    %v2560 = vpop.f32.mrf.mxu0
    %2561 = vdwg.mxu0
    %2562 = vmatpush.bf16.msra.mxu0 %v2093
    %2563 = vmatpush.bf16.msra.mxu0 %v2089
    %2564 = vmatpush.bf16.msra.mxu0 %v2085
    %2565 = vmatpush.bf16.msra.mxu0 %v2081
    %2566 = vmatpush.bf16.msra.mxu0 %v2077
    %2567 = vmatpush.bf16.msra.mxu0 %v2073
    %2568 = vmatpush.bf16.msra.mxu0 %v2069
    %2569 = vmatpush.bf16.msra.mxu0 %v2065
    %2570 = vmatmul.bf16.gmra.mxu0 %v2194
    %v2571 = vpop.f32.mrf.mxu0
    %v2572 = vadd.f32 %v2559, %v2571
    %v2573 = vpop.f32.mrf.mxu0
    %2574 = vdwg.mxu0
    %2575 = vmatpush.bf16.msra.mxu0 %v2125
    %2576 = vmatpush.bf16.msra.mxu0 %v2121
    %2577 = vmatpush.bf16.msra.mxu0 %v2117
    %2578 = vmatpush.bf16.msra.mxu0 %v2113
    %2579 = vmatpush.bf16.msra.mxu0 %v2109
    %2580 = vmatpush.bf16.msra.mxu0 %v2105
    %2581 = vmatpush.bf16.msra.mxu0 %v2101
    %2582 = vmatpush.bf16.msra.mxu0 %v2097
    %2583 = vmatmul.bf16.gmra.mxu0 %v2195
    %v2584 = vpop.f32.mrf.mxu0
    %v2585 = vadd.f32 %v2572, %v2584
    %v2586 = vpop.f32.mrf.mxu0
    %2587 = vdwg.mxu0
    %2588 = vmatpush.bf16.msra.mxu0 %v2157
    %2589 = vmatpush.bf16.msra.mxu0 %v2153
    %2590 = vmatpush.bf16.msra.mxu0 %v2149
    %2591 = vmatpush.bf16.msra.mxu0 %v2145
    %2592 = vmatpush.bf16.msra.mxu0 %v2141
    %2593 = vmatpush.bf16.msra.mxu0 %v2137
    %2594 = vmatpush.bf16.msra.mxu0 %v2133
    %2595 = vmatpush.bf16.msra.mxu0 %v2129
    %2596 = vmatmul.bf16.gmra.mxu0 %v2196
    %v2597 = vpop.f32.mrf.mxu0
    %v2598 = vadd.f32 %v2585, %v2597
    %v2599 = vpop.f32.mrf.mxu0
    %2600 = vdwg.mxu0
    %2601 = vmatpush.bf16.msra.mxu0 %v2189
    %2602 = vmatpush.bf16.msra.mxu0 %v2185
    %2603 = vmatpush.bf16.msra.mxu0 %v2181
    %2604 = vmatpush.bf16.msra.mxu0 %v2177
    %2605 = vmatpush.bf16.msra.mxu0 %v2173
    %2606 = vmatpush.bf16.msra.mxu0 %v2169
    %2607 = vmatpush.bf16.msra.mxu0 %v2165
    %2608 = vmatpush.bf16.msra.mxu0 %v2161
    %2609 = vmatmul.bf16.gmra.mxu0 %v2197
    %v2610 = vpop.f32.mrf.mxu0
    %v2611 = vadd.f32 %v2598, %v2610
    %v2612 = vpop.f32.mrf.mxu0
    %2613 = vdwg.mxu0
    %s2614 = scalar_lea.vmem %s5, 4
    %v2615 = vld [vmem:[%s2614] ss:$8 sm:$0xf]
    %v2617 = vperm.slane %v2615, 0
    %v2618 = vperm.slane %v2615, 1
    %v2619 = vperm.slane %v2615, 2
    %v2620 = vperm.slane %v2615, 3
    %v2625 = vmul.f32 %v2299, %v2617
    %v2626 = vmul.f32 %v2403, %v2618
    %v2627 = vmul.f32 %v2507, %v2619
    %v2628 = vmul.f32 %v2611, %v2620
    %s2629 = scalar_lea.vmem %s5, 36
    %v2630 = vld [vmem:[%s2629] ss:$8 sm:$0xf]
    %v2632 = vperm.slane %v2630, 0
    %v2633 = vperm.slane %v2630, 1
    %v2634 = vperm.slane %v2630, 2
    %v2635 = vperm.slane %v2630, 3
    %v2640 = vadd.f32 %v2625, %v2632
    %v2641 = vadd.f32 %v2626, %v2633
    %v2642 = vadd.f32 %v2627, %v2634
    %v2643 = vadd.f32 %v2628, %v2635
    %v2644 = vmax.f32 %v2640, 0.0
    %v2645 = vmax.f32 %v2641, 0.0
    %v2646 = vmax.f32 %v2642, 0.0
    %v2647 = vmax.f32 %v2643, 0.0
    %s2648 = scalar_lea.vmem %s5, 5
    %v2649 = vld [vmem:[%s2648] ss:$8 sm:$0xf]
    %s2650 = scalar_lea.vmem %s5, 37
    %v2651 = vld [vmem:[%s2650] ss:$8 sm:$0xf]
    %v2652 = vrot.slane %v2644, 4
    %v2653 = vadd.f32 %v2644, %v2652
    %v2654 = vrot.slane %v2653, 2
    %v2655 = vadd.f32 %v2653, %v2654
    %v2656 = vrot.slane %v2655, 1
    %v2657 = vadd.f32 %v2655, %v2656
    %v2658 = vrot.slane %v2645, 4
    %v2659 = vadd.f32 %v2645, %v2658
    %v2660 = vrot.slane %v2659, 2
    %v2661 = vadd.f32 %v2659, %v2660
    %v2662 = vrot.slane %v2661, 1
    %v2663 = vadd.f32 %v2661, %v2662
    %v2664 = vrot.slane %v2646, 4
    %v2665 = vadd.f32 %v2646, %v2664
    %v2666 = vrot.slane %v2665, 2
    %v2667 = vadd.f32 %v2665, %v2666
    %v2668 = vrot.slane %v2667, 1
    %v2669 = vadd.f32 %v2667, %v2668
    %v2670 = vrot.slane %v2647, 4
    %v2671 = vadd.f32 %v2647, %v2670
    %v2672 = vrot.slane %v2671, 2
    %v2673 = vadd.f32 %v2671, %v2672
    %v2674 = vrot.slane %v2673, 1
    %v2675 = vadd.f32 %v2673, %v2674
    %v2676 = vmul.f32 %v2657, %v484
    %v2677 = vmul.f32 %v2663, %v484
    %v2678 = vmul.f32 %v2669, %v484
    %v2679 = vmul.f32 %v2675, %v484
    %v2680 = vmul.f32 %v2644, %v2644
    %v2681 = vmul.f32 %v2645, %v2645
    %v2682 = vmul.f32 %v2646, %v2646
    %v2683 = vmul.f32 %v2647, %v2647
    %v2684 = vrot.slane %v2680, 4
    %v2685 = vadd.f32 %v2680, %v2684
    %v2686 = vrot.slane %v2685, 2
    %v2687 = vadd.f32 %v2685, %v2686
    %v2688 = vrot.slane %v2687, 1
    %v2689 = vadd.f32 %v2687, %v2688
    %v2690 = vrot.slane %v2681, 4
    %v2691 = vadd.f32 %v2681, %v2690
    %v2692 = vrot.slane %v2691, 2
    %v2693 = vadd.f32 %v2691, %v2692
    %v2694 = vrot.slane %v2693, 1
    %v2695 = vadd.f32 %v2693, %v2694
    %v2696 = vrot.slane %v2682, 4
    %v2697 = vadd.f32 %v2682, %v2696
    %v2698 = vrot.slane %v2697, 2
    %v2699 = vadd.f32 %v2697, %v2698
    %v2700 = vrot.slane %v2699, 1
    %v2701 = vadd.f32 %v2699, %v2700
    %v2702 = vrot.slane %v2683, 4
    %v2703 = vadd.f32 %v2683, %v2702
    %v2704 = vrot.slane %v2703, 2
    %v2705 = vadd.f32 %v2703, %v2704
    %v2706 = vrot.slane %v2705, 1
    %v2707 = vadd.f32 %v2705, %v2706
    %v2708 = vmul.f32 %v2689, %v484
    %v2709 = vmul.f32 %v2695, %v484
    %v2710 = vmul.f32 %v2701, %v484
    %v2711 = vmul.f32 %v2707, %v484
    %v2712 = vmul.f32 %v2676, %v2676
    %v2713 = vmul.f32 %v2677, %v2677
    %v2714 = vmul.f32 %v2678, %v2678
    %v2715 = vmul.f32 %v2679, %v2679
    %v2716 = vsub.f32 %v2708, %v2712
    %v2717 = vsub.f32 %v2709, %v2713
    %v2718 = vsub.f32 %v2710, %v2714
    %v2719 = vsub.f32 %v2711, %v2715
    %v2720 = vmax.f32 %v2716, 0.0
    %v2721 = vmax.f32 %v2717, 0.0
    %v2722 = vmax.f32 %v2718, 0.0
    %v2723 = vmax.f32 %v2719, 0.0
    %v2724 = vadd.f32 %v2720, 1e-05
    %v2725 = vadd.f32 %v2721, 1e-05
    %v2726 = vadd.f32 %v2722, 1e-05
    %v2727 = vadd.f32 %v2723, 1e-05
    %v2728 = vrsqrt.pop %v2724
    %v2729 = vmul.f32 %v2728, %v2724
    %v2730 = vmul.f32 %v2729, %v2728
    %v2731 = vmul.f32 0.5, %v2730
    %v2732 = vsub.f32 1.5, %v2731
    %v2733 = vmul.f32 %v2728, %v2732
    %vm2734 = vweird.f32 %v2724
    %vm2735 = vweird.f32 %v2728
    %vm2736 = vmor %vm2734, %vm2735
    %v2737 = vsel %vm2736, %v2728, %v2733
    %v2738 = vrsqrt.pop %v2725
    %v2739 = vmul.f32 %v2738, %v2725
    %v2740 = vmul.f32 %v2739, %v2738
    %v2741 = vmul.f32 0.5, %v2740
    %v2742 = vsub.f32 1.5, %v2741
    %v2743 = vmul.f32 %v2738, %v2742
    %vm2744 = vweird.f32 %v2725
    %vm2745 = vweird.f32 %v2738
    %vm2746 = vmor %vm2744, %vm2745
    %v2747 = vsel %vm2746, %v2738, %v2743
    %v2748 = vrsqrt.pop %v2726
    %v2749 = vmul.f32 %v2748, %v2726
    %v2750 = vmul.f32 %v2749, %v2748
    %v2751 = vmul.f32 0.5, %v2750
    %v2752 = vsub.f32 1.5, %v2751
    %v2753 = vmul.f32 %v2748, %v2752
    %vm2754 = vweird.f32 %v2726
    %vm2755 = vweird.f32 %v2748
    %vm2756 = vmor %vm2754, %vm2755
    %v2757 = vsel %vm2756, %v2748, %v2753
    %v2758 = vrsqrt.pop %v2727
    %v2759 = vmul.f32 %v2758, %v2727
    %v2760 = vmul.f32 %v2759, %v2758
    %v2761 = vmul.f32 0.5, %v2760
    %v2762 = vsub.f32 1.5, %v2761
    %v2763 = vmul.f32 %v2758, %v2762
    %vm2764 = vweird.f32 %v2727
    %vm2765 = vweird.f32 %v2758
    %vm2766 = vmor %vm2764, %vm2765
    %v2767 = vsel %vm2766, %v2758, %v2763
    %v2772 = vrot.slane %v2747, 7
    %v2773 = vrot.slane %v2757, 6
    %v2774 = vrot.slane %v2767, 5
    %v2775 = vsel %vm684, %v2737, %v2772
    %v2776 = vsel %vm686, %v2773, %v2774
    %v2777 = vsel %vm688, %v2775, %v2776
    %v2779 = vmul.f32 %v2649, %v2777
    %v2781 = vperm.slane %v2779, 0
    %v2782 = vperm.slane %v2779, 1
    %v2783 = vperm.slane %v2779, 2
    %v2784 = vperm.slane %v2779, 3
    %v2789 = vmul.f32 %v2644, %v2781
    %v2790 = vmul.f32 %v2645, %v2782
    %v2791 = vmul.f32 %v2646, %v2783
    %v2792 = vmul.f32 %v2647, %v2784
    %v2793 = vmul.f32 %v2676, %v2781
    %v2794 = vmul.f32 %v2677, %v2782
    %v2795 = vmul.f32 %v2678, %v2783
    %v2796 = vmul.f32 %v2679, %v2784
    %v2801 = vrot.slane %v2794, 7
    %v2802 = vrot.slane %v2795, 6
    %v2803 = vrot.slane %v2796, 5
    %v2804 = vsel %vm684, %v2793, %v2801
    %v2805 = vsel %vm686, %v2802, %v2803
    %v2806 = vsel %vm688, %v2804, %v2805
    %v2808 = vsub.f32 %v2651, %v2806
    %v2810 = vperm.slane %v2808, 0
    %v2811 = vperm.slane %v2808, 1
    %v2812 = vperm.slane %v2808, 2
    %v2813 = vperm.slane %v2808, 3
    %v2818 = vadd.f32 %v2789, %v2810
    %v2819 = vadd.f32 %v2790, %v2811
    %v2820 = vadd.f32 %v2791, %v2812
    %v2821 = vadd.f32 %v2792, %v2813
    %v2822 = vld [vmem:[#allocation6] sm:$0xff]
    %v2823 = vld [vmem:[#allocation6 + $0x8] sm:$0xff]
    %v2824 = vld [vmem:[#allocation6 + $0x10] sm:$0xff]
    %v2825 = vld [vmem:[#allocation6 + $0x18] sm:$0xff]
    %v2826 = vld [vmem:[#allocation6 + $0x20] sm:$0xff]
    %v2827 = vld [vmem:[#allocation6 + $0x28] sm:$0xff]
    %v2828 = vld [vmem:[#allocation6 + $0x30] sm:$0xff]
    %v2829 = vld [vmem:[#allocation6 + $0x38] sm:$0xff]
    %v2830 = vld [vmem:[#allocation6 + $0x40] sm:$0xff]
    %v2831 = vld [vmem:[#allocation6 + $0x48] sm:$0xff]
    %v2832 = vld [vmem:[#allocation6 + $0x50] sm:$0xff]
    %v2833 = vld [vmem:[#allocation6 + $0x58] sm:$0xff]
    %v2834 = vld [vmem:[#allocation6 + $0x60] sm:$0xff]
    %v2835 = vld [vmem:[#allocation6 + $0x68] sm:$0xff]
    %v2836 = vld [vmem:[#allocation6 + $0x70] sm:$0xff]
    %v2837 = vld [vmem:[#allocation6 + $0x78] sm:$0xff]
    %v2838 = vunpack.c.0.s8 %v2822
    %v2839 = vunpack.c.1.s8 %v2822
    %v2840 = vunpack.c.2.s8 %v2822
    %v2841 = vunpack.c.3.s8 %v2822
    %v2842 = vunpack.c.0.s8 %v2823
    %v2843 = vunpack.c.1.s8 %v2823
    %v2844 = vunpack.c.2.s8 %v2823
    %v2845 = vunpack.c.3.s8 %v2823
    %v2846 = vunpack.c.0.s8 %v2824
    %v2847 = vunpack.c.1.s8 %v2824
    %v2848 = vunpack.c.2.s8 %v2824
    %v2849 = vunpack.c.3.s8 %v2824
    %v2850 = vunpack.c.0.s8 %v2825
    %v2851 = vunpack.c.1.s8 %v2825
    %v2852 = vunpack.c.2.s8 %v2825
    %v2853 = vunpack.c.3.s8 %v2825
    %v2854 = vunpack.c.0.s8 %v2826
    %v2855 = vunpack.c.1.s8 %v2826
    %v2856 = vunpack.c.2.s8 %v2826
    %v2857 = vunpack.c.3.s8 %v2826
    %v2858 = vunpack.c.0.s8 %v2827
    %v2859 = vunpack.c.1.s8 %v2827
    %v2860 = vunpack.c.2.s8 %v2827
    %v2861 = vunpack.c.3.s8 %v2827
    %v2862 = vunpack.c.0.s8 %v2828
    %v2863 = vunpack.c.1.s8 %v2828
    %v2864 = vunpack.c.2.s8 %v2828
    %v2865 = vunpack.c.3.s8 %v2828
    %v2866 = vunpack.c.0.s8 %v2829
    %v2867 = vunpack.c.1.s8 %v2829
    %v2868 = vunpack.c.2.s8 %v2829
    %v2869 = vunpack.c.3.s8 %v2829
    %v2870 = vunpack.c.0.s8 %v2830
    %v2871 = vunpack.c.1.s8 %v2830
    %v2872 = vunpack.c.2.s8 %v2830
    %v2873 = vunpack.c.3.s8 %v2830
    %v2874 = vunpack.c.0.s8 %v2831
    %v2875 = vunpack.c.1.s8 %v2831
    %v2876 = vunpack.c.2.s8 %v2831
    %v2877 = vunpack.c.3.s8 %v2831
    %v2878 = vunpack.c.0.s8 %v2832
    %v2879 = vunpack.c.1.s8 %v2832
    %v2880 = vunpack.c.2.s8 %v2832
    %v2881 = vunpack.c.3.s8 %v2832
    %v2882 = vunpack.c.0.s8 %v2833
    %v2883 = vunpack.c.1.s8 %v2833
    %v2884 = vunpack.c.2.s8 %v2833
    %v2885 = vunpack.c.3.s8 %v2833
    %v2886 = vunpack.c.0.s8 %v2834
    %v2887 = vunpack.c.1.s8 %v2834
    %v2888 = vunpack.c.2.s8 %v2834
    %v2889 = vunpack.c.3.s8 %v2834
    %v2890 = vunpack.c.0.s8 %v2835
    %v2891 = vunpack.c.1.s8 %v2835
    %v2892 = vunpack.c.2.s8 %v2835
    %v2893 = vunpack.c.3.s8 %v2835
    %v2894 = vunpack.c.0.s8 %v2836
    %v2895 = vunpack.c.1.s8 %v2836
    %v2896 = vunpack.c.2.s8 %v2836
    %v2897 = vunpack.c.3.s8 %v2836
    %v2898 = vunpack.c.0.s8 %v2837
    %v2899 = vunpack.c.1.s8 %v2837
    %v2900 = vunpack.c.2.s8 %v2837
    %v2901 = vunpack.c.3.s8 %v2837
    %v2902 = vcvt.s32.f32 %v2838
    %v2903 = vcvt.s32.f32 %v2839
    %v2904 = vcvt.s32.f32 %v2840
    %v2905 = vcvt.s32.f32 %v2841
    %v2906 = vcvt.s32.f32 %v2842
    %v2907 = vcvt.s32.f32 %v2843
    %v2908 = vcvt.s32.f32 %v2844
    %v2909 = vcvt.s32.f32 %v2845
    %v2910 = vcvt.s32.f32 %v2846
    %v2911 = vcvt.s32.f32 %v2847
    %v2912 = vcvt.s32.f32 %v2848
    %v2913 = vcvt.s32.f32 %v2849
    %v2914 = vcvt.s32.f32 %v2850
    %v2915 = vcvt.s32.f32 %v2851
    %v2916 = vcvt.s32.f32 %v2852
    %v2917 = vcvt.s32.f32 %v2853
    %v2918 = vcvt.s32.f32 %v2854
    %v2919 = vcvt.s32.f32 %v2855
    %v2920 = vcvt.s32.f32 %v2856
    %v2921 = vcvt.s32.f32 %v2857
    %v2922 = vcvt.s32.f32 %v2858
    %v2923 = vcvt.s32.f32 %v2859
    %v2924 = vcvt.s32.f32 %v2860
    %v2925 = vcvt.s32.f32 %v2861
    %v2926 = vcvt.s32.f32 %v2862
    %v2927 = vcvt.s32.f32 %v2863
    %v2928 = vcvt.s32.f32 %v2864
    %v2929 = vcvt.s32.f32 %v2865
    %v2930 = vcvt.s32.f32 %v2866
    %v2931 = vcvt.s32.f32 %v2867
    %v2932 = vcvt.s32.f32 %v2868
    %v2933 = vcvt.s32.f32 %v2869
    %v2934 = vcvt.s32.f32 %v2870
    %v2935 = vcvt.s32.f32 %v2871
    %v2936 = vcvt.s32.f32 %v2872
    %v2937 = vcvt.s32.f32 %v2873
    %v2938 = vcvt.s32.f32 %v2874
    %v2939 = vcvt.s32.f32 %v2875
    %v2940 = vcvt.s32.f32 %v2876
    %v2941 = vcvt.s32.f32 %v2877
    %v2942 = vcvt.s32.f32 %v2878
    %v2943 = vcvt.s32.f32 %v2879
    %v2944 = vcvt.s32.f32 %v2880
    %v2945 = vcvt.s32.f32 %v2881
    %v2946 = vcvt.s32.f32 %v2882
    %v2947 = vcvt.s32.f32 %v2883
    %v2948 = vcvt.s32.f32 %v2884
    %v2949 = vcvt.s32.f32 %v2885
    %v2950 = vcvt.s32.f32 %v2886
    %v2951 = vcvt.s32.f32 %v2887
    %v2952 = vcvt.s32.f32 %v2888
    %v2953 = vcvt.s32.f32 %v2889
    %v2954 = vcvt.s32.f32 %v2890
    %v2955 = vcvt.s32.f32 %v2891
    %v2956 = vcvt.s32.f32 %v2892
    %v2957 = vcvt.s32.f32 %v2893
    %v2958 = vcvt.s32.f32 %v2894
    %v2959 = vcvt.s32.f32 %v2895
    %v2960 = vcvt.s32.f32 %v2896
    %v2961 = vcvt.s32.f32 %v2897
    %v2962 = vcvt.s32.f32 %v2898
    %v2963 = vcvt.s32.f32 %v2899
    %v2964 = vcvt.s32.f32 %v2900
    %v2965 = vcvt.s32.f32 %v2901
    %v2966 = vpack.c.bf16 %v2903, %v2902
    %v2967 = vpack.c.bf16 %v2905, %v2904
    %v2968 = vpack.c.bf16 %v2907, %v2906
    %v2969 = vpack.c.bf16 %v2909, %v2908
    %v2970 = vpack.c.bf16 %v2911, %v2910
    %v2971 = vpack.c.bf16 %v2913, %v2912
    %v2972 = vpack.c.bf16 %v2915, %v2914
    %v2973 = vpack.c.bf16 %v2917, %v2916
    %v2974 = vpack.c.bf16 %v2919, %v2918
    %v2975 = vpack.c.bf16 %v2921, %v2920
    %v2976 = vpack.c.bf16 %v2923, %v2922
    %v2977 = vpack.c.bf16 %v2925, %v2924
    %v2978 = vpack.c.bf16 %v2927, %v2926
    %v2979 = vpack.c.bf16 %v2929, %v2928
    %v2980 = vpack.c.bf16 %v2931, %v2930
    %v2981 = vpack.c.bf16 %v2933, %v2932
    %v2982 = vpack.c.bf16 %v2935, %v2934
    %v2983 = vpack.c.bf16 %v2937, %v2936
    %v2984 = vpack.c.bf16 %v2939, %v2938
    %v2985 = vpack.c.bf16 %v2941, %v2940
    %v2986 = vpack.c.bf16 %v2943, %v2942
    %v2987 = vpack.c.bf16 %v2945, %v2944
    %v2988 = vpack.c.bf16 %v2947, %v2946
    %v2989 = vpack.c.bf16 %v2949, %v2948
    %v2990 = vpack.c.bf16 %v2951, %v2950
    %v2991 = vpack.c.bf16 %v2953, %v2952
    %v2992 = vpack.c.bf16 %v2955, %v2954
    %v2993 = vpack.c.bf16 %v2957, %v2956
    %v2994 = vpack.c.bf16 %v2959, %v2958
    %v2995 = vpack.c.bf16 %v2961, %v2960
    %v2996 = vpack.c.bf16 %v2963, %v2962
    %v2997 = vpack.c.bf16 %v2965, %v2964
    %v2998 = vpack.c.bf16 %v2818, %v2818
    %v2999 = vpack.c.bf16 %v2819, %v2819
    %v3000 = vpack.c.bf16 %v2820, %v2820
    %v3001 = vpack.c.bf16 %v2821, %v2821
    %3002 = vmatpush.bf16.msra.mxu0 %v2973
    %3003 = vmatpush.bf16.msra.mxu0 %v2972
    %3004 = vmatpush.bf16.msra.mxu0 %v2971
    %3005 = vmatpush.bf16.msra.mxu0 %v2970
    %3006 = vmatpush.bf16.msra.mxu0 %v2969
    %3007 = vmatpush.bf16.msra.mxu0 %v2968
    %3008 = vmatpush.bf16.msra.mxu0 %v2967
    %3009 = vmatpush.bf16.msra.mxu0 %v2966
    %3010 = vmatmul.bf16.gmra.mxu0 %v2998
    %v3011 = vpop.f32.mrf.mxu0
    %v3012 = vadd.f32 0.0, %v3011
    %v3013 = vpop.f32.mrf.mxu0
    %3014 = vdwg.mxu0
    %3015 = vmatpush.bf16.msra.mxu0 %v2981
    %3016 = vmatpush.bf16.msra.mxu0 %v2980
    %3017 = vmatpush.bf16.msra.mxu0 %v2979
    %3018 = vmatpush.bf16.msra.mxu0 %v2978
    %3019 = vmatpush.bf16.msra.mxu0 %v2977
    %3020 = vmatpush.bf16.msra.mxu0 %v2976
    %3021 = vmatpush.bf16.msra.mxu0 %v2975
    %3022 = vmatpush.bf16.msra.mxu0 %v2974
    %3023 = vmatmul.bf16.gmra.mxu0 %v2999
    %v3024 = vpop.f32.mrf.mxu0
    %v3025 = vadd.f32 %v3012, %v3024
    %v3026 = vpop.f32.mrf.mxu0
    %3027 = vdwg.mxu0
    %3028 = vmatpush.bf16.msra.mxu0 %v2989
    %3029 = vmatpush.bf16.msra.mxu0 %v2988
    %3030 = vmatpush.bf16.msra.mxu0 %v2987
    %3031 = vmatpush.bf16.msra.mxu0 %v2986
    %3032 = vmatpush.bf16.msra.mxu0 %v2985
    %3033 = vmatpush.bf16.msra.mxu0 %v2984
    %3034 = vmatpush.bf16.msra.mxu0 %v2983
    %3035 = vmatpush.bf16.msra.mxu0 %v2982
    %3036 = vmatmul.bf16.gmra.mxu0 %v3000
    %v3037 = vpop.f32.mrf.mxu0
    %v3038 = vadd.f32 %v3025, %v3037
    %v3039 = vpop.f32.mrf.mxu0
    %3040 = vdwg.mxu0
    %3041 = vmatpush.bf16.msra.mxu0 %v2997
    %3042 = vmatpush.bf16.msra.mxu0 %v2996
    %3043 = vmatpush.bf16.msra.mxu0 %v2995
    %3044 = vmatpush.bf16.msra.mxu0 %v2994
    %3045 = vmatpush.bf16.msra.mxu0 %v2993
    %3046 = vmatpush.bf16.msra.mxu0 %v2992
    %3047 = vmatpush.bf16.msra.mxu0 %v2991
    %3048 = vmatpush.bf16.msra.mxu0 %v2990
    %3049 = vmatmul.bf16.gmra.mxu0 %v3001
    %v3050 = vpop.f32.mrf.mxu0
    %v3051 = vadd.f32 %v3038, %v3050
    %v3052 = vpop.f32.mrf.mxu0
    %3053 = vdwg.mxu0
    %v3054 = vld [vmem:[%s5 + $0x6] ss:$0 sm:$0xff]
    %v3055 = vmul.f32 %v3051, %v3054
    %v3056 = vld [vmem:[%s5 + $0xe] ss:$0 sm:$0xff]
    %v3057 = vadd.f32 %v3055, %v3056
    %v3058 = vmax.f32 %v3057, 0.0
    %v3059 = vld [vmem:[%s5 + $0x16] ss:$0 sm:$0xff]
    %v3060 = vld [vmem:[%s5 + $0x1e] ss:$0 sm:$0xff]
    %v3061 = vrot.slane %v3058, 4
    %v3062 = vadd.f32 %v3058, %v3061
    %v3063 = vrot.slane %v3062, 2
    %v3064 = vadd.f32 %v3062, %v3063
    %v3065 = vrot.slane %v3064, 1
    %v3066 = vadd.f32 %v3064, %v3065
    %v3067 = vmul.f32 %v3066, %v484
    %v3068 = vmul.f32 %v3058, %v3058
    %v3069 = vrot.slane %v3068, 4
    %v3070 = vadd.f32 %v3068, %v3069
    %v3071 = vrot.slane %v3070, 2
    %v3072 = vadd.f32 %v3070, %v3071
    %v3073 = vrot.slane %v3072, 1
    %v3074 = vadd.f32 %v3072, %v3073
    %v3075 = vmul.f32 %v3074, %v484
    %v3076 = vmul.f32 %v3067, %v3067
    %v3077 = vsub.f32 %v3075, %v3076
    %v3078 = vmax.f32 %v3077, 0.0
    %v3079 = vadd.f32 %v3078, 1e-05
    %v3080 = vrsqrt.pop %v3079
    %v3081 = vmul.f32 %v3080, %v3079
    %v3082 = vmul.f32 %v3081, %v3080
    %v3083 = vmul.f32 0.5, %v3082
    %v3084 = vsub.f32 1.5, %v3083
    %v3085 = vmul.f32 %v3080, %v3084
    %vm3086 = vweird.f32 %v3079
    %vm3087 = vweird.f32 %v3080
    %vm3088 = vmor %vm3086, %vm3087
    %v3089 = vsel %vm3088, %v3080, %v3085
    %v3090 = vmul.f32 %v3059, %v3089
    %v3091 = vmul.f32 %v3058, %v3090
    %v3092 = vmul.f32 %v3067, %v3090
    %v3093 = vsub.f32 %v3060, %v3092
    %v3094 = vadd.f32 %v3091, %v3093
    %v3095 = vld [vmem:[%s4] sm:$0xf]
    %v3096 = vld [vmem:[%s4 + $0x4] sm:$0xf]
    %v3097 = vld [vmem:[%s4 + $0x8] sm:$0xf]
    %v3098 = vld [vmem:[%s4 + $0xc] sm:$0xf]
    %v3099 = vld [vmem:[%s4 + $0x10] sm:$0xf]
    %v3100 = vld [vmem:[%s4 + $0x14] sm:$0xf]
    %v3101 = vld [vmem:[%s4 + $0x18] sm:$0xf]
    %v3102 = vld [vmem:[%s4 + $0x1c] sm:$0xf]
    %v3103 = vld [vmem:[%s4 + $0x20] sm:$0xf]
    %v3104 = vld [vmem:[%s4 + $0x24] sm:$0xf]
    %v3105 = vld [vmem:[%s4 + $0x28] sm:$0xf]
    %v3106 = vld [vmem:[%s4 + $0x2c] sm:$0xf]
    %v3107 = vld [vmem:[%s4 + $0x30] sm:$0xf]
    %v3108 = vld [vmem:[%s4 + $0x34] sm:$0xf]
    %v3109 = vld [vmem:[%s4 + $0x38] sm:$0xf]
    %v3110 = vld [vmem:[%s4 + $0x3c] sm:$0xf]
    %v3111 = vpack.c.bf16 %v3094, %v3094
    %v3112 = vld [vmem:[%s5 + $0x26] ss:$0 sm:$0xff]
    %v3129 = vunpack.c.l.b16 %v3095
    %v3130 = vunpack.c.l.b16 %v3096
    %v3131 = vunpack.c.l.b16 %v3097
    %v3132 = vunpack.c.l.b16 %v3098
    %v3133 = vunpack.c.l.b16 %v3099
    %v3134 = vunpack.c.l.b16 %v3100
    %v3135 = vunpack.c.l.b16 %v3101
    %v3136 = vunpack.c.l.b16 %v3102
    %v3137 = vunpack.c.l.b16 %v3103
    %v3138 = vunpack.c.l.b16 %v3104
    %v3139 = vunpack.c.l.b16 %v3105
    %v3140 = vunpack.c.l.b16 %v3106
    %v3141 = vunpack.c.l.b16 %v3107
    %v3142 = vunpack.c.l.b16 %v3108
    %v3143 = vunpack.c.l.b16 %v3109
    %v3144 = vunpack.c.l.b16 %v3110
    %v3145 = vpack.c.b16 %v3130, %v3129
    %v3146 = vpack.c.b16 %v3132, %v3131
    %v3147 = vpack.c.b16 %v3134, %v3133
    %v3148 = vpack.c.b16 %v3136, %v3135
    %v3149 = vpack.c.b16 %v3138, %v3137
    %v3150 = vpack.c.b16 %v3140, %v3139
    %v3151 = vpack.c.b16 %v3142, %v3141
    %v3152 = vpack.c.b16 %v3144, %v3143
    %3161 = vmatpush.bf16.msra.mxu0 %v3152
    %3162 = vmatpush.bf16.msra.mxu0 %v3151
    %3163 = vmatpush.bf16.msra.mxu0 %v3150
    %3164 = vmatpush.bf16.msra.mxu0 %v3149
    %3165 = vmatpush.bf16.msra.mxu0 %v3148
    %3166 = vmatpush.bf16.msra.mxu0 %v3147
    %3167 = vmatpush.bf16.msra.mxu0 %v3146
    %3168 = vmatpush.bf16.msra.mxu0 %v3145
    %3169 = vmatmul.bf16.gmra.mxu0 %v3111
    %v3170 = vpop.f32.mrf.mxu0
    %v3171 = vadd.f32 %v3112, %v3170
    %v3172 = vpop.f32.mrf.mxu0
    %3173 = vdwg.mxu0
    %v3174 = vmax.f32 %v3171, 0.0
    %v3175 = vld [vmem:[%s5 + $0x7] ss:$0 sm:$0xff]
    %v3176 = vld [vmem:[%s5 + $0xf] ss:$0 sm:$0xff]
    %v3177 = vld [vmem:[%s5 + $0x2e] ss:$0 sm:$0xff]
    %v3178 = vmul.f32 %v3174, %v3175
    %vm3179 = vcmask 261120
    %v3180 = vsel %vm3179, %v3178, 0.0
    %3181 = vadd.xlane.f32.xlu0 %v3180
    %v3182 = vpop.xlane.xlu0 %3181
    %v3183 = vmul.f32 %v3174, %v3176
    %v3184 = vsel %vm3179, %v3183, 0.0
    %3185 = vadd.xlane.f32.xlu0 %v3184
    %v3186 = vpop.xlane.xlu0 %3185
    %v3187 = vlaneseq
    %v3188 = vand.u32 %v3187, 127
    %vm3189 = vcmp.eq.s32.totalorder %v3188, 0
    %v3190 = vsel %vm3189, %v3182, %v3186
    %v3191 = vadd.f32 %v3190, %v3177
    %vm3192 = vcmask 15360
    %3193 = vst.msk [vmem:[%s6] sm:$0xff] %vm3192, %v3191
    // Predicated region
    $region38: #{tpu_custom_call.1} parent=1 // pred_check
      _
    $region39: #{tpu_custom_call.1} parent=1 // pred_check_branch
      %3195 = sbr.rel (0) target = $region41
    $region40: #{tpu_custom_call.1} parent=1 // pred_region
      _
    $region41: #{tpu_custom_call.1} parent=1 // pred_fallthru
      _
    // Predicated region
    $region42: #{tpu_custom_call.1} parent=1 // pred_check
      _
    $region43: #{tpu_custom_call.1} parent=1 // pred_check_branch
      %3197 = sbr.rel (0) target = $region45
    $region44: #{tpu_custom_call.1} parent=1 // pred_region
      _
    $region45: #{tpu_custom_call.1} parent=1 // pred_fallthru
      _
    %3198 = vsyncpa [#allocation3], 1
    %3199 = vsyncpa [#allocation5], 1

</llo_original>
